<compile_context>
chip_gen: v7x
topology: tpu7x:2x2x1
jax: 0.10.0
libtpu: 0.0.40
codegen_flags: <defaults>
</compile_context>

<pallas_src>
import functools

import jax
import jax.numpy as jnp
from jax.experimental import pallas as pl
from jax.experimental.pallas import tpu as pltpu


# ----------------------------- Pallas kernel --------------------------------
def _bottle2neck_kernel(x_ref, w1_ref, b1_ref, wc_ref, b2_ref, w3_ref, b3_ref,
                        o_ref, *, img_h):
    # x_ref block: (M, W*Cin) with M = Nb*img_h rows (Nb images stacked).
    M, WCin = x_ref.shape
    nums = wc_ref.shape[0]
    WW = wc_ref.shape[2]                 # W * width = 128
    WCout = w3_ref.shape[2]              # W * Cout = 512
    bf16 = jnp.bfloat16

    x = x_ref[...]                                                 # f32 (M, 512)

    # conv1 (1x1, block-diag over W, BN1 folded, split-major cols) + bias+relu.
    out1 = jnp.dot(x.astype(bf16), w1_ref[...],
                   preferred_element_type=jnp.float32)
    out1 = jnp.maximum(out1 + b1_ref[...], 0.0)                    # (M, 512) f32

    b2 = b2_ref[...]                                               # (nums, 128)

    # Hoisted per-image edge masks: M stacks Nb images of img_h rows, so the
    # sublane rolls below wrap across image boundaries -- the first/last row
    # of *each* image must be zeroed (this is also the conv's H-dir padding).
    row = jax.lax.broadcasted_iota(jnp.int32, (M, WW), 0)
    mask_top = (row % img_h) == 0
    mask_bot = (row % img_h) == (img_h - 1)

    acc = jnp.zeros((M, WCout), jnp.float32)
    sp = None
    for i in range(nums):                      # static unroll (nums = 3)
        spx_i = out1[:, i * WW:(i + 1) * WW]   # contiguous 128-lane slice
        sp = spx_i if i == 0 else sp + spx_i   # stype='normal' accumulation

        # H-direction taps via sublane rotations (XLU slot); shifts must be
        # non-negative, so "row above" is shift=1 and "row below" is M-1.
        sp_dn = jnp.where(mask_top, 0.0, pltpu.roll(sp, shift=1, axis=0))
        sp_up = jnp.where(mask_bot, 0.0, pltpu.roll(sp, shift=M - 1, axis=0))

        # Three accumulated dots against the banded weight's K-bands -- same
        # MXU push count as one (M,384)@(384,128) dot, no concat temporary.
        conv = jnp.dot(sp_dn.astype(bf16), wc_ref[i, 0],
                       preferred_element_type=jnp.float32)
        conv = conv + jnp.dot(sp.astype(bf16), wc_ref[i, 1],
                              preferred_element_type=jnp.float32)
        conv = conv + jnp.dot(sp_up.astype(bf16), wc_ref[i, 2],
                              preferred_element_type=jnp.float32)

        sp = jnp.maximum(conv + b2[i:i + 1, :], 0.0)               # bn_i + relu
        # conv3 accumulated per split (no concat); BN3 scale folded into W3.
        acc = acc + jnp.dot(sp.astype(bf16), w3_ref[i],
                            preferred_element_type=jnp.float32)

    # pass-through split (scale != 1, stype == 'normal')
    sp_last = out1[:, nums * WW:(nums + 1) * WW]
    acc = acc + jnp.dot(sp_last.astype(bf16), w3_ref[nums],
                        preferred_element_type=jnp.float32)

    out3 = acc + b3_ref[...]
    # residual (downsample=None) + relu; Cin == Cout so x adds directly.
    o_ref[...] = jnp.maximum(out3 + x, 0.0)
    # TODO(synk): once M grows past ~64 rows, stage out1/acc in explicit VMEM
    # scratch and apply bias+relu per 8-sublane slab to bound vreg pressure.


# ------------------------ wrapper: structured weights ------------------------
def build_kernel_params(p, W, width, scale, nums, Cin, Cout):
    """Fold BN scales into weights and build lane-dense structured matrices.

    Matmul weights are returned in bf16 (halves weight-DMA bytes, native MXU
    rate); biases stay f32 and are added to the f32 accumulators.
    NOTE: b2's column layout (W-major, width-minor) is coupled to WC's '..vk'
    output ordering -- reorder both together or not at all.
    TODO(synk): the block-diagonal/banded densification is O(W^2) in weight
    bytes; before scaling past this toy size, tile W with a grid axis or run
    the 1x1 convs in an (N*H*W, C) layout instead.
    """
    WW = W * width
    eyeW = jnp.eye(W, dtype=jnp.float32)

    # conv1: block-diagonal over w, output columns ordered split-major
    #        (i, w, k) so each Res2Net split is a contiguous 128-lane slice.
    w1f = (p["w1"] * p["bn1s"][None, :]).reshape(Cin, scale, width)
    W1 = jnp.einsum("uv,cik->ucivk", eyeW, w1f).reshape(W * Cin, scale * WW)
    b1 = jnp.broadcast_to(p["bn1b"].reshape(scale, 1, width),
                          (scale, W, width)).reshape(1, scale * WW)

    # 3x3 convs: per-H-tap banded matrices handling the W taps + W-dir zero
    # padding.  WC[i, d] pairs with H-tap d in {row above, same row, row below}.
    kf = p["wconv"] * p["bn2s"][:, None, None, None, :]    # (nums,3,3,wid,wid)
    u = jnp.arange(W)[:, None, None]
    v = jnp.arange(W)[None, :, None]
    dxp = jnp.arange(3)[None, None, :]
    band = (u - v + 1 == dxp).astype(jnp.float32)           # (W, W, 3)
    WC = jnp.einsum("uvx,idxck->iducvk", band, kf).reshape(nums, 3, WW, WW)
    b2 = jnp.broadcast_to(p["bn2b"][:, None, :],
                          (nums, W, width)).reshape(nums, WW)

    # conv3: per-split block-diagonal blocks (summed in-kernel -- no concat).
    w3f = (p["w3"] * p["bn3s"][None, :]).reshape(scale, width, Cout)
    W3 = jnp.einsum("uv,ick->iucvk", eyeW, w3f).reshape(scale, WW, W * Cout)
    b3 = jnp.tile(p["bn3b"], W).reshape(1, W * Cout)

    bf16 = jnp.bfloat16
    return {"W1": W1.astype(bf16), "b1": b1,
            "WC": WC.astype(bf16), "b2": b2,
            "W3": W3.astype(bf16), "b3": b3}


def _choose_images_per_step(N, H, target_m=128):
    """Images folded into one grid step: fill M toward ~target_m MXU rows, but
    keep >=2 balanced grid steps when the batch allows (v7x has 2 TCs)."""
    nb = max(1, min(N, target_m // H))
    while nb > 1 and N // nb < 2:
        nb -= 1
    while N % nb != 0:
        nb -= 1
    return nb


def bottle2neck_pallas(x_nhwc, kp, images_per_step=None):
    N, H, W, Cin = x_nhwc.shape
    WCout = kp["W3"].shape[2]
    Cout = WCout // W

    nb = (images_per_step if images_per_step is not None
          else _choose_images_per_step(N, H))
    assert N % nb == 0
    M = nb * H

    # Lane-dense 2-D slab: rows = N*H (images stacked), lanes = W*Cin.
    x_flat = x_nhwc.reshape(N * H, W * Cin)      # contiguous, zero-cost reshape

    weights = [kp["W1"], kp["b1"], kp["WC"], kp["b2"], kp["W3"], kp["b3"]]

    def wspec(a):
        nd = a.ndim
        # Constant index map -> weight block stays resident across grid steps.
        # (At larger sizes mark these pipeline_mode=pl.Buffered(1) to skip
        # double-buffering; negligible at ~1.3 MiB of bf16 weights here.)
        return pl.BlockSpec(a.shape, lambda n, _nd=nd: (0,) * _nd)

    out = pl.pallas_call(
        functools.partial(_bottle2neck_kernel, img_h=H),
        out_shape=jax.ShapeDtypeStruct((N * H, WCout), jnp.float32),
        grid_spec=pl.GridSpec(
            grid=(N // nb,),
            in_specs=[pl.BlockSpec((M, W * Cin), lambda n: (n, 0))]
                     + [wspec(a) for a in weights],
            out_specs=pl.BlockSpec((M, WCout), lambda n: (n, 0)),
        ),
        compiler_params=pltpu.CompilerParams(
            dimension_semantics=("parallel",)),
    )(x_flat, *weights)

    return out.reshape(N, H, W, Cout)


# --------------------------- pure-JAX reference -------------------------------
def bottle2neck_ref(x_nhwc, p, width, nums):
    def conv3x3(x, w_hwio):
        return jax.lax.conv_general_dilated(
            x, w_hwio, window_strides=(1, 1), padding=((1, 1), (1, 1)),
            dimension_numbers=("NHWC", "HWIO", "NHWC"))

    out = jnp.einsum("nhwc,cd->nhwd", x_nhwc, p["w1"])
    out = jax.nn.relu(out * p["bn1s"] + p["bn1b"])

    outs = []
    sp = None
    for i in range(nums):
        spx_i = out[..., i * width:(i + 1) * width]
        sp = spx_i if i == 0 else sp + spx_i
        sp = conv3x3(sp, p["wconv"][i])
        sp = jax.nn.relu(sp * p["bn2s"][i] + p["bn2b"][i])
        outs.append(sp)
    outs.append(out[..., nums * width:(nums + 1) * width])
    cat = jnp.concatenate(outs, axis=-1)

    out3 = jnp.einsum("nhwc,cd->nhwd", cat, p["w3"])
    out3 = out3 * p["bn3s"] + p["bn3b"]
    return jax.nn.relu(out3 + x_nhwc)


# ------------------------------- params ---------------------------------------
def make_params(key, inplanes, planes, base_width, scale):
    expansion = 4
    width = int(planes * (base_width / 64.0))
    nums = scale - 1 if scale > 1 else 1
    Ws = width * scale
    Cout = planes * expansion
    eps = 1e-5

    ks = jax.random.split(key, 16)

    def fold_bn(kg, kb, km, kv, c):
        gamma = jax.random.uniform(kg, (c,), minval=0.5, maxval=1.5)
        beta = 0.1 * jax.random.normal(kb, (c,))
        mean = 0.1 * jax.random.normal(km, (c,))
        var = jnp.abs(jax.random.normal(kv, (c,))) * 0.1 + 0.5
        s = gamma / jnp.sqrt(var + eps)
        b = beta - mean * s
        return s.astype(jnp.float32), b.astype(jnp.float32)

    w1 = 0.1 * jax.random.normal(ks[0], (inplanes, Ws), dtype=jnp.float32)
    wconv = 0.1 * jax.random.normal(ks[1], (nums, 3, 3, width, width),
                                    dtype=jnp.float32)
    w3 = 0.1 * jax.random.normal(ks[2], (Ws, Cout), dtype=jnp.float32)

    bn1s, bn1b = fold_bn(ks[3], ks[4], ks[5], ks[6], Ws)
    bn2 = [fold_bn(*jax.random.split(ks[7 + i], 4), width) for i in range(nums)]
    bn2s = jnp.stack([s for s, _ in bn2])
    bn2b = jnp.stack([b for _, b in bn2])
    bn3s, bn3b = fold_bn(ks[12], ks[13], ks[14], ks[15], Cout)

    params = {"w1": w1, "bn1s": bn1s, "bn1b": bn1b,
              "wconv": wconv, "bn2s": bn2s, "bn2b": bn2b,
              "w3": w3, "bn3s": bn3s, "bn3b": bn3b}
    return params, width, nums


# ------------------------------- main -----------------------------------------
if __name__ == "__main__":
    key = jax.random.PRNGKey(0)
    k_x, k_p = jax.random.split(key)

    # Bottle2neck config: inplanes=32, planes=8, baseWidth=64, scale=4,
    # stride=1, dilation=1, stype='normal', downsample=None
    inplanes, planes, base_width, scale = 32, 8, 64, 4
    N, H, W = 4, 16, 16          # N=4 -> 2 parallel grid steps x 2 images each
    Cout = planes * 4

    params, width, nums = make_params(k_p, inplanes, planes, base_width, scale)
    kparams = build_kernel_params(params, W, width, scale, nums, inplanes, Cout)

    # PyTorch-style NCHW input -> NHWC for the kernel.
    x_nchw = jax.random.normal(k_x, (N, inplanes, H, W), dtype=jnp.float32)
    x_nhwc = jnp.transpose(x_nchw, (0, 2, 3, 1))

    out = bottle2neck_pallas(x_nhwc, kparams)
    out = jax.block_until_ready(out)

    ref = bottle2neck_ref(x_nhwc, params, width, nums)
    ref = jax.block_until_ready(ref)

    assert out.shape == (N, H, W, Cout)
    # bf16 matmul operands (per perf review) -> bf16-appropriate tolerance vs
    # the pure-f32 reference.
    err = float(jnp.max(jnp.abs(out - ref)))
    assert jnp.allclose(out, ref, atol=2e-2, rtol=2e-2), err

    print("KERNEL_OK")
</pallas_src>

<mosaic_0001>
module attributes {stable_mosaic.version = 11 : i64} {
  func.func @_bottle2neck_kernel(%arg0: i32, %arg1: memref<32x512xf32, #tpu.memory_space<vmem>>, %arg2: memref<512x512xbf16, #tpu.memory_space<vmem>>, %arg3: memref<1x512xf32, #tpu.memory_space<vmem>>, %arg4: memref<3x3x128x128xbf16, #tpu.memory_space<vmem>>, %arg5: memref<3x128xf32, #tpu.memory_space<vmem>>, %arg6: memref<4x128x512xbf16, #tpu.memory_space<vmem>>, %arg7: memref<1x512xf32, #tpu.memory_space<vmem>>, %arg8: memref<32x512xf32, #tpu.memory_space<vmem>>) attributes {dimension_semantics = [#tpu.dimension_semantics<parallel>], iteration_bounds = array<i64: 2>, scalar_prefetch = 0 : i64, scratch_operands = 0 : i64, tpu.core_type = #tpu.core_type<tc>, window_params = [{transform_indices = @transform_0, window_bounds = array<i64: 32, 512>}, {pipeline_mode = #tpu.pipeline_mode<synchronous>, transform_indices = @transform_1, window_bounds = array<i64: 512, 512>}, {pipeline_mode = #tpu.pipeline_mode<synchronous>, transform_indices = @transform_2, window_bounds = array<i64: 1, 512>}, {pipeline_mode = #tpu.pipeline_mode<synchronous>, transform_indices = @transform_3, window_bounds = array<i64: 3, 3, 128, 128>}, {pipeline_mode = #tpu.pipeline_mode<synchronous>, transform_indices = @transform_4, window_bounds = array<i64: 3, 128>}, {pipeline_mode = #tpu.pipeline_mode<synchronous>, transform_indices = @transform_5, window_bounds = array<i64: 4, 128, 512>}, {pipeline_mode = #tpu.pipeline_mode<synchronous>, transform_indices = @transform_6, window_bounds = array<i64: 1, 512>}, {transform_indices = @transform_7, window_bounds = array<i64: 32, 512>}]} {
    %c0 = arith.constant 0 : index
    %c0_0 = arith.constant 0 : index
    %0 = vector.load %arg1[%c0, %c0_0] : memref<32x512xf32, #tpu.memory_space<vmem>>, vector<32x512xf32>
    %1 = arith.truncf %0 : vector<32x512xf32> to vector<32x512xbf16>
    %c0_1 = arith.constant 0 : index
    %c0_2 = arith.constant 0 : index
    %2 = vector.load %arg2[%c0_1, %c0_2] : memref<512x512xbf16, #tpu.memory_space<vmem>>, vector<512x512xbf16>
    %cst = arith.constant dense<0.000000e+00> : vector<32x512xf32>
    %3 = tpu.matmul %1, %2, %cst {dimension_numbers = #tpu.dot_dimension_numbers<[1], [0], [0], [1], [0, 0, 1, 1], [], []>} : vector<32x512xbf16>, vector<512x512xbf16>, vector<32x512xf32> -> vector<32x512xf32>
    %c0_3 = arith.constant 0 : index
    %c0_4 = arith.constant 0 : index
    %4 = vector.load %arg3[%c0_3, %c0_4] : memref<1x512xf32, #tpu.memory_space<vmem>>, vector<1x512xf32>
    %5 = vector.broadcast %4 : vector<1x512xf32> to vector<32x512xf32>
    %6 = arith.addf %3, %5 : vector<32x512xf32>
    %cst_5 = arith.constant 0.000000e+00 : f32
    %7 = vector.broadcast %cst_5 : f32 to vector<32x512xf32>
    %8 = arith.maximumf %6, %7 : vector<32x512xf32>
    %c0_6 = arith.constant 0 : index
    %c0_7 = arith.constant 0 : index
    %9 = vector.load %arg5[%c0_6, %c0_7] : memref<3x128xf32, #tpu.memory_space<vmem>>, vector<3x128xf32>
    %10 = tpu.iota {dimensions = array<i32: 0>} : vector<32x128xi32>
    %c16_i32 = arith.constant 16 : i32
    %c0_i32 = arith.constant 0 : i32
    %11 = arith.cmpi eq, %c16_i32, %c0_i32 : i32
    %c1_i32 = arith.constant 1 : i32
    %12 = arith.select %11, %c1_i32, %c16_i32 : i32
    %13 = vector.broadcast %12 : i32 to vector<32x128xi32>
    %14 = arith.remsi %10, %13 : vector<32x128xi32>
    %c0_i32_8 = arith.constant 0 : i32
    %15 = vector.broadcast %c0_i32_8 : i32 to vector<32x128xi32>
    %16 = arith.cmpi ne, %14, %15 : vector<32x128xi32>
    %c0_i32_9 = arith.constant 0 : i32
    %17 = vector.broadcast %c0_i32_9 : i32 to vector<32x128xi32>
    %18 = arith.cmpi slt, %14, %17 : vector<32x128xi32>
    %c0_i32_10 = arith.constant 0 : i32
    %19 = arith.cmpi slt, %12, %c0_i32_10 : i32
    %20 = vector.broadcast %19 : i1 to vector<32x128xi1>
    %21 = vector.broadcast %20 : vector<32x128xi1> to vector<32x128xi1>
    %22 = arith.xori %18, %21 : vector<32x128xi1>
    %23 = arith.andi %22, %16 : vector<32x128xi1>
    %24 = vector.broadcast %12 : i32 to vector<32x128xi32>
    %25 = arith.addi %14, %24 : vector<32x128xi32>
    %26 = arith.select %23, %25, %14 : vector<32x128xi1>, vector<32x128xi32>
    %c0_i32_11 = arith.constant 0 : i32
    %27 = vector.broadcast %c0_i32_11 : i32 to vector<32x128xi32>
    %28 = arith.cmpi eq, %26, %27 : vector<32x128xi32>
    %c16_i32_12 = arith.constant 16 : i32
    %c0_i32_13 = arith.constant 0 : i32
    %29 = arith.cmpi eq, %c16_i32_12, %c0_i32_13 : i32
    %c1_i32_14 = arith.constant 1 : i32
    %30 = arith.select %29, %c1_i32_14, %c16_i32_12 : i32
    %31 = vector.broadcast %30 : i32 to vector<32x128xi32>
    %32 = arith.remsi %10, %31 : vector<32x128xi32>
    %c0_i32_15 = arith.constant 0 : i32
    %33 = vector.broadcast %c0_i32_15 : i32 to vector<32x128xi32>
    %34 = arith.cmpi ne, %32, %33 : vector<32x128xi32>
    %c0_i32_16 = arith.constant 0 : i32
    %35 = vector.broadcast %c0_i32_16 : i32 to vector<32x128xi32>
    %36 = arith.cmpi slt, %32, %35 : vector<32x128xi32>
    %c0_i32_17 = arith.constant 0 : i32
    %37 = arith.cmpi slt, %30, %c0_i32_17 : i32
    %38 = vector.broadcast %37 : i1 to vector<32x128xi1>
    %39 = vector.broadcast %38 : vector<32x128xi1> to vector<32x128xi1>
    %40 = arith.xori %36, %39 : vector<32x128xi1>
    %41 = arith.andi %40, %34 : vector<32x128xi1>
    %42 = vector.broadcast %30 : i32 to vector<32x128xi32>
    %43 = arith.addi %32, %42 : vector<32x128xi32>
    %44 = arith.select %41, %43, %32 : vector<32x128xi1>, vector<32x128xi32>
    %c15_i32 = arith.constant 15 : i32
    %45 = vector.broadcast %c15_i32 : i32 to vector<32x128xi32>
    %46 = arith.cmpi eq, %44, %45 : vector<32x128xi32>
    %cst_18 = arith.constant 0.000000e+00 : f32
    %47 = vector.broadcast %cst_18 : f32 to vector<32x512xf32>
    %48 = vector.extract_strided_slice %8 {offsets = [0, 0], sizes = [32, 128], strides = [1, 1]} : vector<32x512xf32> to vector<32x128xf32>
    %c1_i32_19 = arith.constant 1 : i32
    %49 = tpu.dynamic_rotate %48 by %c1_i32_19 dim 0 : vector<32x128xf32>, i32 -> vector<32x128xf32>
    %cst_20 = arith.constant 0.000000e+00 : f32
    %50 = vector.broadcast %cst_20 : f32 to vector<32x128xf32>
    %51 = arith.select %28, %50, %49 : vector<32x128xi1>, vector<32x128xf32>
    %c31_i32 = arith.constant 31 : i32
    %52 = tpu.dynamic_rotate %48 by %c31_i32 dim 0 : vector<32x128xf32>, i32 -> vector<32x128xf32>
    %cst_21 = arith.constant 0.000000e+00 : f32
    %53 = vector.broadcast %cst_21 : f32 to vector<32x128xf32>
    %54 = arith.select %46, %53, %52 : vector<32x128xi1>, vector<32x128xf32>
    %55 = arith.truncf %51 : vector<32x128xf32> to vector<32x128xbf16>
    %c0_22 = arith.constant 0 : index
    %c0_23 = arith.constant 0 : index
    %c0_24 = arith.constant 0 : index
    %c0_25 = arith.constant 0 : index
    %56 = vector.load %arg4[%c0_22, %c0_23, %c0_24, %c0_25] : memref<3x3x128x128xbf16, #tpu.memory_space<vmem>>, vector<1x1x128x128xbf16>
    %57 = vector.shape_cast %56 : vector<1x1x128x128xbf16> to vector<128x128xbf16>
    %cst_26 = arith.constant dense<0.000000e+00> : vector<32x128xf32>
    %58 = tpu.matmul %55, %57, %cst_26 {dimension_numbers = #tpu.dot_dimension_numbers<[1], [0], [0], [1], [0, 0, 1, 1], [], []>} : vector<32x128xbf16>, vector<128x128xbf16>, vector<32x128xf32> -> vector<32x128xf32>
    %59 = arith.truncf %48 : vector<32x128xf32> to vector<32x128xbf16>
    %c0_27 = arith.constant 0 : index
    %c1 = arith.constant 1 : index
    %c0_28 = arith.constant 0 : index
    %c0_29 = arith.constant 0 : index
    %60 = vector.load %arg4[%c0_27, %c1, %c0_28, %c0_29] : memref<3x3x128x128xbf16, #tpu.memory_space<vmem>>, vector<1x1x128x128xbf16>
    %61 = vector.shape_cast %60 : vector<1x1x128x128xbf16> to vector<128x128xbf16>
    %cst_30 = arith.constant dense<0.000000e+00> : vector<32x128xf32>
    %62 = tpu.matmul %59, %61, %cst_30 {dimension_numbers = #tpu.dot_dimension_numbers<[1], [0], [0], [1], [0, 0, 1, 1], [], []>} : vector<32x128xbf16>, vector<128x128xbf16>, vector<32x128xf32> -> vector<32x128xf32>
    %63 = arith.addf %58, %62 : vector<32x128xf32>
    %64 = arith.truncf %54 : vector<32x128xf32> to vector<32x128xbf16>
    %c0_31 = arith.constant 0 : index
    %c2 = arith.constant 2 : index
    %c0_32 = arith.constant 0 : index
    %c0_33 = arith.constant 0 : index
    %65 = vector.load %arg4[%c0_31, %c2, %c0_32, %c0_33] : memref<3x3x128x128xbf16, #tpu.memory_space<vmem>>, vector<1x1x128x128xbf16>
    %66 = vector.shape_cast %65 : vector<1x1x128x128xbf16> to vector<128x128xbf16>
    %cst_34 = arith.constant dense<0.000000e+00> : vector<32x128xf32>
    %67 = tpu.matmul %64, %66, %cst_34 {dimension_numbers = #tpu.dot_dimension_numbers<[1], [0], [0], [1], [0, 0, 1, 1], [], []>} : vector<32x128xbf16>, vector<128x128xbf16>, vector<32x128xf32> -> vector<32x128xf32>
    %68 = arith.addf %63, %67 : vector<32x128xf32>
    %69 = vector.extract_strided_slice %9 {offsets = [0, 0], sizes = [1, 128], strides = [1, 1]} : vector<3x128xf32> to vector<1x128xf32>
    %70 = vector.broadcast %69 : vector<1x128xf32> to vector<32x128xf32>
    %71 = arith.addf %68, %70 : vector<32x128xf32>
    %cst_35 = arith.constant 0.000000e+00 : f32
    %72 = vector.broadcast %cst_35 : f32 to vector<32x128xf32>
    %73 = arith.maximumf %71, %72 : vector<32x128xf32>
    %74 = arith.truncf %73 : vector<32x128xf32> to vector<32x128xbf16>
    %c0_36 = arith.constant 0 : index
    %c0_37 = arith.constant 0 : index
    %c0_38 = arith.constant 0 : index
    %75 = vector.load %arg6[%c0_36, %c0_37, %c0_38] : memref<4x128x512xbf16, #tpu.memory_space<vmem>>, vector<1x128x512xbf16>
    %76 = vector.shape_cast %75 : vector<1x128x512xbf16> to vector<128x512xbf16>
    %cst_39 = arith.constant dense<0.000000e+00> : vector<32x512xf32>
    %77 = tpu.matmul %74, %76, %cst_39 {dimension_numbers = #tpu.dot_dimension_numbers<[1], [0], [0], [1], [0, 0, 1, 1], [], []>} : vector<32x128xbf16>, vector<128x512xbf16>, vector<32x512xf32> -> vector<32x512xf32>
    %78 = arith.addf %47, %77 : vector<32x512xf32>
    %79 = vector.extract_strided_slice %8 {offsets = [0, 128], sizes = [32, 128], strides = [1, 1]} : vector<32x512xf32> to vector<32x128xf32>
    %80 = arith.addf %73, %79 : vector<32x128xf32>
    %c1_i32_40 = arith.constant 1 : i32
    %81 = tpu.dynamic_rotate %80 by %c1_i32_40 dim 0 : vector<32x128xf32>, i32 -> vector<32x128xf32>
    %cst_41 = arith.constant 0.000000e+00 : f32
    %82 = vector.broadcast %cst_41 : f32 to vector<32x128xf32>
    %83 = arith.select %28, %82, %81 : vector<32x128xi1>, vector<32x128xf32>
    %c31_i32_42 = arith.constant 31 : i32
    %84 = tpu.dynamic_rotate %80 by %c31_i32_42 dim 0 : vector<32x128xf32>, i32 -> vector<32x128xf32>
    %cst_43 = arith.constant 0.000000e+00 : f32
    %85 = vector.broadcast %cst_43 : f32 to vector<32x128xf32>
    %86 = arith.select %46, %85, %84 : vector<32x128xi1>, vector<32x128xf32>
    %87 = arith.truncf %83 : vector<32x128xf32> to vector<32x128xbf16>
    %c1_44 = arith.constant 1 : index
    %c0_45 = arith.constant 0 : index
    %c0_46 = arith.constant 0 : index
    %c0_47 = arith.constant 0 : index
    %88 = vector.load %arg4[%c1_44, %c0_45, %c0_46, %c0_47] : memref<3x3x128x128xbf16, #tpu.memory_space<vmem>>, vector<1x1x128x128xbf16>
    %89 = vector.shape_cast %88 : vector<1x1x128x128xbf16> to vector<128x128xbf16>
    %cst_48 = arith.constant dense<0.000000e+00> : vector<32x128xf32>
    %90 = tpu.matmul %87, %89, %cst_48 {dimension_numbers = #tpu.dot_dimension_numbers<[1], [0], [0], [1], [0, 0, 1, 1], [], []>} : vector<32x128xbf16>, vector<128x128xbf16>, vector<32x128xf32> -> vector<32x128xf32>
    %91 = arith.truncf %80 : vector<32x128xf32> to vector<32x128xbf16>
    %c1_49 = arith.constant 1 : index
    %c1_50 = arith.constant 1 : index
    %c0_51 = arith.constant 0 : index
    %c0_52 = arith.constant 0 : index
    %92 = vector.load %arg4[%c1_49, %c1_50, %c0_51, %c0_52] : memref<3x3x128x128xbf16, #tpu.memory_space<vmem>>, vector<1x1x128x128xbf16>
    %93 = vector.shape_cast %92 : vector<1x1x128x128xbf16> to vector<128x128xbf16>
    %cst_53 = arith.constant dense<0.000000e+00> : vector<32x128xf32>
    %94 = tpu.matmul %91, %93, %cst_53 {dimension_numbers = #tpu.dot_dimension_numbers<[1], [0], [0], [1], [0, 0, 1, 1], [], []>} : vector<32x128xbf16>, vector<128x128xbf16>, vector<32x128xf32> -> vector<32x128xf32>
    %95 = arith.addf %90, %94 : vector<32x128xf32>
    %96 = arith.truncf %86 : vector<32x128xf32> to vector<32x128xbf16>
    %c1_54 = arith.constant 1 : index
    %c2_55 = arith.constant 2 : index
    %c0_56 = arith.constant 0 : index
    %c0_57 = arith.constant 0 : index
    %97 = vector.load %arg4[%c1_54, %c2_55, %c0_56, %c0_57] : memref<3x3x128x128xbf16, #tpu.memory_space<vmem>>, vector<1x1x128x128xbf16>
    %98 = vector.shape_cast %97 : vector<1x1x128x128xbf16> to vector<128x128xbf16>
    %cst_58 = arith.constant dense<0.000000e+00> : vector<32x128xf32>
    %99 = tpu.matmul %96, %98, %cst_58 {dimension_numbers = #tpu.dot_dimension_numbers<[1], [0], [0], [1], [0, 0, 1, 1], [], []>} : vector<32x128xbf16>, vector<128x128xbf16>, vector<32x128xf32> -> vector<32x128xf32>
    %100 = arith.addf %95, %99 : vector<32x128xf32>
    %101 = vector.extract_strided_slice %9 {offsets = [1, 0], sizes = [1, 128], strides = [1, 1]} : vector<3x128xf32> to vector<1x128xf32>
    %102 = vector.broadcast %101 : vector<1x128xf32> to vector<32x128xf32>
    %103 = arith.addf %100, %102 : vector<32x128xf32>
    %cst_59 = arith.constant 0.000000e+00 : f32
    %104 = vector.broadcast %cst_59 : f32 to vector<32x128xf32>
    %105 = arith.maximumf %103, %104 : vector<32x128xf32>
    %106 = arith.truncf %105 : vector<32x128xf32> to vector<32x128xbf16>
    %c1_60 = arith.constant 1 : index
    %c0_61 = arith.constant 0 : index
    %c0_62 = arith.constant 0 : index
    %107 = vector.load %arg6[%c1_60, %c0_61, %c0_62] : memref<4x128x512xbf16, #tpu.memory_space<vmem>>, vector<1x128x512xbf16>
    %108 = vector.shape_cast %107 : vector<1x128x512xbf16> to vector<128x512xbf16>
    %cst_63 = arith.constant dense<0.000000e+00> : vector<32x512xf32>
    %109 = tpu.matmul %106, %108, %cst_63 {dimension_numbers = #tpu.dot_dimension_numbers<[1], [0], [0], [1], [0, 0, 1, 1], [], []>} : vector<32x128xbf16>, vector<128x512xbf16>, vector<32x512xf32> -> vector<32x512xf32>
    %110 = arith.addf %78, %109 : vector<32x512xf32>
    %111 = vector.extract_strided_slice %8 {offsets = [0, 256], sizes = [32, 128], strides = [1, 1]} : vector<32x512xf32> to vector<32x128xf32>
    %112 = arith.addf %105, %111 : vector<32x128xf32>
    %c1_i32_64 = arith.constant 1 : i32
    %113 = tpu.dynamic_rotate %112 by %c1_i32_64 dim 0 : vector<32x128xf32>, i32 -> vector<32x128xf32>
    %cst_65 = arith.constant 0.000000e+00 : f32
    %114 = vector.broadcast %cst_65 : f32 to vector<32x128xf32>
    %115 = arith.select %28, %114, %113 : vector<32x128xi1>, vector<32x128xf32>
    %c31_i32_66 = arith.constant 31 : i32
    %116 = tpu.dynamic_rotate %112 by %c31_i32_66 dim 0 : vector<32x128xf32>, i32 -> vector<32x128xf32>
    %cst_67 = arith.constant 0.000000e+00 : f32
    %117 = vector.broadcast %cst_67 : f32 to vector<32x128xf32>
    %118 = arith.select %46, %117, %116 : vector<32x128xi1>, vector<32x128xf32>
    %119 = arith.truncf %115 : vector<32x128xf32> to vector<32x128xbf16>
    %c2_68 = arith.constant 2 : index
    %c0_69 = arith.constant 0 : index
    %c0_70 = arith.constant 0 : index
    %c0_71 = arith.constant 0 : index
    %120 = vector.load %arg4[%c2_68, %c0_69, %c0_70, %c0_71] : memref<3x3x128x128xbf16, #tpu.memory_space<vmem>>, vector<1x1x128x128xbf16>
    %121 = vector.shape_cast %120 : vector<1x1x128x128xbf16> to vector<128x128xbf16>
    %cst_72 = arith.constant dense<0.000000e+00> : vector<32x128xf32>
    %122 = tpu.matmul %119, %121, %cst_72 {dimension_numbers = #tpu.dot_dimension_numbers<[1], [0], [0], [1], [0, 0, 1, 1], [], []>} : vector<32x128xbf16>, vector<128x128xbf16>, vector<32x128xf32> -> vector<32x128xf32>
    %123 = arith.truncf %112 : vector<32x128xf32> to vector<32x128xbf16>
    %c2_73 = arith.constant 2 : index
    %c1_74 = arith.constant 1 : index
    %c0_75 = arith.constant 0 : index
    %c0_76 = arith.constant 0 : index
    %124 = vector.load %arg4[%c2_73, %c1_74, %c0_75, %c0_76] : memref<3x3x128x128xbf16, #tpu.memory_space<vmem>>, vector<1x1x128x128xbf16>
    %125 = vector.shape_cast %124 : vector<1x1x128x128xbf16> to vector<128x128xbf16>
    %cst_77 = arith.constant dense<0.000000e+00> : vector<32x128xf32>
    %126 = tpu.matmul %123, %125, %cst_77 {dimension_numbers = #tpu.dot_dimension_numbers<[1], [0], [0], [1], [0, 0, 1, 1], [], []>} : vector<32x128xbf16>, vector<128x128xbf16>, vector<32x128xf32> -> vector<32x128xf32>
    %127 = arith.addf %122, %126 : vector<32x128xf32>
    %128 = arith.truncf %118 : vector<32x128xf32> to vector<32x128xbf16>
    %c2_78 = arith.constant 2 : index
    %c2_79 = arith.constant 2 : index
    %c0_80 = arith.constant 0 : index
    %c0_81 = arith.constant 0 : index
    %129 = vector.load %arg4[%c2_78, %c2_79, %c0_80, %c0_81] : memref<3x3x128x128xbf16, #tpu.memory_space<vmem>>, vector<1x1x128x128xbf16>
    %130 = vector.shape_cast %129 : vector<1x1x128x128xbf16> to vector<128x128xbf16>
    %cst_82 = arith.constant dense<0.000000e+00> : vector<32x128xf32>
    %131 = tpu.matmul %128, %130, %cst_82 {dimension_numbers = #tpu.dot_dimension_numbers<[1], [0], [0], [1], [0, 0, 1, 1], [], []>} : vector<32x128xbf16>, vector<128x128xbf16>, vector<32x128xf32> -> vector<32x128xf32>
    %132 = arith.addf %127, %131 : vector<32x128xf32>
    %133 = vector.extract_strided_slice %9 {offsets = [2, 0], sizes = [1, 128], strides = [1, 1]} : vector<3x128xf32> to vector<1x128xf32>
    %134 = vector.broadcast %133 : vector<1x128xf32> to vector<32x128xf32>
    %135 = arith.addf %132, %134 : vector<32x128xf32>
    %cst_83 = arith.constant 0.000000e+00 : f32
    %136 = vector.broadcast %cst_83 : f32 to vector<32x128xf32>
    %137 = arith.maximumf %135, %136 : vector<32x128xf32>
    %138 = arith.truncf %137 : vector<32x128xf32> to vector<32x128xbf16>
    %c2_84 = arith.constant 2 : index
    %c0_85 = arith.constant 0 : index
    %c0_86 = arith.constant 0 : index
    %139 = vector.load %arg6[%c2_84, %c0_85, %c0_86] : memref<4x128x512xbf16, #tpu.memory_space<vmem>>, vector<1x128x512xbf16>
    %140 = vector.shape_cast %139 : vector<1x128x512xbf16> to vector<128x512xbf16>
    %cst_87 = arith.constant dense<0.000000e+00> : vector<32x512xf32>
    %141 = tpu.matmul %138, %140, %cst_87 {dimension_numbers = #tpu.dot_dimension_numbers<[1], [0], [0], [1], [0, 0, 1, 1], [], []>} : vector<32x128xbf16>, vector<128x512xbf16>, vector<32x512xf32> -> vector<32x512xf32>
    %142 = arith.addf %110, %141 : vector<32x512xf32>
    %143 = vector.extract_strided_slice %8 {offsets = [0, 384], sizes = [32, 128], strides = [1, 1]} : vector<32x512xf32> to vector<32x128xf32>
    %144 = arith.truncf %143 : vector<32x128xf32> to vector<32x128xbf16>
    %c3 = arith.constant 3 : index
    %c0_88 = arith.constant 0 : index
    %c0_89 = arith.constant 0 : index
    %145 = vector.load %arg6[%c3, %c0_88, %c0_89] : memref<4x128x512xbf16, #tpu.memory_space<vmem>>, vector<1x128x512xbf16>
    %146 = vector.shape_cast %145 : vector<1x128x512xbf16> to vector<128x512xbf16>
    %cst_90 = arith.constant dense<0.000000e+00> : vector<32x512xf32>
    %147 = tpu.matmul %144, %146, %cst_90 {dimension_numbers = #tpu.dot_dimension_numbers<[1], [0], [0], [1], [0, 0, 1, 1], [], []>} : vector<32x128xbf16>, vector<128x512xbf16>, vector<32x512xf32> -> vector<32x512xf32>
    %148 = arith.addf %142, %147 : vector<32x512xf32>
    %c0_91 = arith.constant 0 : index
    %c0_92 = arith.constant 0 : index
    %149 = vector.load %arg7[%c0_91, %c0_92] : memref<1x512xf32, #tpu.memory_space<vmem>>, vector<1x512xf32>
    %150 = vector.broadcast %149 : vector<1x512xf32> to vector<32x512xf32>
    %151 = arith.addf %148, %150 : vector<32x512xf32>
    %152 = arith.addf %151, %0 : vector<32x512xf32>
    %cst_93 = arith.constant 0.000000e+00 : f32
    %153 = vector.broadcast %cst_93 : f32 to vector<32x512xf32>
    %154 = arith.maximumf %152, %153 : vector<32x512xf32>
    %c0_94 = arith.constant 0 : index
    %c0_95 = arith.constant 0 : index
    %155 = vector.load %arg8[%c0_94, %c0_95] : memref<32x512xf32, #tpu.memory_space<vmem>>, vector<32x512xf32>
    tpu.vector_store %arg8[%c0_94, %c0_95], %154 {strides = array<i32>} : memref<32x512xf32, #tpu.memory_space<vmem>>, vector<32x512xf32>,
    return
  }
  func.func @transform_0(%arg0: i32) -> (i32, i32) {
    %c0_i32 = arith.constant 0 : i32
    %c0_i32_0 = arith.constant 0 : i32
    return %arg0, %c0_i32 : i32, i32
  }
  func.func @transform_1(%arg0: i32) -> (i32, i32) {
    %c0_i32 = arith.constant 0 : i32
    %c0_i32_0 = arith.constant 0 : i32
    %c0_i32_1 = arith.constant 0 : i32
    return %c0_i32, %c0_i32_0 : i32, i32
  }
  func.func @transform_2(%arg0: i32) -> (i32, i32) {
    %c0_i32 = arith.constant 0 : i32
    %c0_i32_0 = arith.constant 0 : i32
    %c0_i32_1 = arith.constant 0 : i32
    return %c0_i32, %c0_i32_0 : i32, i32
  }
  func.func @transform_3(%arg0: i32) -> (i32, i32, i32, i32) {
    %c0_i32 = arith.constant 0 : i32
    %c0_i32_0 = arith.constant 0 : i32
    %c0_i32_1 = arith.constant 0 : i32
    %c0_i32_2 = arith.constant 0 : i32
    %c0_i32_3 = arith.constant 0 : i32
    return %c0_i32, %c0_i32_0, %c0_i32_1, %c0_i32_2 : i32, i32, i32, i32
  }
  func.func @transform_4(%arg0: i32) -> (i32, i32) {
    %c0_i32 = arith.constant 0 : i32
    %c0_i32_0 = arith.constant 0 : i32
    %c0_i32_1 = arith.constant 0 : i32
    return %c0_i32, %c0_i32_0 : i32, i32
  }
  func.func @transform_5(%arg0: i32) -> (i32, i32, i32) {
    %c0_i32 = arith.constant 0 : i32
    %c0_i32_0 = arith.constant 0 : i32
    %c0_i32_1 = arith.constant 0 : i32
    %c0_i32_2 = arith.constant 0 : i32
    return %c0_i32, %c0_i32_0, %c0_i32_1 : i32, i32, i32
  }
  func.func @transform_6(%arg0: i32) -> (i32, i32) {
    %c0_i32 = arith.constant 0 : i32
    %c0_i32_0 = arith.constant 0 : i32
    %c0_i32_1 = arith.constant 0 : i32
    return %c0_i32, %c0_i32_0 : i32, i32
  }
  func.func @transform_7(%arg0: i32) -> (i32, i32) {
    %c0_i32 = arith.constant 0 : i32
    %c0_i32_0 = arith.constant 0 : i32
    return %arg0, %c0_i32 : i32, i32
  }
}

</mosaic_0001>

<llo_original>
// kernel: tpu_custom_call.1
$region0: #{tpu_custom_call.1}
  #allocation0 [shape = 'u32[]', space=smem, size = 0x4, offset = 0x4, fixed_abs, tag = 'smem constant byte address 0x4 - core index']
  #allocation1 [shape = 'u32[144,128]{1,0:T(1,128)}', space=vmem, size = 0x12000, scoped, tag = 'internal scratch']
  %s0 = inlined_call_operand.hbm [shape: f32[64,512], index: 0, kind: input, shape index: {}]
  %s1 = inlined_call_operand.hbm [shape: bf16[512,512], index: 1, kind: input, shape index: {}]
  %s2 = inlined_call_operand.vmem [shape: f32[1,512], index: 2, kind: input, shape index: {}]
  %s3 = inlined_call_operand.hbm [shape: bf16[3,3,128,128], index: 3, kind: input, shape index: {}]
  %s4 = inlined_call_operand.vmem [shape: f32[3,128], index: 4, kind: input, shape index: {}]
  %s5 = inlined_call_operand.hbm [shape: bf16[4,128,512], index: 5, kind: input, shape index: {}]
  %s6 = inlined_call_operand.vmem [shape: f32[1,512], index: 6, kind: input, shape index: {}]
  %s7 = inlined_call_operand.hbm [shape: f32[64,512], index: 7, kind: output, shape index: {}]
  %s8 = sld [smem:[#allocation0]]
  $region77: #{tpu_custom_call.1} parent=0
    _
  %s10 = ssub.s32 1, %s8
  %s11 = scalar_select 0, %s10, %s8
  $region1: #{tpu_custom_call.1} parent=0
    #allocation2 [shape = 'u8[131072]{0}', space=vmem, size = 0x20000, scoped, tag = 'input window, operand 0']
    #allocation3 [shape = 's32[2]{0}', space=sflag, size = 0x8, scoped, tag = 'scoped memory for tpu_custom_call.1']
    #allocation4 [shape = 's32[2]{0}', space=sflag, size = 0x8, scoped, tag = 'scoped memory for tpu_custom_call.1']
    #allocation5 [shape = 'u8[524288]{0}', space=vmem, size = 0x80000, scoped, tag = 'input window, operand 1, single buffered']
    #allocation6 [shape = 's32[1]{0}', space=sflag, size = 0x4, scoped, tag = 'scoped memory for tpu_custom_call.1']
    #allocation7 [shape = 'u8[294912]{0}', space=vmem, size = 0x48000, scoped, tag = 'input window, operand 3, single buffered']
    #allocation8 [shape = 'u8[524288]{0}', space=vmem, size = 0x80000, scoped, tag = 'input window, operand 5, single buffered']
    #allocation9 [shape = 's32[1]{0}', space=sflag, size = 0x4, scoped, tag = 'scoped memory for tpu_custom_call.1']
    #allocation10 [shape = 'u8[131072]{0}', space=vmem, size = 0x20000, scoped, tag = 'output window, operand 0']
    %12 = vsyncpa [#allocation3], 0
    %s13 = scalar_lea.sflag [#allocation3], 1
    %14 = vsyncpa %s13, 0
    %15 = vsyncpa [#allocation6], 0
    %16 = vsyncpa [#allocation9], 0
    %17 = vsyncpa [#allocation4], 0
    %s18 = scalar_lea.sflag [#allocation4], 1
    %19 = vsyncpa %s18, 0
    loop: start=0, step=1, limit=4
    $region2: #{tpu_custom_call.1} parent=1 // loop_pre_header
      _
    $region3: #{tpu_custom_call.1} parent=1 // loop_header
      %s21 = sphi 0, %s25
      %p22 = scmp.ge.s32.totalorder %s21, 4
      %s31 = sphi 0, %s33
      %s34 = sphi 0, %s31
      %s35 = sphi 0, %s34
      %s51 = sphi 0, %s35
      %s55 = sphi 0, %s55
      %s57 = sphi 0, %s55
      %s58 = sphi 0, %s57
      %s72 = sphi 0, %s58
      %s76 = sphi 0, %s76
      %s78 = sphi 0, %s76
      %s79 = sphi 0, %s78
      %s93 = sphi 0, %s79
      %s97 = sphi 0, %s97
      %s99 = sphi 0, %s97
      %s100 = sphi 0, %s99
      %s114 = sphi 0, %s100
      %s118 = sphi 0, %s118
      %s120 = sphi 0, %s118
      %s121 = sphi 0, %s120
      %s135 = sphi 0, %s121
      %s139 = sphi 0, %s139
      %s141 = sphi 0, %s139
      %s142 = sphi 0, %s141
      %s156 = sphi 0, %s142
      %s160 = sphi 0, %s160
      %s162 = sphi 0, %s160
      %s163 = sphi 0, %s162
      %s177 = sphi 0, %s163
      %s183 = sphi 0, %s185
      %s186 = sphi 0, %s183
      %s187 = sphi 0, %s186
      %s203 = sphi 0, %s187
    $region4: #{tpu_custom_call.1} parent=1 // loop_header_branch
      %24 = sbr.rel (%p22) target = $region8
    $region5: #{tpu_custom_call.1} parent=1 // loop_body
      %s26 = ssub.s32 %s21, 1
      %s27 = ssub.s32 %s21, 2
      %s28 = sadd.s32 %s21, 1
      %s29 = ssub.s32 %s21, %s28
      %p30 = scmp.eq.s32.totalorder %s29, 0
      %s32 = sadd.s32 %s31, 1
      %s33 = scalar_select %p30, %s31, %s32
      %p36 = pneg %p30
      %p37 = scmp.eq.s32.totalorder %s21, 1
      %p38 = por %p36, %p37
      %p39 = scmp.ne.s32.totalorder %s31, %s34
      %p40 = scmp.eq.s32.totalorder %s21, 0
      %p41 = por %p39, %p40
      %p42 = scmp.ne.s32.totalorder %s31, %s34
      %p43 = scmp.eq.s32.totalorder %s26, 1
      %p44 = por %p42, %p43
      %p45 = scmp.ne.s32.totalorder %s34, %s35
      %p46 = scmp.eq.s32.totalorder %s26, 0
      %p47 = por %p45, %p46
      %p48 = scmp.ne.s32.totalorder %s34, %s35
      %p49 = scmp.eq.s32.totalorder %s27, 1
      %p50 = por %p48, %p49
      %p52 = scmp.ne.s32.totalorder %s35, %s51
      %p53 = scmp.eq.s32.totalorder %s27, 0
      %p54 = por %p52, %p53
      %s56 = sadd.s32 %s55, 1
      %p59 = scmp.eq.s32.totalorder %s21, 1
      %p60 = scmp.ne.s32.totalorder %s55, %s57
      %p61 = scmp.eq.s32.totalorder %s21, 0
      %p62 = por %p60, %p61
      %p63 = scmp.ne.s32.totalorder %s55, %s57
      %p64 = scmp.eq.s32.totalorder %s26, 1
      %p65 = por %p63, %p64
      %p66 = scmp.ne.s32.totalorder %s57, %s58
      %p67 = scmp.eq.s32.totalorder %s26, 0
      %p68 = por %p66, %p67
      %p69 = scmp.ne.s32.totalorder %s57, %s58
      %p70 = scmp.eq.s32.totalorder %s27, 1
      %p71 = por %p69, %p70
      %p73 = scmp.ne.s32.totalorder %s58, %s72
      %p74 = scmp.eq.s32.totalorder %s27, 0
      %p75 = por %p73, %p74
      %s77 = sadd.s32 %s76, 1
      %p80 = scmp.eq.s32.totalorder %s21, 1
      %p81 = scmp.ne.s32.totalorder %s76, %s78
      %p82 = scmp.eq.s32.totalorder %s21, 0
      %p83 = por %p81, %p82
      %p84 = scmp.ne.s32.totalorder %s76, %s78
      %p85 = scmp.eq.s32.totalorder %s26, 1
      %p86 = por %p84, %p85
      %p87 = scmp.ne.s32.totalorder %s78, %s79
      %p88 = scmp.eq.s32.totalorder %s26, 0
      %p89 = por %p87, %p88
      %p90 = scmp.ne.s32.totalorder %s78, %s79
      %p91 = scmp.eq.s32.totalorder %s27, 1
      %p92 = por %p90, %p91
      %p94 = scmp.ne.s32.totalorder %s79, %s93
      %p95 = scmp.eq.s32.totalorder %s27, 0
      %p96 = por %p94, %p95
      %s98 = sadd.s32 %s97, 1
      %p101 = scmp.eq.s32.totalorder %s21, 1
      %p102 = scmp.ne.s32.totalorder %s97, %s99
      %p103 = scmp.eq.s32.totalorder %s21, 0
      %p104 = por %p102, %p103
      %p105 = scmp.ne.s32.totalorder %s97, %s99
      %p106 = scmp.eq.s32.totalorder %s26, 1
      %p107 = por %p105, %p106
      %p108 = scmp.ne.s32.totalorder %s99, %s100
      %p109 = scmp.eq.s32.totalorder %s26, 0
      %p110 = por %p108, %p109
      %p111 = scmp.ne.s32.totalorder %s99, %s100
      %p112 = scmp.eq.s32.totalorder %s27, 1
      %p113 = por %p111, %p112
      %p115 = scmp.ne.s32.totalorder %s100, %s114
      %p116 = scmp.eq.s32.totalorder %s27, 0
      %p117 = por %p115, %p116
      %s119 = sadd.s32 %s118, 1
      %p122 = scmp.eq.s32.totalorder %s21, 1
      %p123 = scmp.ne.s32.totalorder %s118, %s120
      %p124 = scmp.eq.s32.totalorder %s21, 0
      %p125 = por %p123, %p124
      %p126 = scmp.ne.s32.totalorder %s118, %s120
      %p127 = scmp.eq.s32.totalorder %s26, 1
      %p128 = por %p126, %p127
      %p129 = scmp.ne.s32.totalorder %s120, %s121
      %p130 = scmp.eq.s32.totalorder %s26, 0
      %p131 = por %p129, %p130
      %p132 = scmp.ne.s32.totalorder %s120, %s121
      %p133 = scmp.eq.s32.totalorder %s27, 1
      %p134 = por %p132, %p133
      %p136 = scmp.ne.s32.totalorder %s121, %s135
      %p137 = scmp.eq.s32.totalorder %s27, 0
      %p138 = por %p136, %p137
      %s140 = sadd.s32 %s139, 1
      %p143 = scmp.eq.s32.totalorder %s21, 1
      %p144 = scmp.ne.s32.totalorder %s139, %s141
      %p145 = scmp.eq.s32.totalorder %s21, 0
      %p146 = por %p144, %p145
      %p147 = scmp.ne.s32.totalorder %s139, %s141
      %p148 = scmp.eq.s32.totalorder %s26, 1
      %p149 = por %p147, %p148
      %p150 = scmp.ne.s32.totalorder %s141, %s142
      %p151 = scmp.eq.s32.totalorder %s26, 0
      %p152 = por %p150, %p151
      %p153 = scmp.ne.s32.totalorder %s141, %s142
      %p154 = scmp.eq.s32.totalorder %s27, 1
      %p155 = por %p153, %p154
      %p157 = scmp.ne.s32.totalorder %s142, %s156
      %p158 = scmp.eq.s32.totalorder %s27, 0
      %p159 = por %p157, %p158
      %s161 = sadd.s32 %s160, 1
      %p164 = scmp.eq.s32.totalorder %s21, 1
      %p165 = scmp.ne.s32.totalorder %s160, %s162
      %p166 = scmp.eq.s32.totalorder %s21, 0
      %p167 = por %p165, %p166
      %p168 = scmp.ne.s32.totalorder %s160, %s162
      %p169 = scmp.eq.s32.totalorder %s26, 1
      %p170 = por %p168, %p169
      %p171 = scmp.ne.s32.totalorder %s162, %s163
      %p172 = scmp.eq.s32.totalorder %s26, 0
      %p173 = por %p171, %p172
      %p174 = scmp.ne.s32.totalorder %s162, %s163
      %p175 = scmp.eq.s32.totalorder %s27, 1
      %p176 = por %p174, %p175
      %p178 = scmp.ne.s32.totalorder %s163, %s177
      %p179 = scmp.eq.s32.totalorder %s27, 0
      %p180 = por %p178, %p179
      %s181 = ssub.s32 %s21, %s28
      %p182 = scmp.eq.s32.totalorder %s181, 0
      %s184 = sadd.s32 %s183, 1
      %s185 = scalar_select %p182, %s183, %s184
      %p188 = pneg %p182
      %p189 = scmp.eq.s32.totalorder %s21, 1
      %p190 = por %p188, %p189
      %p191 = scmp.ne.s32.totalorder %s183, %s186
      %p192 = scmp.eq.s32.totalorder %s21, 0
      %p193 = por %p191, %p192
      %p194 = scmp.ne.s32.totalorder %s183, %s186
      %p195 = scmp.eq.s32.totalorder %s26, 1
      %p196 = por %p194, %p195
      %p197 = scmp.ne.s32.totalorder %s186, %s187
      %p198 = scmp.eq.s32.totalorder %s26, 0
      %p199 = por %p197, %p198
      %p200 = scmp.ne.s32.totalorder %s186, %s187
      %p201 = scmp.eq.s32.totalorder %s27, 1
      %p202 = por %p200, %p201
      %p204 = scmp.ne.s32.totalorder %s187, %s203
      %p205 = scmp.eq.s32.totalorder %s27, 0
      %p206 = por %p204, %p205
      %p207 = scmp.le.s32.totalorder 1, %s21
      %p208 = scmp.lt.s32.totalorder %s21, 3
      %p209 = pnand %p207, %p208
      %p210 = pneg %p209
      // Predicated region
      $region9: #{tpu_custom_call.1} parent=5 // pred_check
        _
      $region10: #{tpu_custom_call.1} parent=5 // pred_check_branch
        %212 = sbr.rel (%p209) target = $region12
      $region11: #{tpu_custom_call.1} parent=5 // pred_region
        %s213 = ssub.s32 %s21, 1
        // Predicated region
        $region13: #{tpu_custom_call.1} parent=11 // pred_check
          %p214 = pneg %p68
        $region14: #{tpu_custom_call.1} parent=11 // pred_check_branch
          %216 = sbr.rel (%p214) target = $region16
        $region15: #{tpu_custom_call.1} parent=11 // pred_region
          %s218 = ssub.s32 16384, 16384
          %219 = vsyncadd [#allocation6], %s218
          %s220 = sshll.u32 [#allocation5], 4
          %s221 = int_to_ptr.vmem [resolvable:$true] %s220
          %226 = dma.hbm_to_vmem [thread:$0]  %s1, 16384, %s221, [#allocation6], 256, 256, 16
        $region16: #{tpu_custom_call.1} parent=11 // pred_fallthru
          _
        // Predicated region
        $region17: #{tpu_custom_call.1} parent=11 // pred_check
          %p227 = pneg %p89
        $region18: #{tpu_custom_call.1} parent=11 // pred_check_branch
          %229 = sbr.rel (%p227) target = $region20
        $region19: #{tpu_custom_call.1} parent=11 // pred_region
          _
        $region20: #{tpu_custom_call.1} parent=11 // pred_fallthru
          _
        // Predicated region
        $region21: #{tpu_custom_call.1} parent=11 // pred_check
          %p230 = pneg %p110
        $region22: #{tpu_custom_call.1} parent=11 // pred_check_branch
          %232 = sbr.rel (%p230) target = $region24
        $region23: #{tpu_custom_call.1} parent=11 // pred_region
          %s234 = ssub.s32 9216, 9216
          %235 = vsyncadd [#allocation6], %s234
          %s236 = sshll.u32 [#allocation7], 4
          %s237 = int_to_ptr.vmem [resolvable:$true] %s236
          %242 = dma.hbm_to_vmem [thread:$0]  %s3, 9216, %s237, [#allocation6], 64, 64, 4
        $region24: #{tpu_custom_call.1} parent=11 // pred_fallthru
          _
        // Predicated region
        $region25: #{tpu_custom_call.1} parent=11 // pred_check
          %p243 = pneg %p131
        $region26: #{tpu_custom_call.1} parent=11 // pred_check_branch
          %245 = sbr.rel (%p243) target = $region28
        $region27: #{tpu_custom_call.1} parent=11 // pred_region
          _
        $region28: #{tpu_custom_call.1} parent=11 // pred_fallthru
          _
        // Predicated region
        $region29: #{tpu_custom_call.1} parent=11 // pred_check
          %p246 = pneg %p152
        $region30: #{tpu_custom_call.1} parent=11 // pred_check_branch
          %248 = sbr.rel (%p246) target = $region32
        $region31: #{tpu_custom_call.1} parent=11 // pred_region
          %s250 = ssub.s32 16384, 16384
          %251 = vsyncadd [#allocation9], %s250
          %s252 = sshll.u32 [#allocation8], 4
          %s253 = int_to_ptr.vmem [resolvable:$true] %s252
          %258 = dma.hbm_to_vmem [thread:$0]  %s5, 16384, %s253, [#allocation9], 256, 256, 16
        $region32: #{tpu_custom_call.1} parent=11 // pred_fallthru
          _
        // Predicated region
        $region33: #{tpu_custom_call.1} parent=11 // pred_check
          %p259 = pneg %p173
        $region34: #{tpu_custom_call.1} parent=11 // pred_check_branch
          %261 = sbr.rel (%p259) target = $region36
        $region35: #{tpu_custom_call.1} parent=11 // pred_region
          _
        $region36: #{tpu_custom_call.1} parent=11 // pred_fallthru
          _
      $region12: #{tpu_custom_call.1} parent=5 // pred_fallthru
        _
      %p262 = scmp.lt.s32.totalorder %s21, 2
      // Predicated region
      $region37: #{tpu_custom_call.1} parent=5 // pred_check
        %p263 = pneg %p262
      $region38: #{tpu_custom_call.1} parent=5 // pred_check_branch
        %265 = sbr.rel (%p263) target = $region40
      $region39: #{tpu_custom_call.1} parent=5 // pred_region
        // Predicated region
        $region41: #{tpu_custom_call.1} parent=39 // pred_check
          %p266 = pneg %p41
        $region42: #{tpu_custom_call.1} parent=39 // pred_check_branch
          %268 = sbr.rel (%p266) target = $region44
        $region43: #{tpu_custom_call.1} parent=39 // pred_region
          %s269 = sand.u32 %s31, 1
          %s270 = scalar_lea.sflag [#allocation3], %s269
          %s271 = sand.u32 %s31, 1
          %s272 = smul.addr %s271, 128
          %s273 = scalar_lea.vmem [#allocation2], %s272
          %s274 = smul.u32 4, %s21
          %s276 = ssub.s32 2048, 2048
          %277 = vsyncadd %s270, %s276
          %s278 = smul.addr %s274, 4
          %s279 = smul.addr %s278, 128
          %s280 = scalar_lea.hbm %s0, %s279
          %s281 = sshll.u32 %s273, 4
          %s282 = int_to_ptr.vmem [resolvable:$true] %s281
          %287 = dma.hbm_to_vmem [thread:$0]  %s280, 2048, %s282, %s270, 512, 512, 32
        $region44: #{tpu_custom_call.1} parent=39 // pred_fallthru
          _
      $region40: #{tpu_custom_call.1} parent=5 // pred_fallthru
        _
      %p288 = scmp.le.s32.totalorder 1, %s21
      %p289 = scmp.lt.s32.totalorder %s21, 3
      %p290 = pnand %p288, %p289
      %p291 = pneg %p290
      // Predicated region
      $region45: #{tpu_custom_call.1} parent=5 // pred_check
        _
      $region46: #{tpu_custom_call.1} parent=5 // pred_check_branch
        %293 = sbr.rel (%p290) target = $region48
      $region47: #{tpu_custom_call.1} parent=5 // pred_region
        %s294 = ssub.s32 %s21, 1
        %s295 = sand.u32 %s34, 1
        %s296 = scalar_lea.sflag [#allocation3], %s295
        %s297 = sand.u32 %s34, 1
        %s298 = smul.addr %s297, 128
        %s299 = scalar_lea.vmem [#allocation2], %s298
        // Predicated region
        $region49: #{tpu_custom_call.1} parent=47 // pred_check
          %p300 = pneg %p47
        $region50: #{tpu_custom_call.1} parent=47 // pred_check_branch
          %302 = sbr.rel (%p300) target = $region52
        $region51: #{tpu_custom_call.1} parent=47 // pred_region
          %303 = dma.done %s296, 2048
        $region52: #{tpu_custom_call.1} parent=47 // pred_fallthru
          _
        // Predicated region
        $region53: #{tpu_custom_call.1} parent=47 // pred_check
          %p304 = pneg %p68
        $region54: #{tpu_custom_call.1} parent=47 // pred_check_branch
          %306 = sbr.rel (%p304) target = $region56
        $region55: #{tpu_custom_call.1} parent=47 // pred_region
          %307 = dma.done [#allocation6], 16384
        $region56: #{tpu_custom_call.1} parent=47 // pred_fallthru
          _
        // Predicated region
        $region57: #{tpu_custom_call.1} parent=47 // pred_check
          %p308 = pneg %p110
        $region58: #{tpu_custom_call.1} parent=47 // pred_check_branch
          %310 = sbr.rel (%p308) target = $region60
        $region59: #{tpu_custom_call.1} parent=47 // pred_region
          %311 = dma.done [#allocation6], 9216
        $region60: #{tpu_custom_call.1} parent=47 // pred_fallthru
          _
        // Predicated region
        $region61: #{tpu_custom_call.1} parent=47 // pred_check
          %p312 = pneg %p152
        $region62: #{tpu_custom_call.1} parent=47 // pred_check_branch
          %314 = sbr.rel (%p312) target = $region64
        $region63: #{tpu_custom_call.1} parent=47 // pred_region
          %315 = dma.done [#allocation9], 16384
        $region64: #{tpu_custom_call.1} parent=47 // pred_fallthru
          _
        %s316 = sand.u32 %s34, 1
        %s317 = scalar_lea.sflag [#allocation3], %s316
        %s318 = sand.u32 %s34, 1
        %s319 = smul.addr %s318, 128
        %s320 = scalar_lea.vmem [#allocation2], %s319
        %p321 = pneg %p47
        %p322 = pneg %p44
        %p323 = pneg %p68
        %p324 = pneg %p65
        %p325 = pneg %p89
        %p326 = pneg %p86
        %p327 = pneg %p110
        %p328 = pneg %p107
        %p329 = pneg %p131
        %p330 = pneg %p128
        %p331 = pneg %p152
        %p332 = pneg %p149
        %p333 = pneg %p173
        %p334 = pneg %p170
        %p335 = pneg %p199
        %p336 = pneg %p196
        %s337 = sand.u32 %s186, 1
        %s338 = scalar_lea.sflag [#allocation4], %s337
        %s339 = sand.u32 %s186, 1
        %s340 = smul.addr %s339, 128
        %s341 = scalar_lea.vmem [#allocation10], %s340
        %s342 = smul.u32 4, %s26
        %s343 = smul.u32 4, %s26
        %v345 = vld [vmem:[%s299] sm:$0xff]
        %v346 = vld [vmem:[%s299 + $0x8] sm:$0xff]
        %v347 = vld [vmem:[%s299 + $0x10] sm:$0xff]
        %v348 = vld [vmem:[%s299 + $0x18] sm:$0xff]
        %v349 = vld [vmem:[%s299 + $0x20] sm:$0xff]
        %v350 = vld [vmem:[%s299 + $0x28] sm:$0xff]
        %v351 = vld [vmem:[%s299 + $0x30] sm:$0xff]
        %v352 = vld [vmem:[%s299 + $0x38] sm:$0xff]
        %v353 = vld [vmem:[%s299 + $0x40] sm:$0xff]
        %v354 = vld [vmem:[%s299 + $0x48] sm:$0xff]
        %v355 = vld [vmem:[%s299 + $0x50] sm:$0xff]
        %v356 = vld [vmem:[%s299 + $0x58] sm:$0xff]
        %v357 = vld [vmem:[%s299 + $0x60] sm:$0xff]
        %v358 = vld [vmem:[%s299 + $0x68] sm:$0xff]
        %v359 = vld [vmem:[%s299 + $0x70] sm:$0xff]
        %v360 = vld [vmem:[%s299 + $0x78] sm:$0xff]
        %v361 = vpack.c.bf16 %v349, %v345
        %v362 = vpack.c.bf16 %v350, %v346
        %v363 = vpack.c.bf16 %v351, %v347
        %v364 = vpack.c.bf16 %v352, %v348
        %v365 = vpack.c.bf16 %v357, %v353
        %v366 = vpack.c.bf16 %v358, %v354
        %v367 = vpack.c.bf16 %v359, %v355
        %v368 = vpack.c.bf16 %v360, %v356
        %v369 = vld [vmem:[#allocation5] sm:$0xff]
        %v370 = vld [vmem:[#allocation5 + $0x8] sm:$0xff]
        %v371 = vld [vmem:[#allocation5 + $0x10] sm:$0xff]
        %v372 = vld [vmem:[#allocation5 + $0x18] sm:$0xff]
        %v373 = vld [vmem:[#allocation5 + $0x20] sm:$0xff]
        %v374 = vld [vmem:[#allocation5 + $0x28] sm:$0xff]
        %v375 = vld [vmem:[#allocation5 + $0x30] sm:$0xff]
        %v376 = vld [vmem:[#allocation5 + $0x38] sm:$0xff]
        %v377 = vld [vmem:[#allocation5 + $0x40] sm:$0xff]
        %v378 = vld [vmem:[#allocation5 + $0x48] sm:$0xff]
        %v379 = vld [vmem:[#allocation5 + $0x50] sm:$0xff]
        %v380 = vld [vmem:[#allocation5 + $0x58] sm:$0xff]
        %v381 = vld [vmem:[#allocation5 + $0x60] sm:$0xff]
        %v382 = vld [vmem:[#allocation5 + $0x68] sm:$0xff]
        %v383 = vld [vmem:[#allocation5 + $0x70] sm:$0xff]
        %v384 = vld [vmem:[#allocation5 + $0x78] sm:$0xff]
        %v385 = vld [vmem:[#allocation5 + $0x80] sm:$0xff]
        %v386 = vld [vmem:[#allocation5 + $0x88] sm:$0xff]
        %v387 = vld [vmem:[#allocation5 + $0x90] sm:$0xff]
        %v388 = vld [vmem:[#allocation5 + $0x98] sm:$0xff]
        %v389 = vld [vmem:[#allocation5 + $0xa0] sm:$0xff]
        %v390 = vld [vmem:[#allocation5 + $0xa8] sm:$0xff]
        %v391 = vld [vmem:[#allocation5 + $0xb0] sm:$0xff]
        %v392 = vld [vmem:[#allocation5 + $0xb8] sm:$0xff]
        %v393 = vld [vmem:[#allocation5 + $0xc0] sm:$0xff]
        %v394 = vld [vmem:[#allocation5 + $0xc8] sm:$0xff]
        %v395 = vld [vmem:[#allocation5 + $0xd0] sm:$0xff]
        %v396 = vld [vmem:[#allocation5 + $0xd8] sm:$0xff]
        %v397 = vld [vmem:[#allocation5 + $0xe0] sm:$0xff]
        %v398 = vld [vmem:[#allocation5 + $0xe8] sm:$0xff]
        %v399 = vld [vmem:[#allocation5 + $0xf0] sm:$0xff]
        %v400 = vld [vmem:[#allocation5 + $0xf8] sm:$0xff]
        %v401 = vld [vmem:[#allocation5 + $0x100] sm:$0xff]
        %v402 = vld [vmem:[#allocation5 + $0x108] sm:$0xff]
        %v403 = vld [vmem:[#allocation5 + $0x110] sm:$0xff]
        %v404 = vld [vmem:[#allocation5 + $0x118] sm:$0xff]
        %v405 = vld [vmem:[#allocation5 + $0x120] sm:$0xff]
        %v406 = vld [vmem:[#allocation5 + $0x128] sm:$0xff]
        %v407 = vld [vmem:[#allocation5 + $0x130] sm:$0xff]
        %v408 = vld [vmem:[#allocation5 + $0x138] sm:$0xff]
        %v409 = vld [vmem:[#allocation5 + $0x140] sm:$0xff]
        %v410 = vld [vmem:[#allocation5 + $0x148] sm:$0xff]
        %v411 = vld [vmem:[#allocation5 + $0x150] sm:$0xff]
        %v412 = vld [vmem:[#allocation5 + $0x158] sm:$0xff]
        %v413 = vld [vmem:[#allocation5 + $0x160] sm:$0xff]
        %v414 = vld [vmem:[#allocation5 + $0x168] sm:$0xff]
        %v415 = vld [vmem:[#allocation5 + $0x170] sm:$0xff]
        %v416 = vld [vmem:[#allocation5 + $0x178] sm:$0xff]
        %v417 = vld [vmem:[#allocation5 + $0x180] sm:$0xff]
        %v418 = vld [vmem:[#allocation5 + $0x188] sm:$0xff]
        %v419 = vld [vmem:[#allocation5 + $0x190] sm:$0xff]
        %v420 = vld [vmem:[#allocation5 + $0x198] sm:$0xff]
        %v421 = vld [vmem:[#allocation5 + $0x1a0] sm:$0xff]
        %v422 = vld [vmem:[#allocation5 + $0x1a8] sm:$0xff]
        %v423 = vld [vmem:[#allocation5 + $0x1b0] sm:$0xff]
        %v424 = vld [vmem:[#allocation5 + $0x1b8] sm:$0xff]
        %v425 = vld [vmem:[#allocation5 + $0x1c0] sm:$0xff]
        %v426 = vld [vmem:[#allocation5 + $0x1c8] sm:$0xff]
        %v427 = vld [vmem:[#allocation5 + $0x1d0] sm:$0xff]
        %v428 = vld [vmem:[#allocation5 + $0x1d8] sm:$0xff]
        %v429 = vld [vmem:[#allocation5 + $0x1e0] sm:$0xff]
        %v430 = vld [vmem:[#allocation5 + $0x1e8] sm:$0xff]
        %v431 = vld [vmem:[#allocation5 + $0x1f0] sm:$0xff]
        %v432 = vld [vmem:[#allocation5 + $0x1f8] sm:$0xff]
        %v433 = vld [vmem:[#allocation5 + $0x200] sm:$0xff]
        %v434 = vld [vmem:[#allocation5 + $0x208] sm:$0xff]
        %v435 = vld [vmem:[#allocation5 + $0x210] sm:$0xff]
        %v436 = vld [vmem:[#allocation5 + $0x218] sm:$0xff]
        %v437 = vld [vmem:[#allocation5 + $0x220] sm:$0xff]
        %v438 = vld [vmem:[#allocation5 + $0x228] sm:$0xff]
        %v439 = vld [vmem:[#allocation5 + $0x230] sm:$0xff]
        %v440 = vld [vmem:[#allocation5 + $0x238] sm:$0xff]
        %v441 = vld [vmem:[#allocation5 + $0x240] sm:$0xff]
        %v442 = vld [vmem:[#allocation5 + $0x248] sm:$0xff]
        %v443 = vld [vmem:[#allocation5 + $0x250] sm:$0xff]
        %v444 = vld [vmem:[#allocation5 + $0x258] sm:$0xff]
        %v445 = vld [vmem:[#allocation5 + $0x260] sm:$0xff]
        %v446 = vld [vmem:[#allocation5 + $0x268] sm:$0xff]
        %v447 = vld [vmem:[#allocation5 + $0x270] sm:$0xff]
        %v448 = vld [vmem:[#allocation5 + $0x278] sm:$0xff]
        %v449 = vld [vmem:[#allocation5 + $0x280] sm:$0xff]
        %v450 = vld [vmem:[#allocation5 + $0x288] sm:$0xff]
        %v451 = vld [vmem:[#allocation5 + $0x290] sm:$0xff]
        %v452 = vld [vmem:[#allocation5 + $0x298] sm:$0xff]
        %v453 = vld [vmem:[#allocation5 + $0x2a0] sm:$0xff]
        %v454 = vld [vmem:[#allocation5 + $0x2a8] sm:$0xff]
        %v455 = vld [vmem:[#allocation5 + $0x2b0] sm:$0xff]
        %v456 = vld [vmem:[#allocation5 + $0x2b8] sm:$0xff]
        %v457 = vld [vmem:[#allocation5 + $0x2c0] sm:$0xff]
        %v458 = vld [vmem:[#allocation5 + $0x2c8] sm:$0xff]
        %v459 = vld [vmem:[#allocation5 + $0x2d0] sm:$0xff]
        %v460 = vld [vmem:[#allocation5 + $0x2d8] sm:$0xff]
        %v461 = vld [vmem:[#allocation5 + $0x2e0] sm:$0xff]
        %v462 = vld [vmem:[#allocation5 + $0x2e8] sm:$0xff]
        %v463 = vld [vmem:[#allocation5 + $0x2f0] sm:$0xff]
        %v464 = vld [vmem:[#allocation5 + $0x2f8] sm:$0xff]
        %v465 = vld [vmem:[#allocation5 + $0x300] sm:$0xff]
        %v466 = vld [vmem:[#allocation5 + $0x308] sm:$0xff]
        %v467 = vld [vmem:[#allocation5 + $0x310] sm:$0xff]
        %v468 = vld [vmem:[#allocation5 + $0x318] sm:$0xff]
        %v469 = vld [vmem:[#allocation5 + $0x320] sm:$0xff]
        %v470 = vld [vmem:[#allocation5 + $0x328] sm:$0xff]
        %v471 = vld [vmem:[#allocation5 + $0x330] sm:$0xff]
        %v472 = vld [vmem:[#allocation5 + $0x338] sm:$0xff]
        %v473 = vld [vmem:[#allocation5 + $0x340] sm:$0xff]
        %v474 = vld [vmem:[#allocation5 + $0x348] sm:$0xff]
        %v475 = vld [vmem:[#allocation5 + $0x350] sm:$0xff]
        %v476 = vld [vmem:[#allocation5 + $0x358] sm:$0xff]
        %v477 = vld [vmem:[#allocation5 + $0x360] sm:$0xff]
        %v478 = vld [vmem:[#allocation5 + $0x368] sm:$0xff]
        %v479 = vld [vmem:[#allocation5 + $0x370] sm:$0xff]
        %v480 = vld [vmem:[#allocation5 + $0x378] sm:$0xff]
        %v481 = vld [vmem:[#allocation5 + $0x380] sm:$0xff]
        %v482 = vld [vmem:[#allocation5 + $0x388] sm:$0xff]
        %v483 = vld [vmem:[#allocation5 + $0x390] sm:$0xff]
        %v484 = vld [vmem:[#allocation5 + $0x398] sm:$0xff]
        %v485 = vld [vmem:[#allocation5 + $0x3a0] sm:$0xff]
        %v486 = vld [vmem:[#allocation5 + $0x3a8] sm:$0xff]
        %v487 = vld [vmem:[#allocation5 + $0x3b0] sm:$0xff]
        %v488 = vld [vmem:[#allocation5 + $0x3b8] sm:$0xff]
        %v489 = vld [vmem:[#allocation5 + $0x3c0] sm:$0xff]
        %v490 = vld [vmem:[#allocation5 + $0x3c8] sm:$0xff]
        %v491 = vld [vmem:[#allocation5 + $0x3d0] sm:$0xff]
        %v492 = vld [vmem:[#allocation5 + $0x3d8] sm:$0xff]
        %v493 = vld [vmem:[#allocation5 + $0x3e0] sm:$0xff]
        %v494 = vld [vmem:[#allocation5 + $0x3e8] sm:$0xff]
        %v495 = vld [vmem:[#allocation5 + $0x3f0] sm:$0xff]
        %v496 = vld [vmem:[#allocation5 + $0x3f8] sm:$0xff]
        %v497 = vld [vmem:[%s2] sm:$0xf]
        %v499 = vlaneseq
        %v500 = vshrl.u32 %v499, 7
        %v501 = vsub.s32 0, %v500
        %v502 = vrot.slane %v497, %v501
        %v503 = vlaneseq
        %v504 = vshrl.u32 %v503, 7
        %v505 = vsub.s32 1, %v504
        %v506 = vrot.slane %v497, %v505
        %v507 = vlaneseq
        %v508 = vshrl.u32 %v507, 7
        %v509 = vsub.s32 2, %v508
        %v510 = vrot.slane %v497, %v509
        %v511 = vlaneseq
        %v512 = vshrl.u32 %v511, 7
        %v513 = vsub.s32 3, %v512
        %v514 = vrot.slane %v497, %v513
        %v647 = vunpack.c.l.b16 %v369
        %v648 = vunpack.c.h.b16 %v369
        %v649 = vunpack.c.l.b16 %v370
        %v650 = vunpack.c.h.b16 %v370
        %v651 = vunpack.c.l.b16 %v371
        %v652 = vunpack.c.h.b16 %v371
        %v653 = vunpack.c.l.b16 %v372
        %v654 = vunpack.c.h.b16 %v372
        %v655 = vunpack.c.l.b16 %v373
        %v656 = vunpack.c.h.b16 %v373
        %v657 = vunpack.c.l.b16 %v374
        %v658 = vunpack.c.h.b16 %v374
        %v659 = vunpack.c.l.b16 %v375
        %v660 = vunpack.c.h.b16 %v375
        %v661 = vunpack.c.l.b16 %v376
        %v662 = vunpack.c.h.b16 %v376
        %v663 = vunpack.c.l.b16 %v377
        %v664 = vunpack.c.h.b16 %v377
        %v665 = vunpack.c.l.b16 %v378
        %v666 = vunpack.c.h.b16 %v378
        %v667 = vunpack.c.l.b16 %v379
        %v668 = vunpack.c.h.b16 %v379
        %v669 = vunpack.c.l.b16 %v380
        %v670 = vunpack.c.h.b16 %v380
        %v671 = vunpack.c.l.b16 %v381
        %v672 = vunpack.c.h.b16 %v381
        %v673 = vunpack.c.l.b16 %v382
        %v674 = vunpack.c.h.b16 %v382
        %v675 = vunpack.c.l.b16 %v383
        %v676 = vunpack.c.h.b16 %v383
        %v677 = vunpack.c.l.b16 %v384
        %v678 = vunpack.c.h.b16 %v384
        %v679 = vunpack.c.l.b16 %v385
        %v680 = vunpack.c.h.b16 %v385
        %v681 = vunpack.c.l.b16 %v386
        %v682 = vunpack.c.h.b16 %v386
        %v683 = vunpack.c.l.b16 %v387
        %v684 = vunpack.c.h.b16 %v387
        %v685 = vunpack.c.l.b16 %v388
        %v686 = vunpack.c.h.b16 %v388
        %v687 = vunpack.c.l.b16 %v389
        %v688 = vunpack.c.h.b16 %v389
        %v689 = vunpack.c.l.b16 %v390
        %v690 = vunpack.c.h.b16 %v390
        %v691 = vunpack.c.l.b16 %v391
        %v692 = vunpack.c.h.b16 %v391
        %v693 = vunpack.c.l.b16 %v392
        %v694 = vunpack.c.h.b16 %v392
        %v695 = vunpack.c.l.b16 %v393
        %v696 = vunpack.c.h.b16 %v393
        %v697 = vunpack.c.l.b16 %v394
        %v698 = vunpack.c.h.b16 %v394
        %v699 = vunpack.c.l.b16 %v395
        %v700 = vunpack.c.h.b16 %v395
        %v701 = vunpack.c.l.b16 %v396
        %v702 = vunpack.c.h.b16 %v396
        %v703 = vunpack.c.l.b16 %v397
        %v704 = vunpack.c.h.b16 %v397
        %v705 = vunpack.c.l.b16 %v398
        %v706 = vunpack.c.h.b16 %v398
        %v707 = vunpack.c.l.b16 %v399
        %v708 = vunpack.c.h.b16 %v399
        %v709 = vunpack.c.l.b16 %v400
        %v710 = vunpack.c.h.b16 %v400
        %v711 = vunpack.c.l.b16 %v401
        %v712 = vunpack.c.h.b16 %v401
        %v713 = vunpack.c.l.b16 %v402
        %v714 = vunpack.c.h.b16 %v402
        %v715 = vunpack.c.l.b16 %v403
        %v716 = vunpack.c.h.b16 %v403
        %v717 = vunpack.c.l.b16 %v404
        %v718 = vunpack.c.h.b16 %v404
        %v719 = vunpack.c.l.b16 %v405
        %v720 = vunpack.c.h.b16 %v405
        %v721 = vunpack.c.l.b16 %v406
        %v722 = vunpack.c.h.b16 %v406
        %v723 = vunpack.c.l.b16 %v407
        %v724 = vunpack.c.h.b16 %v407
        %v725 = vunpack.c.l.b16 %v408
        %v726 = vunpack.c.h.b16 %v408
        %v727 = vunpack.c.l.b16 %v409
        %v728 = vunpack.c.h.b16 %v409
        %v729 = vunpack.c.l.b16 %v410
        %v730 = vunpack.c.h.b16 %v410
        %v731 = vunpack.c.l.b16 %v411
        %v732 = vunpack.c.h.b16 %v411
        %v733 = vunpack.c.l.b16 %v412
        %v734 = vunpack.c.h.b16 %v412
        %v735 = vunpack.c.l.b16 %v413
        %v736 = vunpack.c.h.b16 %v413
        %v737 = vunpack.c.l.b16 %v414
        %v738 = vunpack.c.h.b16 %v414
        %v739 = vunpack.c.l.b16 %v415
        %v740 = vunpack.c.h.b16 %v415
        %v741 = vunpack.c.l.b16 %v416
        %v742 = vunpack.c.h.b16 %v416
        %v743 = vunpack.c.l.b16 %v417
        %v744 = vunpack.c.h.b16 %v417
        %v745 = vunpack.c.l.b16 %v418
        %v746 = vunpack.c.h.b16 %v418
        %v747 = vunpack.c.l.b16 %v419
        %v748 = vunpack.c.h.b16 %v419
        %v749 = vunpack.c.l.b16 %v420
        %v750 = vunpack.c.h.b16 %v420
        %v751 = vunpack.c.l.b16 %v421
        %v752 = vunpack.c.h.b16 %v421
        %v753 = vunpack.c.l.b16 %v422
        %v754 = vunpack.c.h.b16 %v422
        %v755 = vunpack.c.l.b16 %v423
        %v756 = vunpack.c.h.b16 %v423
        %v757 = vunpack.c.l.b16 %v424
        %v758 = vunpack.c.h.b16 %v424
        %v759 = vunpack.c.l.b16 %v425
        %v760 = vunpack.c.h.b16 %v425
        %v761 = vunpack.c.l.b16 %v426
        %v762 = vunpack.c.h.b16 %v426
        %v763 = vunpack.c.l.b16 %v427
        %v764 = vunpack.c.h.b16 %v427
        %v765 = vunpack.c.l.b16 %v428
        %v766 = vunpack.c.h.b16 %v428
        %v767 = vunpack.c.l.b16 %v429
        %v768 = vunpack.c.h.b16 %v429
        %v769 = vunpack.c.l.b16 %v430
        %v770 = vunpack.c.h.b16 %v430
        %v771 = vunpack.c.l.b16 %v431
        %v772 = vunpack.c.h.b16 %v431
        %v773 = vunpack.c.l.b16 %v432
        %v774 = vunpack.c.h.b16 %v432
        %v775 = vunpack.c.l.b16 %v433
        %v776 = vunpack.c.h.b16 %v433
        %v777 = vunpack.c.l.b16 %v434
        %v778 = vunpack.c.h.b16 %v434
        %v779 = vunpack.c.l.b16 %v435
        %v780 = vunpack.c.h.b16 %v435
        %v781 = vunpack.c.l.b16 %v436
        %v782 = vunpack.c.h.b16 %v436
        %v783 = vunpack.c.l.b16 %v437
        %v784 = vunpack.c.h.b16 %v437
        %v785 = vunpack.c.l.b16 %v438
        %v786 = vunpack.c.h.b16 %v438
        %v787 = vunpack.c.l.b16 %v439
        %v788 = vunpack.c.h.b16 %v439
        %v789 = vunpack.c.l.b16 %v440
        %v790 = vunpack.c.h.b16 %v440
        %v791 = vunpack.c.l.b16 %v441
        %v792 = vunpack.c.h.b16 %v441
        %v793 = vunpack.c.l.b16 %v442
        %v794 = vunpack.c.h.b16 %v442
        %v795 = vunpack.c.l.b16 %v443
        %v796 = vunpack.c.h.b16 %v443
        %v797 = vunpack.c.l.b16 %v444
        %v798 = vunpack.c.h.b16 %v444
        %v799 = vunpack.c.l.b16 %v445
        %v800 = vunpack.c.h.b16 %v445
        %v801 = vunpack.c.l.b16 %v446
        %v802 = vunpack.c.h.b16 %v446
        %v803 = vunpack.c.l.b16 %v447
        %v804 = vunpack.c.h.b16 %v447
        %v805 = vunpack.c.l.b16 %v448
        %v806 = vunpack.c.h.b16 %v448
        %v807 = vunpack.c.l.b16 %v449
        %v808 = vunpack.c.h.b16 %v449
        %v809 = vunpack.c.l.b16 %v450
        %v810 = vunpack.c.h.b16 %v450
        %v811 = vunpack.c.l.b16 %v451
        %v812 = vunpack.c.h.b16 %v451
        %v813 = vunpack.c.l.b16 %v452
        %v814 = vunpack.c.h.b16 %v452
        %v815 = vunpack.c.l.b16 %v453
        %v816 = vunpack.c.h.b16 %v453
        %v817 = vunpack.c.l.b16 %v454
        %v818 = vunpack.c.h.b16 %v454
        %v819 = vunpack.c.l.b16 %v455
        %v820 = vunpack.c.h.b16 %v455
        %v821 = vunpack.c.l.b16 %v456
        %v822 = vunpack.c.h.b16 %v456
        %v823 = vunpack.c.l.b16 %v457
        %v824 = vunpack.c.h.b16 %v457
        %v825 = vunpack.c.l.b16 %v458
        %v826 = vunpack.c.h.b16 %v458
        %v827 = vunpack.c.l.b16 %v459
        %v828 = vunpack.c.h.b16 %v459
        %v829 = vunpack.c.l.b16 %v460
        %v830 = vunpack.c.h.b16 %v460
        %v831 = vunpack.c.l.b16 %v461
        %v832 = vunpack.c.h.b16 %v461
        %v833 = vunpack.c.l.b16 %v462
        %v834 = vunpack.c.h.b16 %v462
        %v835 = vunpack.c.l.b16 %v463
        %v836 = vunpack.c.h.b16 %v463
        %v837 = vunpack.c.l.b16 %v464
        %v838 = vunpack.c.h.b16 %v464
        %v839 = vunpack.c.l.b16 %v465
        %v840 = vunpack.c.h.b16 %v465
        %v841 = vunpack.c.l.b16 %v466
        %v842 = vunpack.c.h.b16 %v466
        %v843 = vunpack.c.l.b16 %v467
        %v844 = vunpack.c.h.b16 %v467
        %v845 = vunpack.c.l.b16 %v468
        %v846 = vunpack.c.h.b16 %v468
        %v847 = vunpack.c.l.b16 %v469
        %v848 = vunpack.c.h.b16 %v469
        %v849 = vunpack.c.l.b16 %v470
        %v850 = vunpack.c.h.b16 %v470
        %v851 = vunpack.c.l.b16 %v471
        %v852 = vunpack.c.h.b16 %v471
        %v853 = vunpack.c.l.b16 %v472
        %v854 = vunpack.c.h.b16 %v472
        %v855 = vunpack.c.l.b16 %v473
        %v856 = vunpack.c.h.b16 %v473
        %v857 = vunpack.c.l.b16 %v474
        %v858 = vunpack.c.h.b16 %v474
        %v859 = vunpack.c.l.b16 %v475
        %v860 = vunpack.c.h.b16 %v475
        %v861 = vunpack.c.l.b16 %v476
        %v862 = vunpack.c.h.b16 %v476
        %v863 = vunpack.c.l.b16 %v477
        %v864 = vunpack.c.h.b16 %v477
        %v865 = vunpack.c.l.b16 %v478
        %v866 = vunpack.c.h.b16 %v478
        %v867 = vunpack.c.l.b16 %v479
        %v868 = vunpack.c.h.b16 %v479
        %v869 = vunpack.c.l.b16 %v480
        %v870 = vunpack.c.h.b16 %v480
        %v871 = vunpack.c.l.b16 %v481
        %v872 = vunpack.c.h.b16 %v481
        %v873 = vunpack.c.l.b16 %v482
        %v874 = vunpack.c.h.b16 %v482
        %v875 = vunpack.c.l.b16 %v483
        %v876 = vunpack.c.h.b16 %v483
        %v877 = vunpack.c.l.b16 %v484
        %v878 = vunpack.c.h.b16 %v484
        %v879 = vunpack.c.l.b16 %v485
        %v880 = vunpack.c.h.b16 %v485
        %v881 = vunpack.c.l.b16 %v486
        %v882 = vunpack.c.h.b16 %v486
        %v883 = vunpack.c.l.b16 %v487
        %v884 = vunpack.c.h.b16 %v487
        %v885 = vunpack.c.l.b16 %v488
        %v886 = vunpack.c.h.b16 %v488
        %v887 = vunpack.c.l.b16 %v489
        %v888 = vunpack.c.h.b16 %v489
        %v889 = vunpack.c.l.b16 %v490
        %v890 = vunpack.c.h.b16 %v490
        %v891 = vunpack.c.l.b16 %v491
        %v892 = vunpack.c.h.b16 %v491
        %v893 = vunpack.c.l.b16 %v492
        %v894 = vunpack.c.h.b16 %v492
        %v895 = vunpack.c.l.b16 %v493
        %v896 = vunpack.c.h.b16 %v493
        %v897 = vunpack.c.l.b16 %v494
        %v898 = vunpack.c.h.b16 %v494
        %v899 = vunpack.c.l.b16 %v495
        %v900 = vunpack.c.h.b16 %v495
        %v901 = vunpack.c.l.b16 %v496
        %v902 = vunpack.c.h.b16 %v496
        %v903 = vpack.c.b16 %v651, %v647
        %v904 = vpack.c.b16 %v652, %v648
        %v905 = vpack.c.b16 %v653, %v649
        %v906 = vpack.c.b16 %v654, %v650
        %v907 = vpack.c.b16 %v659, %v655
        %v908 = vpack.c.b16 %v660, %v656
        %v909 = vpack.c.b16 %v661, %v657
        %v910 = vpack.c.b16 %v662, %v658
        %v911 = vpack.c.b16 %v667, %v663
        %v912 = vpack.c.b16 %v668, %v664
        %v913 = vpack.c.b16 %v669, %v665
        %v914 = vpack.c.b16 %v670, %v666
        %v915 = vpack.c.b16 %v675, %v671
        %v916 = vpack.c.b16 %v676, %v672
        %v917 = vpack.c.b16 %v677, %v673
        %v918 = vpack.c.b16 %v678, %v674
        %v919 = vpack.c.b16 %v683, %v679
        %v920 = vpack.c.b16 %v684, %v680
        %v921 = vpack.c.b16 %v685, %v681
        %v922 = vpack.c.b16 %v686, %v682
        %v923 = vpack.c.b16 %v691, %v687
        %v924 = vpack.c.b16 %v692, %v688
        %v925 = vpack.c.b16 %v693, %v689
        %v926 = vpack.c.b16 %v694, %v690
        %v927 = vpack.c.b16 %v699, %v695
        %v928 = vpack.c.b16 %v700, %v696
        %v929 = vpack.c.b16 %v701, %v697
        %v930 = vpack.c.b16 %v702, %v698
        %v931 = vpack.c.b16 %v707, %v703
        %v932 = vpack.c.b16 %v708, %v704
        %v933 = vpack.c.b16 %v709, %v705
        %v934 = vpack.c.b16 %v710, %v706
        %v935 = vpack.c.b16 %v715, %v711
        %v936 = vpack.c.b16 %v716, %v712
        %v937 = vpack.c.b16 %v717, %v713
        %v938 = vpack.c.b16 %v718, %v714
        %v939 = vpack.c.b16 %v723, %v719
        %v940 = vpack.c.b16 %v724, %v720
        %v941 = vpack.c.b16 %v725, %v721
        %v942 = vpack.c.b16 %v726, %v722
        %v943 = vpack.c.b16 %v731, %v727
        %v944 = vpack.c.b16 %v732, %v728
        %v945 = vpack.c.b16 %v733, %v729
        %v946 = vpack.c.b16 %v734, %v730
        %v947 = vpack.c.b16 %v739, %v735
        %v948 = vpack.c.b16 %v740, %v736
        %v949 = vpack.c.b16 %v741, %v737
        %v950 = vpack.c.b16 %v742, %v738
        %v951 = vpack.c.b16 %v747, %v743
        %v952 = vpack.c.b16 %v748, %v744
        %v953 = vpack.c.b16 %v749, %v745
        %v954 = vpack.c.b16 %v750, %v746
        %v955 = vpack.c.b16 %v755, %v751
        %v956 = vpack.c.b16 %v756, %v752
        %v957 = vpack.c.b16 %v757, %v753
        %v958 = vpack.c.b16 %v758, %v754
        %v959 = vpack.c.b16 %v763, %v759
        %v960 = vpack.c.b16 %v764, %v760
        %v961 = vpack.c.b16 %v765, %v761
        %v962 = vpack.c.b16 %v766, %v762
        %v963 = vpack.c.b16 %v771, %v767
        %v964 = vpack.c.b16 %v772, %v768
        %v965 = vpack.c.b16 %v773, %v769
        %v966 = vpack.c.b16 %v774, %v770
        %v967 = vpack.c.b16 %v779, %v775
        %v968 = vpack.c.b16 %v780, %v776
        %v969 = vpack.c.b16 %v781, %v777
        %v970 = vpack.c.b16 %v782, %v778
        %v971 = vpack.c.b16 %v787, %v783
        %v972 = vpack.c.b16 %v788, %v784
        %v973 = vpack.c.b16 %v789, %v785
        %v974 = vpack.c.b16 %v790, %v786
        %v975 = vpack.c.b16 %v795, %v791
        %v976 = vpack.c.b16 %v796, %v792
        %v977 = vpack.c.b16 %v797, %v793
        %v978 = vpack.c.b16 %v798, %v794
        %v979 = vpack.c.b16 %v803, %v799
        %v980 = vpack.c.b16 %v804, %v800
        %v981 = vpack.c.b16 %v805, %v801
        %v982 = vpack.c.b16 %v806, %v802
        %v983 = vpack.c.b16 %v811, %v807
        %v984 = vpack.c.b16 %v812, %v808
        %v985 = vpack.c.b16 %v813, %v809
        %v986 = vpack.c.b16 %v814, %v810
        %v987 = vpack.c.b16 %v819, %v815
        %v988 = vpack.c.b16 %v820, %v816
        %v989 = vpack.c.b16 %v821, %v817
        %v990 = vpack.c.b16 %v822, %v818
        %v991 = vpack.c.b16 %v827, %v823
        %v992 = vpack.c.b16 %v828, %v824
        %v993 = vpack.c.b16 %v829, %v825
        %v994 = vpack.c.b16 %v830, %v826
        %v995 = vpack.c.b16 %v835, %v831
        %v996 = vpack.c.b16 %v836, %v832
        %v997 = vpack.c.b16 %v837, %v833
        %v998 = vpack.c.b16 %v838, %v834
        %v999 = vpack.c.b16 %v843, %v839
        %v1000 = vpack.c.b16 %v844, %v840
        %v1001 = vpack.c.b16 %v845, %v841
        %v1002 = vpack.c.b16 %v846, %v842
        %v1003 = vpack.c.b16 %v851, %v847
        %v1004 = vpack.c.b16 %v852, %v848
        %v1005 = vpack.c.b16 %v853, %v849
        %v1006 = vpack.c.b16 %v854, %v850
        %v1007 = vpack.c.b16 %v859, %v855
        %v1008 = vpack.c.b16 %v860, %v856
        %v1009 = vpack.c.b16 %v861, %v857
        %v1010 = vpack.c.b16 %v862, %v858
        %v1011 = vpack.c.b16 %v867, %v863
        %v1012 = vpack.c.b16 %v868, %v864
        %v1013 = vpack.c.b16 %v869, %v865
        %v1014 = vpack.c.b16 %v870, %v866
        %v1015 = vpack.c.b16 %v875, %v871
        %v1016 = vpack.c.b16 %v876, %v872
        %v1017 = vpack.c.b16 %v877, %v873
        %v1018 = vpack.c.b16 %v878, %v874
        %v1019 = vpack.c.b16 %v883, %v879
        %v1020 = vpack.c.b16 %v884, %v880
        %v1021 = vpack.c.b16 %v885, %v881
        %v1022 = vpack.c.b16 %v886, %v882
        %v1023 = vpack.c.b16 %v891, %v887
        %v1024 = vpack.c.b16 %v892, %v888
        %v1025 = vpack.c.b16 %v893, %v889
        %v1026 = vpack.c.b16 %v894, %v890
        %v1027 = vpack.c.b16 %v899, %v895
        %v1028 = vpack.c.b16 %v900, %v896
        %v1029 = vpack.c.b16 %v901, %v897
        %v1030 = vpack.c.b16 %v902, %v898
        %1159 = vmatprep.subr.bf16.mxu0 %v904
        %1160 = vmatpush1.bf16.msra.mxu0 %v903
        %1161 = vmatprep.subr.bf16.mxu0 %v908
        %1162 = vmatpush1.bf16.msra.mxu0 %v907
        %1163 = vmatprep.subr.bf16.mxu0 %v912
        %1164 = vmatpush1.bf16.msra.mxu0 %v911
        %1165 = vmatprep.subr.bf16.mxu0 %v916
        %1166 = vmatpush1.bf16.msra.mxu0 %v915
        %1167 = vmatprep.subr.bf16.mxu0 %v920
        %1168 = vmatpush1.bf16.msra.mxu0 %v919
        %1169 = vmatprep.subr.bf16.mxu0 %v924
        %1170 = vmatpush1.bf16.msra.mxu0 %v923
        %1171 = vmatprep.subr.bf16.mxu0 %v928
        %1172 = vmatpush1.bf16.msra.mxu0 %v927
        %1173 = vmatprep.subr.bf16.mxu0 %v932
        %1174 = vmatpush1.bf16.msra.mxu0 %v931
        %1175 = vmatprep.subr.bf16.mxu0 %v936
        %1176 = vmatpush1.bf16.msra.mxu0 %v935
        %1177 = vmatprep.subr.bf16.mxu0 %v940
        %1178 = vmatpush1.bf16.msra.mxu0 %v939
        %1179 = vmatprep.subr.bf16.mxu0 %v944
        %1180 = vmatpush1.bf16.msra.mxu0 %v943
        %1181 = vmatprep.subr.bf16.mxu0 %v948
        %1182 = vmatpush1.bf16.msra.mxu0 %v947
        %1183 = vmatprep.subr.bf16.mxu0 %v952
        %1184 = vmatpush1.bf16.msra.mxu0 %v951
        %1185 = vmatprep.subr.bf16.mxu0 %v956
        %1186 = vmatpush1.bf16.msra.mxu0 %v955
        %1187 = vmatprep.subr.bf16.mxu0 %v960
        %1188 = vmatpush1.bf16.msra.mxu0 %v959
        %1189 = vmatprep.subr.bf16.mxu0 %v964
        %1190 = vmatpush1.bf16.msra.mxu0 %v963
        %1191 = vmatprep.mubr.bf16.mxu0 %v362
        %1192 = vmatmul.mubr.bf16.gmra.mrb[0].mxu0 %v361
        %v1193 = vpop.f32.mrb[0].mxu0
        %v1194 = vadd.f32 %v502, %v1193
        %v1195 = vpop.f32.mrb[0].mxu0
        %v1196 = vadd.f32 %v506, %v1195
        %v1197 = vpop.f32.mrb[0].mxu0
        %v1198 = vadd.f32 %v502, %v1197
        %v1199 = vpop.f32.mrb[0].mxu0
        %v1200 = vadd.f32 %v506, %v1199
        %1201 = vmatprep.mubr.bf16.mxu0 %v366
        %1202 = vmatmul.mubr.bf16.gmra.mrb[0].mxu0 %v365
        %v1203 = vpop.f32.mrb[0].mxu0
        %v1204 = vadd.f32 %v502, %v1203
        %v1205 = vpop.f32.mrb[0].mxu0
        %v1206 = vadd.f32 %v506, %v1205
        %v1207 = vpop.f32.mrb[0].mxu0
        %v1208 = vadd.f32 %v502, %v1207
        %v1209 = vpop.f32.mrb[0].mxu0
        %v1210 = vadd.f32 %v506, %v1209
        %1211 = vdwg.mxu0
        %1212 = vmatprep.subr.bf16.mxu0 %v968
        %1213 = vmatpush1.bf16.msra.mxu0 %v967
        %1214 = vmatprep.subr.bf16.mxu0 %v972
        %1215 = vmatpush1.bf16.msra.mxu0 %v971
        %1216 = vmatprep.subr.bf16.mxu0 %v976
        %1217 = vmatpush1.bf16.msra.mxu0 %v975
        %1218 = vmatprep.subr.bf16.mxu0 %v980
        %1219 = vmatpush1.bf16.msra.mxu0 %v979
        %1220 = vmatprep.subr.bf16.mxu0 %v984
        %1221 = vmatpush1.bf16.msra.mxu0 %v983
        %1222 = vmatprep.subr.bf16.mxu0 %v988
        %1223 = vmatpush1.bf16.msra.mxu0 %v987
        %1224 = vmatprep.subr.bf16.mxu0 %v992
        %1225 = vmatpush1.bf16.msra.mxu0 %v991
        %1226 = vmatprep.subr.bf16.mxu0 %v996
        %1227 = vmatpush1.bf16.msra.mxu0 %v995
        %1228 = vmatprep.subr.bf16.mxu0 %v1000
        %1229 = vmatpush1.bf16.msra.mxu0 %v999
        %1230 = vmatprep.subr.bf16.mxu0 %v1004
        %1231 = vmatpush1.bf16.msra.mxu0 %v1003
        %1232 = vmatprep.subr.bf16.mxu0 %v1008
        %1233 = vmatpush1.bf16.msra.mxu0 %v1007
        %1234 = vmatprep.subr.bf16.mxu0 %v1012
        %1235 = vmatpush1.bf16.msra.mxu0 %v1011
        %1236 = vmatprep.subr.bf16.mxu0 %v1016
        %1237 = vmatpush1.bf16.msra.mxu0 %v1015
        %1238 = vmatprep.subr.bf16.mxu0 %v1020
        %1239 = vmatpush1.bf16.msra.mxu0 %v1019
        %1240 = vmatprep.subr.bf16.mxu0 %v1024
        %1241 = vmatpush1.bf16.msra.mxu0 %v1023
        %1242 = vmatprep.subr.bf16.mxu0 %v1028
        %1243 = vmatpush1.bf16.msra.mxu0 %v1027
        %1244 = vmatprep.mubr.bf16.mxu0 %v364
        %1245 = vmatmul.mubr.bf16.gmra.mrb[0].mxu0 %v363
        %v1246 = vpop.f32.mrb[0].mxu0
        %v1247 = vadd.f32 %v1194, %v1246
        %v1248 = vpop.f32.mrb[0].mxu0
        %v1249 = vadd.f32 %v1196, %v1248
        %v1250 = vpop.f32.mrb[0].mxu0
        %v1251 = vadd.f32 %v1198, %v1250
        %v1252 = vpop.f32.mrb[0].mxu0
        %v1253 = vadd.f32 %v1200, %v1252
        %1254 = vmatprep.mubr.bf16.mxu0 %v368
        %1255 = vmatmul.mubr.bf16.gmra.mrb[0].mxu0 %v367
        %v1256 = vpop.f32.mrb[0].mxu0
        %v1257 = vadd.f32 %v1204, %v1256
        %v1258 = vpop.f32.mrb[0].mxu0
        %v1259 = vadd.f32 %v1206, %v1258
        %v1260 = vpop.f32.mrb[0].mxu0
        %v1261 = vadd.f32 %v1208, %v1260
        %v1262 = vpop.f32.mrb[0].mxu0
        %v1263 = vadd.f32 %v1210, %v1262
        %1264 = vdwg.mxu0
        %1265 = vmatprep.subr.bf16.mxu0 %v906
        %1266 = vmatpush1.bf16.msra.mxu0 %v905
        %1267 = vmatprep.subr.bf16.mxu0 %v910
        %1268 = vmatpush1.bf16.msra.mxu0 %v909
        %1269 = vmatprep.subr.bf16.mxu0 %v914
        %1270 = vmatpush1.bf16.msra.mxu0 %v913
        %1271 = vmatprep.subr.bf16.mxu0 %v918
        %1272 = vmatpush1.bf16.msra.mxu0 %v917
        %1273 = vmatprep.subr.bf16.mxu0 %v922
        %1274 = vmatpush1.bf16.msra.mxu0 %v921
        %1275 = vmatprep.subr.bf16.mxu0 %v926
        %1276 = vmatpush1.bf16.msra.mxu0 %v925
        %1277 = vmatprep.subr.bf16.mxu0 %v930
        %1278 = vmatpush1.bf16.msra.mxu0 %v929
        %1279 = vmatprep.subr.bf16.mxu0 %v934
        %1280 = vmatpush1.bf16.msra.mxu0 %v933
        %1281 = vmatprep.subr.bf16.mxu0 %v938
        %1282 = vmatpush1.bf16.msra.mxu0 %v937
        %1283 = vmatprep.subr.bf16.mxu0 %v942
        %1284 = vmatpush1.bf16.msra.mxu0 %v941
        %1285 = vmatprep.subr.bf16.mxu0 %v946
        %1286 = vmatpush1.bf16.msra.mxu0 %v945
        %1287 = vmatprep.subr.bf16.mxu0 %v950
        %1288 = vmatpush1.bf16.msra.mxu0 %v949
        %1289 = vmatprep.subr.bf16.mxu0 %v954
        %1290 = vmatpush1.bf16.msra.mxu0 %v953
        %1291 = vmatprep.subr.bf16.mxu0 %v958
        %1292 = vmatpush1.bf16.msra.mxu0 %v957
        %1293 = vmatprep.subr.bf16.mxu0 %v962
        %1294 = vmatpush1.bf16.msra.mxu0 %v961
        %1295 = vmatprep.subr.bf16.mxu0 %v966
        %1296 = vmatpush1.bf16.msra.mxu0 %v965
        %1297 = vmatprep.mubr.bf16.mxu0 %v362
        %1298 = vmatmul.mubr.bf16.gmra.mrb[0].mxu0 %v361
        %v1299 = vpop.f32.mrb[0].mxu0
        %v1300 = vadd.f32 %v510, %v1299
        %v1301 = vpop.f32.mrb[0].mxu0
        %v1302 = vadd.f32 %v514, %v1301
        %v1303 = vpop.f32.mrb[0].mxu0
        %v1304 = vadd.f32 %v510, %v1303
        %v1305 = vpop.f32.mrb[0].mxu0
        %v1306 = vadd.f32 %v514, %v1305
        %1307 = vmatprep.mubr.bf16.mxu0 %v366
        %1308 = vmatmul.mubr.bf16.gmra.mrb[0].mxu0 %v365
        %v1309 = vpop.f32.mrb[0].mxu0
        %v1310 = vadd.f32 %v510, %v1309
        %v1311 = vpop.f32.mrb[0].mxu0
        %v1312 = vadd.f32 %v514, %v1311
        %v1313 = vpop.f32.mrb[0].mxu0
        %v1314 = vadd.f32 %v510, %v1313
        %v1315 = vpop.f32.mrb[0].mxu0
        %v1316 = vadd.f32 %v514, %v1315
        %1317 = vdwg.mxu0
        %1318 = vmatprep.subr.bf16.mxu0 %v970
        %1319 = vmatpush1.bf16.msra.mxu0 %v969
        %1320 = vmatprep.subr.bf16.mxu0 %v974
        %1321 = vmatpush1.bf16.msra.mxu0 %v973
        %1322 = vmatprep.subr.bf16.mxu0 %v978
        %1323 = vmatpush1.bf16.msra.mxu0 %v977
        %1324 = vmatprep.subr.bf16.mxu0 %v982
        %1325 = vmatpush1.bf16.msra.mxu0 %v981
        %1326 = vmatprep.subr.bf16.mxu0 %v986
        %1327 = vmatpush1.bf16.msra.mxu0 %v985
        %1328 = vmatprep.subr.bf16.mxu0 %v990
        %1329 = vmatpush1.bf16.msra.mxu0 %v989
        %1330 = vmatprep.subr.bf16.mxu0 %v994
        %1331 = vmatpush1.bf16.msra.mxu0 %v993
        %1332 = vmatprep.subr.bf16.mxu0 %v998
        %1333 = vmatpush1.bf16.msra.mxu0 %v997
        %1334 = vmatprep.subr.bf16.mxu0 %v1002
        %1335 = vmatpush1.bf16.msra.mxu0 %v1001
        %1336 = vmatprep.subr.bf16.mxu0 %v1006
        %1337 = vmatpush1.bf16.msra.mxu0 %v1005
        %1338 = vmatprep.subr.bf16.mxu0 %v1010
        %1339 = vmatpush1.bf16.msra.mxu0 %v1009
        %1340 = vmatprep.subr.bf16.mxu0 %v1014
        %1341 = vmatpush1.bf16.msra.mxu0 %v1013
        %1342 = vmatprep.subr.bf16.mxu0 %v1018
        %1343 = vmatpush1.bf16.msra.mxu0 %v1017
        %1344 = vmatprep.subr.bf16.mxu0 %v1022
        %1345 = vmatpush1.bf16.msra.mxu0 %v1021
        %1346 = vmatprep.subr.bf16.mxu0 %v1026
        %1347 = vmatpush1.bf16.msra.mxu0 %v1025
        %1348 = vmatprep.subr.bf16.mxu0 %v1030
        %1349 = vmatpush1.bf16.msra.mxu0 %v1029
        %1350 = vmatprep.mubr.bf16.mxu0 %v364
        %1351 = vmatmul.mubr.bf16.gmra.mrb[0].mxu0 %v363
        %v1352 = vpop.f32.mrb[0].mxu0
        %v1353 = vadd.f32 %v1300, %v1352
        %v1354 = vpop.f32.mrb[0].mxu0
        %v1355 = vadd.f32 %v1302, %v1354
        %v1356 = vpop.f32.mrb[0].mxu0
        %v1357 = vadd.f32 %v1304, %v1356
        %v1358 = vpop.f32.mrb[0].mxu0
        %v1359 = vadd.f32 %v1306, %v1358
        %1360 = vmatprep.mubr.bf16.mxu0 %v368
        %1361 = vmatmul.mubr.bf16.gmra.mrb[0].mxu0 %v367
        %v1362 = vpop.f32.mrb[0].mxu0
        %v1363 = vadd.f32 %v1310, %v1362
        %v1364 = vpop.f32.mrb[0].mxu0
        %v1365 = vadd.f32 %v1312, %v1364
        %v1366 = vpop.f32.mrb[0].mxu0
        %v1367 = vadd.f32 %v1314, %v1366
        %v1368 = vpop.f32.mrb[0].mxu0
        %v1369 = vadd.f32 %v1316, %v1368
        %1370 = vdwg.mxu0
        %v1371 = vmax.f32 %v1247, 0.0
        %v1372 = vmax.f32 %v1249, 0.0
        %v1373 = vmax.f32 %v1353, 0.0
        %v1374 = vmax.f32 %v1355, 0.0
        %v1375 = vmax.f32 %v1251, 0.0
        %v1376 = vmax.f32 %v1253, 0.0
        %v1377 = vmax.f32 %v1357, 0.0
        %v1378 = vmax.f32 %v1359, 0.0
        %v1379 = vmax.f32 %v1257, 0.0
        %v1380 = vmax.f32 %v1259, 0.0
        %v1381 = vmax.f32 %v1363, 0.0
        %v1382 = vmax.f32 %v1365, 0.0
        %v1383 = vmax.f32 %v1261, 0.0
        %v1384 = vmax.f32 %v1263, 0.0
        %v1385 = vmax.f32 %v1367, 0.0
        %v1386 = vmax.f32 %v1369, 0.0
        %v1387 = vld [vmem:[%s4] sm:$0x7]
        %v1388 = vlaneseq
        %v1389 = vshrl.u32 %v1388, 7
        %v1390 = vadd.s32 %v1389, 8
        %v1391 = vadd.s32 %v1389, 16
        %v1392 = vadd.s32 %v1389, 24
        %vm1393 = vcmp.lt.s32.totalorder %v1389, 0
        %v1394 = vsub.s32 0, %v1389
        %v1395 = vsel %vm1393, %v1394, %v1389
        %v1396 = vshrl.u32 %v1395, 4
        %v1397 = vand.u32 %v1395, 15
        %v1398 = vsub.s32 0, %v1397
        %v1399 = vsel %vm1393, %v1398, %v1397
        %vm1400 = vcmp.lt.s32.totalorder %v1390, 0
        %v1401 = vsub.s32 0, %v1390
        %v1402 = vsel %vm1400, %v1401, %v1390
        %v1403 = vshrl.u32 %v1402, 4
        %v1404 = vand.u32 %v1402, 15
        %v1405 = vsub.s32 0, %v1404
        %v1406 = vsel %vm1400, %v1405, %v1404
        %vm1407 = vcmp.lt.s32.totalorder %v1391, 0
        %v1408 = vsub.s32 0, %v1391
        %v1409 = vsel %vm1407, %v1408, %v1391
        %v1410 = vshrl.u32 %v1409, 4
        %v1411 = vand.u32 %v1409, 15
        %v1412 = vsub.s32 0, %v1411
        %v1413 = vsel %vm1407, %v1412, %v1411
        %vm1414 = vcmp.lt.s32.totalorder %v1392, 0
        %v1415 = vsub.s32 0, %v1392
        %v1416 = vsel %vm1414, %v1415, %v1392
        %v1417 = vshrl.u32 %v1416, 4
        %v1418 = vand.u32 %v1416, 15
        %v1419 = vsub.s32 0, %v1418
        %v1420 = vsel %vm1414, %v1419, %v1418
        %vm1421 = vcmp.ne.s32.totalorder %v1399, 0
        %vm1422 = vcmp.ne.s32.totalorder %v1406, 0
        %vm1423 = vcmp.ne.s32.totalorder %v1413, 0
        %vm1424 = vcmp.ne.s32.totalorder %v1420, 0
        %vm1425 = vcmp.lt.s32.totalorder %v1399, 0
        %vm1426 = vcmp.lt.s32.totalorder %v1406, 0
        %vm1427 = vcmp.lt.s32.totalorder %v1413, 0
        %vm1428 = vcmp.lt.s32.totalorder %v1420, 0
        %vm1429 = vmand %vm1425, %vm1421
        %vm1430 = vmand %vm1426, %vm1422
        %vm1431 = vmand %vm1427, %vm1423
        %vm1432 = vmand %vm1428, %vm1424
        %v1433 = vadd.s32 %v1399, 16
        %v1434 = vadd.s32 %v1406, 16
        %v1435 = vadd.s32 %v1413, 16
        %v1436 = vadd.s32 %v1420, 16
        %v1437 = vsel %vm1429, %v1433, %v1399
        %v1438 = vsel %vm1430, %v1434, %v1406
        %v1439 = vsel %vm1431, %v1435, %v1413
        %v1440 = vsel %vm1432, %v1436, %v1420
        %vm1441 = vcmp.eq.s32.totalorder %v1437, 0
        %vm1442 = vcmp.eq.s32.totalorder %v1438, 0
        %vm1443 = vcmp.eq.s32.totalorder %v1439, 0
        %vm1444 = vcmp.eq.s32.totalorder %v1440, 0
        %vm1445 = vcmp.eq.s32.totalorder %v1437, 15
        %vm1446 = vcmp.eq.s32.totalorder %v1438, 15
        %vm1447 = vcmp.eq.s32.totalorder %v1439, 15
        %vm1448 = vcmp.eq.s32.totalorder %v1440, 15
        %v1449 = vrot.slane %v1371, 7
        %v1450 = vrot.slane %v1375, 7
        %v1451 = vrot.slane %v1379, 7
        %v1452 = vrot.slane %v1383, 7
        %vm1453 = vcmp.lt.s32.totalorder %v1389, 1
        %v1454 = vsel %vm1453, %v1451, %v1452
        %v1455 = vsel %vm1453, %v1450, %v1451
        %v1456 = vsel %vm1453, %v1449, %v1450
        %v1457 = vsel %vm1453, %v1452, %v1449
        %v1458 = vsel %vm1441, 0.0, %v1457
        %v1459 = vsel %vm1442, 0.0, %v1456
        %v1460 = vsel %vm1443, 0.0, %v1455
        %v1461 = vsel %vm1444, 0.0, %v1454
        %v1462 = vrot.slane %v1371, 1
        %v1463 = vrot.slane %v1375, 1
        %v1464 = vrot.slane %v1379, 1
        %v1465 = vrot.slane %v1383, 1
        %vm1466 = vcmp.lt.s32.totalorder %v1389, 7
        %v1467 = vsel %vm1466, %v1464, %v1465
        %v1468 = vsel %vm1466, %v1463, %v1464
        %v1469 = vsel %vm1466, %v1462, %v1463
        %v1470 = vsel %vm1466, %v1465, %v1462
        %v1471 = vsel %vm1445, 0.0, %v1469
        %v1472 = vsel %vm1446, 0.0, %v1468
        %v1473 = vsel %vm1447, 0.0, %v1467
        %v1474 = vsel %vm1448, 0.0, %v1470
        %v1475 = vpack.c.bf16 %v1459, %v1458
        %v1476 = vpack.c.bf16 %v1461, %v1460
        %v1477 = vld [vmem:[#allocation7] sm:$0xf]
        %v1478 = vld [vmem:[#allocation7 + $0x4] sm:$0xf]
        %v1479 = vld [vmem:[#allocation7 + $0x8] sm:$0xf]
        %v1480 = vld [vmem:[#allocation7 + $0xc] sm:$0xf]
        %v1481 = vld [vmem:[#allocation7 + $0x10] sm:$0xf]
        %v1482 = vld [vmem:[#allocation7 + $0x14] sm:$0xf]
        %v1483 = vld [vmem:[#allocation7 + $0x18] sm:$0xf]
        %v1484 = vld [vmem:[#allocation7 + $0x1c] sm:$0xf]
        %v1485 = vld [vmem:[#allocation7 + $0x20] sm:$0xf]
        %v1486 = vld [vmem:[#allocation7 + $0x24] sm:$0xf]
        %v1487 = vld [vmem:[#allocation7 + $0x28] sm:$0xf]
        %v1488 = vld [vmem:[#allocation7 + $0x2c] sm:$0xf]
        %v1489 = vld [vmem:[#allocation7 + $0x30] sm:$0xf]
        %v1490 = vld [vmem:[#allocation7 + $0x34] sm:$0xf]
        %v1491 = vld [vmem:[#allocation7 + $0x38] sm:$0xf]
        %v1492 = vld [vmem:[#allocation7 + $0x3c] sm:$0xf]
        %v1493 = vpack.c.bf16 %v1375, %v1371
        %v1494 = vpack.c.bf16 %v1383, %v1379
        %s1495 = scalar_lea.vmem [#allocation7], 64
        %v1496 = vld [vmem:[%s1495] sm:$0xf]
        %v1497 = vld [vmem:[%s1495 + $0x4] sm:$0xf]
        %v1498 = vld [vmem:[%s1495 + $0x8] sm:$0xf]
        %v1499 = vld [vmem:[%s1495 + $0xc] sm:$0xf]
        %v1500 = vld [vmem:[%s1495 + $0x10] sm:$0xf]
        %v1501 = vld [vmem:[%s1495 + $0x14] sm:$0xf]
        %v1502 = vld [vmem:[%s1495 + $0x18] sm:$0xf]
        %v1503 = vld [vmem:[%s1495 + $0x1c] sm:$0xf]
        %v1504 = vld [vmem:[%s1495 + $0x20] sm:$0xf]
        %v1505 = vld [vmem:[%s1495 + $0x24] sm:$0xf]
        %v1506 = vld [vmem:[%s1495 + $0x28] sm:$0xf]
        %v1507 = vld [vmem:[%s1495 + $0x2c] sm:$0xf]
        %v1508 = vld [vmem:[%s1495 + $0x30] sm:$0xf]
        %v1509 = vld [vmem:[%s1495 + $0x34] sm:$0xf]
        %v1510 = vld [vmem:[%s1495 + $0x38] sm:$0xf]
        %v1511 = vld [vmem:[%s1495 + $0x3c] sm:$0xf]
        %v1528 = vunpack.c.l.b16 %v1496
        %v1529 = vunpack.c.l.b16 %v1497
        %v1530 = vunpack.c.l.b16 %v1498
        %v1531 = vunpack.c.l.b16 %v1499
        %v1532 = vunpack.c.l.b16 %v1500
        %v1533 = vunpack.c.l.b16 %v1501
        %v1534 = vunpack.c.l.b16 %v1502
        %v1535 = vunpack.c.l.b16 %v1503
        %v1536 = vunpack.c.l.b16 %v1504
        %v1537 = vunpack.c.l.b16 %v1505
        %v1538 = vunpack.c.l.b16 %v1506
        %v1539 = vunpack.c.l.b16 %v1507
        %v1540 = vunpack.c.l.b16 %v1508
        %v1541 = vunpack.c.l.b16 %v1509
        %v1542 = vunpack.c.l.b16 %v1510
        %v1543 = vunpack.c.l.b16 %v1511
        %v1544 = vpack.c.b16 %v1529, %v1528
        %v1545 = vpack.c.b16 %v1531, %v1530
        %v1546 = vpack.c.b16 %v1533, %v1532
        %v1547 = vpack.c.b16 %v1535, %v1534
        %v1548 = vpack.c.b16 %v1537, %v1536
        %v1549 = vpack.c.b16 %v1539, %v1538
        %v1550 = vpack.c.b16 %v1541, %v1540
        %v1551 = vpack.c.b16 %v1543, %v1542
        %1560 = vmatprep.subr.bf16.mxu0 0
        %1561 = vmatpush1.bf16.msra.mxu0 %v1544
        %1562 = vmatprep.subr.bf16.mxu0 0
        %1563 = vmatpush1.bf16.msra.mxu0 %v1545
        %1564 = vmatprep.subr.bf16.mxu0 0
        %1565 = vmatpush1.bf16.msra.mxu0 %v1546
        %1566 = vmatprep.subr.bf16.mxu0 0
        %1567 = vmatpush1.bf16.msra.mxu0 %v1547
        %1568 = vmatprep.subr.bf16.mxu0 0
        %1569 = vmatpush1.bf16.msra.mxu0 %v1548
        %1570 = vmatprep.subr.bf16.mxu0 0
        %1571 = vmatpush1.bf16.msra.mxu0 %v1549
        %1572 = vmatprep.subr.bf16.mxu0 0
        %1573 = vmatpush1.bf16.msra.mxu0 %v1550
        %1574 = vmatprep.subr.bf16.mxu0 0
        %1575 = vmatpush1.bf16.msra.mxu0 %v1551
        %1576 = vmatprep.subr.bf16.mxu0 0
        %1577 = vmatpush1.bf16.msra.mxu0 0
        %1578 = vmatprep.subr.bf16.mxu0 0
        %1579 = vmatpush1.bf16.msra.mxu0 0
        %1580 = vmatprep.subr.bf16.mxu0 0
        %1581 = vmatpush1.bf16.msra.mxu0 0
        %1582 = vmatprep.subr.bf16.mxu0 0
        %1583 = vmatpush1.bf16.msra.mxu0 0
        %1584 = vmatprep.subr.bf16.mxu0 0
        %1585 = vmatpush1.bf16.msra.mxu0 0
        %1586 = vmatprep.subr.bf16.mxu0 0
        %1587 = vmatpush1.bf16.msra.mxu0 0
        %1588 = vmatprep.subr.bf16.mxu0 0
        %1589 = vmatpush1.bf16.msra.mxu0 0
        %1590 = vmatprep.subr.bf16.mxu0 0
        %1591 = vmatpush1.bf16.msra.mxu0 0
        %1592 = vmatprep.mubr.bf16.mxu0 0
        %1593 = vmatmul.mubr.bf16.gmra.mrb[0].mxu0 %v1493
        %v1594 = vpop.f32.mrb[0].mxu0
        %v1595 = vadd.f32 0.0, %v1594
        %v1596 = vpop.f32.mrb[0].mxu0
        %v1597 = vpop.f32.mrb[0].mxu0
        %v1598 = vadd.f32 0.0, %v1597
        %v1599 = vpop.f32.mrb[0].mxu0
        %1600 = vmatprep.mubr.bf16.mxu0 0
        %1601 = vmatmul.mubr.bf16.gmra.mrb[0].mxu0 %v1494
        %v1602 = vpop.f32.mrb[0].mxu0
        %v1603 = vadd.f32 0.0, %v1602
        %v1604 = vpop.f32.mrb[0].mxu0
        %v1605 = vpop.f32.mrb[0].mxu0
        %v1606 = vadd.f32 0.0, %v1605
        %v1607 = vpop.f32.mrb[0].mxu0
        %1608 = vdwg.mxu0
        %v1625 = vunpack.c.l.b16 %v1477
        %v1626 = vunpack.c.l.b16 %v1478
        %v1627 = vunpack.c.l.b16 %v1479
        %v1628 = vunpack.c.l.b16 %v1480
        %v1629 = vunpack.c.l.b16 %v1481
        %v1630 = vunpack.c.l.b16 %v1482
        %v1631 = vunpack.c.l.b16 %v1483
        %v1632 = vunpack.c.l.b16 %v1484
        %v1633 = vunpack.c.l.b16 %v1485
        %v1634 = vunpack.c.l.b16 %v1486
        %v1635 = vunpack.c.l.b16 %v1487
        %v1636 = vunpack.c.l.b16 %v1488
        %v1637 = vunpack.c.l.b16 %v1489
        %v1638 = vunpack.c.l.b16 %v1490
        %v1639 = vunpack.c.l.b16 %v1491
        %v1640 = vunpack.c.l.b16 %v1492
        %v1641 = vpack.c.b16 %v1626, %v1625
        %v1642 = vpack.c.b16 %v1628, %v1627
        %v1643 = vpack.c.b16 %v1630, %v1629
        %v1644 = vpack.c.b16 %v1632, %v1631
        %v1645 = vpack.c.b16 %v1634, %v1633
        %v1646 = vpack.c.b16 %v1636, %v1635
        %v1647 = vpack.c.b16 %v1638, %v1637
        %v1648 = vpack.c.b16 %v1640, %v1639
        %1657 = vmatprep.subr.bf16.mxu0 0
        %1658 = vmatpush1.bf16.msra.mxu0 %v1641
        %1659 = vmatprep.subr.bf16.mxu0 0
        %1660 = vmatpush1.bf16.msra.mxu0 %v1642
        %1661 = vmatprep.subr.bf16.mxu0 0
        %1662 = vmatpush1.bf16.msra.mxu0 %v1643
        %1663 = vmatprep.subr.bf16.mxu0 0
        %1664 = vmatpush1.bf16.msra.mxu0 %v1644
        %1665 = vmatprep.subr.bf16.mxu0 0
        %1666 = vmatpush1.bf16.msra.mxu0 %v1645
        %1667 = vmatprep.subr.bf16.mxu0 0
        %1668 = vmatpush1.bf16.msra.mxu0 %v1646
        %1669 = vmatprep.subr.bf16.mxu0 0
        %1670 = vmatpush1.bf16.msra.mxu0 %v1647
        %1671 = vmatprep.subr.bf16.mxu0 0
        %1672 = vmatpush1.bf16.msra.mxu0 %v1648
        %1673 = vmatprep.subr.bf16.mxu0 0
        %1674 = vmatpush1.bf16.msra.mxu0 0
        %1675 = vmatprep.subr.bf16.mxu0 0
        %1676 = vmatpush1.bf16.msra.mxu0 0
        %1677 = vmatprep.subr.bf16.mxu0 0
        %1678 = vmatpush1.bf16.msra.mxu0 0
        %1679 = vmatprep.subr.bf16.mxu0 0
        %1680 = vmatpush1.bf16.msra.mxu0 0
        %1681 = vmatprep.subr.bf16.mxu0 0
        %1682 = vmatpush1.bf16.msra.mxu0 0
        %1683 = vmatprep.subr.bf16.mxu0 0
        %1684 = vmatpush1.bf16.msra.mxu0 0
        %1685 = vmatprep.subr.bf16.mxu0 0
        %1686 = vmatpush1.bf16.msra.mxu0 0
        %1687 = vmatprep.subr.bf16.mxu0 0
        %1688 = vmatpush1.bf16.msra.mxu0 0
        %1689 = vmatprep.mubr.bf16.mxu0 0
        %1690 = vmatmul.mubr.bf16.gmra.mrb[0].mxu0 %v1475
        %v1691 = vpop.f32.mrb[0].mxu0
        %v1692 = vadd.f32 %v1595, %v1691
        %v1693 = vpop.f32.mrb[0].mxu0
        %v1694 = vpop.f32.mrb[0].mxu0
        %v1695 = vadd.f32 %v1598, %v1694
        %v1696 = vpop.f32.mrb[0].mxu0
        %1697 = vmatprep.mubr.bf16.mxu0 0
        %1698 = vmatmul.mubr.bf16.gmra.mrb[0].mxu0 %v1476
        %v1699 = vpop.f32.mrb[0].mxu0
        %v1700 = vadd.f32 %v1603, %v1699
        %v1701 = vpop.f32.mrb[0].mxu0
        %v1702 = vpop.f32.mrb[0].mxu0
        %v1703 = vadd.f32 %v1606, %v1702
        %v1704 = vpop.f32.mrb[0].mxu0
        %1705 = vdwg.mxu0
        %v1706 = vpack.c.bf16 %v1472, %v1471
        %v1707 = vpack.c.bf16 %v1474, %v1473
        %s1708 = scalar_lea.vmem [#allocation7], 128
        %v1709 = vld [vmem:[%s1708] sm:$0xf]
        %v1710 = vld [vmem:[%s1708 + $0x4] sm:$0xf]
        %v1711 = vld [vmem:[%s1708 + $0x8] sm:$0xf]
        %v1712 = vld [vmem:[%s1708 + $0xc] sm:$0xf]
        %v1713 = vld [vmem:[%s1708 + $0x10] sm:$0xf]
        %v1714 = vld [vmem:[%s1708 + $0x14] sm:$0xf]
        %v1715 = vld [vmem:[%s1708 + $0x18] sm:$0xf]
        %v1716 = vld [vmem:[%s1708 + $0x1c] sm:$0xf]
        %v1717 = vld [vmem:[%s1708 + $0x20] sm:$0xf]
        %v1718 = vld [vmem:[%s1708 + $0x24] sm:$0xf]
        %v1719 = vld [vmem:[%s1708 + $0x28] sm:$0xf]
        %v1720 = vld [vmem:[%s1708 + $0x2c] sm:$0xf]
        %v1721 = vld [vmem:[%s1708 + $0x30] sm:$0xf]
        %v1722 = vld [vmem:[%s1708 + $0x34] sm:$0xf]
        %v1723 = vld [vmem:[%s1708 + $0x38] sm:$0xf]
        %v1724 = vld [vmem:[%s1708 + $0x3c] sm:$0xf]
        %v1741 = vunpack.c.l.b16 %v1709
        %v1742 = vunpack.c.l.b16 %v1710
        %v1743 = vunpack.c.l.b16 %v1711
        %v1744 = vunpack.c.l.b16 %v1712
        %v1745 = vunpack.c.l.b16 %v1713
        %v1746 = vunpack.c.l.b16 %v1714
        %v1747 = vunpack.c.l.b16 %v1715
        %v1748 = vunpack.c.l.b16 %v1716
        %v1749 = vunpack.c.l.b16 %v1717
        %v1750 = vunpack.c.l.b16 %v1718
        %v1751 = vunpack.c.l.b16 %v1719
        %v1752 = vunpack.c.l.b16 %v1720
        %v1753 = vunpack.c.l.b16 %v1721
        %v1754 = vunpack.c.l.b16 %v1722
        %v1755 = vunpack.c.l.b16 %v1723
        %v1756 = vunpack.c.l.b16 %v1724
        %v1757 = vpack.c.b16 %v1742, %v1741
        %v1758 = vpack.c.b16 %v1744, %v1743
        %v1759 = vpack.c.b16 %v1746, %v1745
        %v1760 = vpack.c.b16 %v1748, %v1747
        %v1761 = vpack.c.b16 %v1750, %v1749
        %v1762 = vpack.c.b16 %v1752, %v1751
        %v1763 = vpack.c.b16 %v1754, %v1753
        %v1764 = vpack.c.b16 %v1756, %v1755
        %1773 = vmatprep.subr.bf16.mxu0 0
        %1774 = vmatpush1.bf16.msra.mxu0 %v1757
        %1775 = vmatprep.subr.bf16.mxu0 0
        %1776 = vmatpush1.bf16.msra.mxu0 %v1758
        %1777 = vmatprep.subr.bf16.mxu0 0
        %1778 = vmatpush1.bf16.msra.mxu0 %v1759
        %1779 = vmatprep.subr.bf16.mxu0 0
        %1780 = vmatpush1.bf16.msra.mxu0 %v1760
        %1781 = vmatprep.subr.bf16.mxu0 0
        %1782 = vmatpush1.bf16.msra.mxu0 %v1761
        %1783 = vmatprep.subr.bf16.mxu0 0
        %1784 = vmatpush1.bf16.msra.mxu0 %v1762
        %1785 = vmatprep.subr.bf16.mxu0 0
        %1786 = vmatpush1.bf16.msra.mxu0 %v1763
        %1787 = vmatprep.subr.bf16.mxu0 0
        %1788 = vmatpush1.bf16.msra.mxu0 %v1764
        %1789 = vmatprep.subr.bf16.mxu0 0
        %1790 = vmatpush1.bf16.msra.mxu0 0
        %1791 = vmatprep.subr.bf16.mxu0 0
        %1792 = vmatpush1.bf16.msra.mxu0 0
        %1793 = vmatprep.subr.bf16.mxu0 0
        %1794 = vmatpush1.bf16.msra.mxu0 0
        %1795 = vmatprep.subr.bf16.mxu0 0
        %1796 = vmatpush1.bf16.msra.mxu0 0
        %1797 = vmatprep.subr.bf16.mxu0 0
        %1798 = vmatpush1.bf16.msra.mxu0 0
        %1799 = vmatprep.subr.bf16.mxu0 0
        %1800 = vmatpush1.bf16.msra.mxu0 0
        %1801 = vmatprep.subr.bf16.mxu0 0
        %1802 = vmatpush1.bf16.msra.mxu0 0
        %1803 = vmatprep.subr.bf16.mxu0 0
        %1804 = vmatpush1.bf16.msra.mxu0 0
        %1805 = vmatprep.mubr.bf16.mxu0 0
        %1806 = vmatmul.mubr.bf16.gmra.mrb[0].mxu0 %v1706
        %v1807 = vpop.f32.mrb[0].mxu0
        %v1808 = vadd.f32 0.0, %v1807
        %v1809 = vpop.f32.mrb[0].mxu0
        %v1810 = vpop.f32.mrb[0].mxu0
        %v1811 = vadd.f32 0.0, %v1810
        %v1812 = vpop.f32.mrb[0].mxu0
        %1813 = vmatprep.mubr.bf16.mxu0 0
        %1814 = vmatmul.mubr.bf16.gmra.mrb[0].mxu0 %v1707
        %v1815 = vpop.f32.mrb[0].mxu0
        %v1816 = vadd.f32 0.0, %v1815
        %v1817 = vpop.f32.mrb[0].mxu0
        %v1818 = vpop.f32.mrb[0].mxu0
        %v1819 = vadd.f32 0.0, %v1818
        %v1820 = vpop.f32.mrb[0].mxu0
        %1821 = vdwg.mxu0
        %v1822 = vadd.f32 %v1692, %v1808
        %v1823 = vadd.f32 %v1695, %v1811
        %v1824 = vadd.f32 %v1700, %v1816
        %v1825 = vadd.f32 %v1703, %v1819
        %v1826 = vlaneseq
        %v1827 = vshrl.u32 %v1826, 7
        %v1828 = vsub.s32 0, %v1827
        %v1829 = vrot.slane %v1387, %v1828
        %v1830 = vadd.f32 %v1822, %v1829
        %v1831 = vadd.f32 %v1823, %v1829
        %v1832 = vadd.f32 %v1824, %v1829
        %v1833 = vadd.f32 %v1825, %v1829
        %v1834 = vmax.f32 %v1830, 0.0
        %v1835 = vmax.f32 %v1831, 0.0
        %v1836 = vmax.f32 %v1832, 0.0
        %v1837 = vmax.f32 %v1833, 0.0
        %v1838 = vpack.c.bf16 %v1835, %v1834
        %v1839 = vpack.c.bf16 %v1837, %v1836
        %v1840 = vld [vmem:[#allocation8] sm:$0xff]
        %v1841 = vld [vmem:[#allocation8 + $0x8] sm:$0xff]
        %v1842 = vld [vmem:[#allocation8 + $0x10] sm:$0xff]
        %v1843 = vld [vmem:[#allocation8 + $0x18] sm:$0xff]
        %v1844 = vld [vmem:[#allocation8 + $0x20] sm:$0xff]
        %v1845 = vld [vmem:[#allocation8 + $0x28] sm:$0xff]
        %v1846 = vld [vmem:[#allocation8 + $0x30] sm:$0xff]
        %v1847 = vld [vmem:[#allocation8 + $0x38] sm:$0xff]
        %v1848 = vld [vmem:[#allocation8 + $0x40] sm:$0xff]
        %v1849 = vld [vmem:[#allocation8 + $0x48] sm:$0xff]
        %v1850 = vld [vmem:[#allocation8 + $0x50] sm:$0xff]
        %v1851 = vld [vmem:[#allocation8 + $0x58] sm:$0xff]
        %v1852 = vld [vmem:[#allocation8 + $0x60] sm:$0xff]
        %v1853 = vld [vmem:[#allocation8 + $0x68] sm:$0xff]
        %v1854 = vld [vmem:[#allocation8 + $0x70] sm:$0xff]
        %v1855 = vld [vmem:[#allocation8 + $0x78] sm:$0xff]
        %v1856 = vld [vmem:[#allocation8 + $0x80] sm:$0xff]
        %v1857 = vld [vmem:[#allocation8 + $0x88] sm:$0xff]
        %v1858 = vld [vmem:[#allocation8 + $0x90] sm:$0xff]
        %v1859 = vld [vmem:[#allocation8 + $0x98] sm:$0xff]
        %v1860 = vld [vmem:[#allocation8 + $0xa0] sm:$0xff]
        %v1861 = vld [vmem:[#allocation8 + $0xa8] sm:$0xff]
        %v1862 = vld [vmem:[#allocation8 + $0xb0] sm:$0xff]
        %v1863 = vld [vmem:[#allocation8 + $0xb8] sm:$0xff]
        %v1864 = vld [vmem:[#allocation8 + $0xc0] sm:$0xff]
        %v1865 = vld [vmem:[#allocation8 + $0xc8] sm:$0xff]
        %v1866 = vld [vmem:[#allocation8 + $0xd0] sm:$0xff]
        %v1867 = vld [vmem:[#allocation8 + $0xd8] sm:$0xff]
        %v1868 = vld [vmem:[#allocation8 + $0xe0] sm:$0xff]
        %v1869 = vld [vmem:[#allocation8 + $0xe8] sm:$0xff]
        %v1870 = vld [vmem:[#allocation8 + $0xf0] sm:$0xff]
        %v1871 = vld [vmem:[#allocation8 + $0xf8] sm:$0xff]
        %v1872 = vadd.f32 %v1834, %v1372
        %v1873 = vadd.f32 %v1835, %v1376
        %v1874 = vadd.f32 %v1836, %v1380
        %v1875 = vadd.f32 %v1837, %v1384
        %v1876 = vrot.slane %v1872, 7
        %v1877 = vrot.slane %v1873, 7
        %v1878 = vrot.slane %v1874, 7
        %v1879 = vrot.slane %v1875, 7
        %v1880 = vsel %vm1453, %v1878, %v1879
        %v1881 = vsel %vm1453, %v1877, %v1878
        %v1882 = vsel %vm1453, %v1876, %v1877
        %v1883 = vsel %vm1453, %v1879, %v1876
        %v1884 = vsel %vm1441, 0.0, %v1883
        %v1885 = vsel %vm1442, 0.0, %v1882
        %v1886 = vsel %vm1443, 0.0, %v1881
        %v1887 = vsel %vm1444, 0.0, %v1880
        %v1888 = vrot.slane %v1872, 1
        %v1889 = vrot.slane %v1873, 1
        %v1890 = vrot.slane %v1874, 1
        %v1891 = vrot.slane %v1875, 1
        %v1892 = vsel %vm1466, %v1890, %v1891
        %v1893 = vsel %vm1466, %v1889, %v1890
        %v1894 = vsel %vm1466, %v1888, %v1889
        %v1895 = vsel %vm1466, %v1891, %v1888
        %v1896 = vsel %vm1445, 0.0, %v1894
        %v1897 = vsel %vm1446, 0.0, %v1893
        %v1898 = vsel %vm1447, 0.0, %v1892
        %v1899 = vsel %vm1448, 0.0, %v1895
        %v1900 = vpack.c.bf16 %v1885, %v1884
        %v1901 = vpack.c.bf16 %v1887, %v1886
        %s1902 = scalar_lea.vmem [#allocation7], 192
        %v1903 = vld [vmem:[%s1902] sm:$0xf]
        %v1904 = vld [vmem:[%s1902 + $0x4] sm:$0xf]
        %v1905 = vld [vmem:[%s1902 + $0x8] sm:$0xf]
        %v1906 = vld [vmem:[%s1902 + $0xc] sm:$0xf]
        %v1907 = vld [vmem:[%s1902 + $0x10] sm:$0xf]
        %v1908 = vld [vmem:[%s1902 + $0x14] sm:$0xf]
        %v1909 = vld [vmem:[%s1902 + $0x18] sm:$0xf]
        %v1910 = vld [vmem:[%s1902 + $0x1c] sm:$0xf]
        %v1911 = vld [vmem:[%s1902 + $0x20] sm:$0xf]
        %v1912 = vld [vmem:[%s1902 + $0x24] sm:$0xf]
        %v1913 = vld [vmem:[%s1902 + $0x28] sm:$0xf]
        %v1914 = vld [vmem:[%s1902 + $0x2c] sm:$0xf]
        %v1915 = vld [vmem:[%s1902 + $0x30] sm:$0xf]
        %v1916 = vld [vmem:[%s1902 + $0x34] sm:$0xf]
        %v1917 = vld [vmem:[%s1902 + $0x38] sm:$0xf]
        %v1918 = vld [vmem:[%s1902 + $0x3c] sm:$0xf]
        %v1919 = vpack.c.bf16 %v1873, %v1872
        %v1920 = vpack.c.bf16 %v1875, %v1874
        %s1921 = scalar_lea.vmem [#allocation7], 256
        %v1922 = vld [vmem:[%s1921] sm:$0xf]
        %v1923 = vld [vmem:[%s1921 + $0x4] sm:$0xf]
        %v1924 = vld [vmem:[%s1921 + $0x8] sm:$0xf]
        %v1925 = vld [vmem:[%s1921 + $0xc] sm:$0xf]
        %v1926 = vld [vmem:[%s1921 + $0x10] sm:$0xf]
        %v1927 = vld [vmem:[%s1921 + $0x14] sm:$0xf]
        %v1928 = vld [vmem:[%s1921 + $0x18] sm:$0xf]
        %v1929 = vld [vmem:[%s1921 + $0x1c] sm:$0xf]
        %v1930 = vld [vmem:[%s1921 + $0x20] sm:$0xf]
        %v1931 = vld [vmem:[%s1921 + $0x24] sm:$0xf]
        %v1932 = vld [vmem:[%s1921 + $0x28] sm:$0xf]
        %v1933 = vld [vmem:[%s1921 + $0x2c] sm:$0xf]
        %v1934 = vld [vmem:[%s1921 + $0x30] sm:$0xf]
        %v1935 = vld [vmem:[%s1921 + $0x34] sm:$0xf]
        %v1936 = vld [vmem:[%s1921 + $0x38] sm:$0xf]
        %v1937 = vld [vmem:[%s1921 + $0x3c] sm:$0xf]
        %v1954 = vunpack.c.l.b16 %v1922
        %v1955 = vunpack.c.l.b16 %v1923
        %v1956 = vunpack.c.l.b16 %v1924
        %v1957 = vunpack.c.l.b16 %v1925
        %v1958 = vunpack.c.l.b16 %v1926
        %v1959 = vunpack.c.l.b16 %v1927
        %v1960 = vunpack.c.l.b16 %v1928
        %v1961 = vunpack.c.l.b16 %v1929
        %v1962 = vunpack.c.l.b16 %v1930
        %v1963 = vunpack.c.l.b16 %v1931
        %v1964 = vunpack.c.l.b16 %v1932
        %v1965 = vunpack.c.l.b16 %v1933
        %v1966 = vunpack.c.l.b16 %v1934
        %v1967 = vunpack.c.l.b16 %v1935
        %v1968 = vunpack.c.l.b16 %v1936
        %v1969 = vunpack.c.l.b16 %v1937
        %v1970 = vpack.c.b16 %v1955, %v1954
        %v1971 = vpack.c.b16 %v1957, %v1956
        %v1972 = vpack.c.b16 %v1959, %v1958
        %v1973 = vpack.c.b16 %v1961, %v1960
        %v1974 = vpack.c.b16 %v1963, %v1962
        %v1975 = vpack.c.b16 %v1965, %v1964
        %v1976 = vpack.c.b16 %v1967, %v1966
        %v1977 = vpack.c.b16 %v1969, %v1968
        %1986 = vmatprep.subr.bf16.mxu0 0
        %1987 = vmatpush1.bf16.msra.mxu0 %v1970
        %1988 = vmatprep.subr.bf16.mxu0 0
        %1989 = vmatpush1.bf16.msra.mxu0 %v1971
        %1990 = vmatprep.subr.bf16.mxu0 0
        %1991 = vmatpush1.bf16.msra.mxu0 %v1972
        %1992 = vmatprep.subr.bf16.mxu0 0
        %1993 = vmatpush1.bf16.msra.mxu0 %v1973
        %1994 = vmatprep.subr.bf16.mxu0 0
        %1995 = vmatpush1.bf16.msra.mxu0 %v1974
        %1996 = vmatprep.subr.bf16.mxu0 0
        %1997 = vmatpush1.bf16.msra.mxu0 %v1975
        %1998 = vmatprep.subr.bf16.mxu0 0
        %1999 = vmatpush1.bf16.msra.mxu0 %v1976
        %2000 = vmatprep.subr.bf16.mxu0 0
        %2001 = vmatpush1.bf16.msra.mxu0 %v1977
        %2002 = vmatprep.subr.bf16.mxu0 0
        %2003 = vmatpush1.bf16.msra.mxu0 0
        %2004 = vmatprep.subr.bf16.mxu0 0
        %2005 = vmatpush1.bf16.msra.mxu0 0
        %2006 = vmatprep.subr.bf16.mxu0 0
        %2007 = vmatpush1.bf16.msra.mxu0 0
        %2008 = vmatprep.subr.bf16.mxu0 0
        %2009 = vmatpush1.bf16.msra.mxu0 0
        %2010 = vmatprep.subr.bf16.mxu0 0
        %2011 = vmatpush1.bf16.msra.mxu0 0
        %2012 = vmatprep.subr.bf16.mxu0 0
        %2013 = vmatpush1.bf16.msra.mxu0 0
        %2014 = vmatprep.subr.bf16.mxu0 0
        %2015 = vmatpush1.bf16.msra.mxu0 0
        %2016 = vmatprep.subr.bf16.mxu0 0
        %2017 = vmatpush1.bf16.msra.mxu0 0
        %2018 = vmatprep.mubr.bf16.mxu0 0
        %2019 = vmatmul.mubr.bf16.gmra.mrb[0].mxu0 %v1919
        %v2020 = vpop.f32.mrb[0].mxu0
        %v2021 = vadd.f32 0.0, %v2020
        %v2022 = vpop.f32.mrb[0].mxu0
        %v2023 = vpop.f32.mrb[0].mxu0
        %v2024 = vadd.f32 0.0, %v2023
        %v2025 = vpop.f32.mrb[0].mxu0
        %2026 = vmatprep.mubr.bf16.mxu0 0
        %2027 = vmatmul.mubr.bf16.gmra.mrb[0].mxu0 %v1920
        %v2028 = vpop.f32.mrb[0].mxu0
        %v2029 = vadd.f32 0.0, %v2028
        %v2030 = vpop.f32.mrb[0].mxu0
        %v2031 = vpop.f32.mrb[0].mxu0
        %v2032 = vadd.f32 0.0, %v2031
        %v2033 = vpop.f32.mrb[0].mxu0
        %2034 = vdwg.mxu0
        %v2051 = vunpack.c.l.b16 %v1903
        %v2052 = vunpack.c.l.b16 %v1904
        %v2053 = vunpack.c.l.b16 %v1905
        %v2054 = vunpack.c.l.b16 %v1906
        %v2055 = vunpack.c.l.b16 %v1907
        %v2056 = vunpack.c.l.b16 %v1908
        %v2057 = vunpack.c.l.b16 %v1909
        %v2058 = vunpack.c.l.b16 %v1910
        %v2059 = vunpack.c.l.b16 %v1911
        %v2060 = vunpack.c.l.b16 %v1912
        %v2061 = vunpack.c.l.b16 %v1913
        %v2062 = vunpack.c.l.b16 %v1914
        %v2063 = vunpack.c.l.b16 %v1915
        %v2064 = vunpack.c.l.b16 %v1916
        %v2065 = vunpack.c.l.b16 %v1917
        %v2066 = vunpack.c.l.b16 %v1918
        %v2067 = vpack.c.b16 %v2052, %v2051
        %v2068 = vpack.c.b16 %v2054, %v2053
        %v2069 = vpack.c.b16 %v2056, %v2055
        %v2070 = vpack.c.b16 %v2058, %v2057
        %v2071 = vpack.c.b16 %v2060, %v2059
        %v2072 = vpack.c.b16 %v2062, %v2061
        %v2073 = vpack.c.b16 %v2064, %v2063
        %v2074 = vpack.c.b16 %v2066, %v2065
        %2083 = vmatprep.subr.bf16.mxu0 0
        %2084 = vmatpush1.bf16.msra.mxu0 %v2067
        %2085 = vmatprep.subr.bf16.mxu0 0
        %2086 = vmatpush1.bf16.msra.mxu0 %v2068
        %2087 = vmatprep.subr.bf16.mxu0 0
        %2088 = vmatpush1.bf16.msra.mxu0 %v2069
        %2089 = vmatprep.subr.bf16.mxu0 0
        %2090 = vmatpush1.bf16.msra.mxu0 %v2070
        %2091 = vmatprep.subr.bf16.mxu0 0
        %2092 = vmatpush1.bf16.msra.mxu0 %v2071
        %2093 = vmatprep.subr.bf16.mxu0 0
        %2094 = vmatpush1.bf16.msra.mxu0 %v2072
        %2095 = vmatprep.subr.bf16.mxu0 0
        %2096 = vmatpush1.bf16.msra.mxu0 %v2073
        %2097 = vmatprep.subr.bf16.mxu0 0
        %2098 = vmatpush1.bf16.msra.mxu0 %v2074
        %2099 = vmatprep.subr.bf16.mxu0 0
        %2100 = vmatpush1.bf16.msra.mxu0 0
        %2101 = vmatprep.subr.bf16.mxu0 0
        %2102 = vmatpush1.bf16.msra.mxu0 0
        %2103 = vmatprep.subr.bf16.mxu0 0
        %2104 = vmatpush1.bf16.msra.mxu0 0
        %2105 = vmatprep.subr.bf16.mxu0 0
        %2106 = vmatpush1.bf16.msra.mxu0 0
        %2107 = vmatprep.subr.bf16.mxu0 0
        %2108 = vmatpush1.bf16.msra.mxu0 0
        %2109 = vmatprep.subr.bf16.mxu0 0
        %2110 = vmatpush1.bf16.msra.mxu0 0
        %2111 = vmatprep.subr.bf16.mxu0 0
        %2112 = vmatpush1.bf16.msra.mxu0 0
        %2113 = vmatprep.subr.bf16.mxu0 0
        %2114 = vmatpush1.bf16.msra.mxu0 0
        %2115 = vmatprep.mubr.bf16.mxu0 0
        %2116 = vmatmul.mubr.bf16.gmra.mrb[0].mxu0 %v1900
        %v2117 = vpop.f32.mrb[0].mxu0
        %v2118 = vadd.f32 %v2021, %v2117
        %v2119 = vpop.f32.mrb[0].mxu0
        %v2120 = vpop.f32.mrb[0].mxu0
        %v2121 = vadd.f32 %v2024, %v2120
        %v2122 = vpop.f32.mrb[0].mxu0
        %2123 = vmatprep.mubr.bf16.mxu0 0
        %2124 = vmatmul.mubr.bf16.gmra.mrb[0].mxu0 %v1901
        %v2125 = vpop.f32.mrb[0].mxu0
        %v2126 = vadd.f32 %v2029, %v2125
        %v2127 = vpop.f32.mrb[0].mxu0
        %v2128 = vpop.f32.mrb[0].mxu0
        %v2129 = vadd.f32 %v2032, %v2128
        %v2130 = vpop.f32.mrb[0].mxu0
        %2131 = vdwg.mxu0
        %v2132 = vpack.c.bf16 %v1897, %v1896
        %v2133 = vpack.c.bf16 %v1899, %v1898
        %s2134 = scalar_lea.vmem [#allocation7], 320
        %v2135 = vld [vmem:[%s2134] sm:$0xf]
        %v2136 = vld [vmem:[%s2134 + $0x4] sm:$0xf]
        %v2137 = vld [vmem:[%s2134 + $0x8] sm:$0xf]
        %v2138 = vld [vmem:[%s2134 + $0xc] sm:$0xf]
        %v2139 = vld [vmem:[%s2134 + $0x10] sm:$0xf]
        %v2140 = vld [vmem:[%s2134 + $0x14] sm:$0xf]
        %v2141 = vld [vmem:[%s2134 + $0x18] sm:$0xf]
        %v2142 = vld [vmem:[%s2134 + $0x1c] sm:$0xf]
        %v2143 = vld [vmem:[%s2134 + $0x20] sm:$0xf]
        %v2144 = vld [vmem:[%s2134 + $0x24] sm:$0xf]
        %v2145 = vld [vmem:[%s2134 + $0x28] sm:$0xf]
        %v2146 = vld [vmem:[%s2134 + $0x2c] sm:$0xf]
        %v2147 = vld [vmem:[%s2134 + $0x30] sm:$0xf]
        %v2148 = vld [vmem:[%s2134 + $0x34] sm:$0xf]
        %v2149 = vld [vmem:[%s2134 + $0x38] sm:$0xf]
        %v2150 = vld [vmem:[%s2134 + $0x3c] sm:$0xf]
        %v2167 = vunpack.c.l.b16 %v2135
        %v2168 = vunpack.c.l.b16 %v2136
        %v2169 = vunpack.c.l.b16 %v2137
        %v2170 = vunpack.c.l.b16 %v2138
        %v2171 = vunpack.c.l.b16 %v2139
        %v2172 = vunpack.c.l.b16 %v2140
        %v2173 = vunpack.c.l.b16 %v2141
        %v2174 = vunpack.c.l.b16 %v2142
        %v2175 = vunpack.c.l.b16 %v2143
        %v2176 = vunpack.c.l.b16 %v2144
        %v2177 = vunpack.c.l.b16 %v2145
        %v2178 = vunpack.c.l.b16 %v2146
        %v2179 = vunpack.c.l.b16 %v2147
        %v2180 = vunpack.c.l.b16 %v2148
        %v2181 = vunpack.c.l.b16 %v2149
        %v2182 = vunpack.c.l.b16 %v2150
        %v2183 = vpack.c.b16 %v2168, %v2167
        %v2184 = vpack.c.b16 %v2170, %v2169
        %v2185 = vpack.c.b16 %v2172, %v2171
        %v2186 = vpack.c.b16 %v2174, %v2173
        %v2187 = vpack.c.b16 %v2176, %v2175
        %v2188 = vpack.c.b16 %v2178, %v2177
        %v2189 = vpack.c.b16 %v2180, %v2179
        %v2190 = vpack.c.b16 %v2182, %v2181
        %2199 = vmatprep.subr.bf16.mxu0 0
        %2200 = vmatpush1.bf16.msra.mxu0 %v2183
        %2201 = vmatprep.subr.bf16.mxu0 0
        %2202 = vmatpush1.bf16.msra.mxu0 %v2184
        %2203 = vmatprep.subr.bf16.mxu0 0
        %2204 = vmatpush1.bf16.msra.mxu0 %v2185
        %2205 = vmatprep.subr.bf16.mxu0 0
        %2206 = vmatpush1.bf16.msra.mxu0 %v2186
        %2207 = vmatprep.subr.bf16.mxu0 0
        %2208 = vmatpush1.bf16.msra.mxu0 %v2187
        %2209 = vmatprep.subr.bf16.mxu0 0
        %2210 = vmatpush1.bf16.msra.mxu0 %v2188
        %2211 = vmatprep.subr.bf16.mxu0 0
        %2212 = vmatpush1.bf16.msra.mxu0 %v2189
        %2213 = vmatprep.subr.bf16.mxu0 0
        %2214 = vmatpush1.bf16.msra.mxu0 %v2190
        %2215 = vmatprep.subr.bf16.mxu0 0
        %2216 = vmatpush1.bf16.msra.mxu0 0
        %2217 = vmatprep.subr.bf16.mxu0 0
        %2218 = vmatpush1.bf16.msra.mxu0 0
        %2219 = vmatprep.subr.bf16.mxu0 0
        %2220 = vmatpush1.bf16.msra.mxu0 0
        %2221 = vmatprep.subr.bf16.mxu0 0
        %2222 = vmatpush1.bf16.msra.mxu0 0
        %2223 = vmatprep.subr.bf16.mxu0 0
        %2224 = vmatpush1.bf16.msra.mxu0 0
        %2225 = vmatprep.subr.bf16.mxu0 0
        %2226 = vmatpush1.bf16.msra.mxu0 0
        %2227 = vmatprep.subr.bf16.mxu0 0
        %2228 = vmatpush1.bf16.msra.mxu0 0
        %2229 = vmatprep.subr.bf16.mxu0 0
        %2230 = vmatpush1.bf16.msra.mxu0 0
        %2231 = vmatprep.mubr.bf16.mxu0 0
        %2232 = vmatmul.mubr.bf16.gmra.mrb[0].mxu0 %v2132
        %v2233 = vpop.f32.mrb[0].mxu0
        %v2234 = vadd.f32 0.0, %v2233
        %v2235 = vpop.f32.mrb[0].mxu0
        %v2236 = vpop.f32.mrb[0].mxu0
        %v2237 = vadd.f32 0.0, %v2236
        %v2238 = vpop.f32.mrb[0].mxu0
        %2239 = vmatprep.mubr.bf16.mxu0 0
        %2240 = vmatmul.mubr.bf16.gmra.mrb[0].mxu0 %v2133
        %v2241 = vpop.f32.mrb[0].mxu0
        %v2242 = vadd.f32 0.0, %v2241
        %v2243 = vpop.f32.mrb[0].mxu0
        %v2244 = vpop.f32.mrb[0].mxu0
        %v2245 = vadd.f32 0.0, %v2244
        %v2246 = vpop.f32.mrb[0].mxu0
        %2247 = vdwg.mxu0
        %v2248 = vadd.f32 %v2118, %v2234
        %v2249 = vadd.f32 %v2121, %v2237
        %v2250 = vadd.f32 %v2126, %v2242
        %v2251 = vadd.f32 %v2129, %v2245
        %v2252 = vlaneseq
        %v2253 = vshrl.u32 %v2252, 7
        %v2254 = vsub.s32 1, %v2253
        %v2255 = vrot.slane %v1387, %v2254
        %v2256 = vadd.f32 %v2248, %v2255
        %v2257 = vadd.f32 %v2249, %v2255
        %v2258 = vadd.f32 %v2250, %v2255
        %v2259 = vadd.f32 %v2251, %v2255
        %v2260 = vmax.f32 %v2256, 0.0
        %v2261 = vmax.f32 %v2257, 0.0
        %v2262 = vmax.f32 %v2258, 0.0
        %v2263 = vmax.f32 %v2259, 0.0
        %v2264 = vpack.c.bf16 %v2261, %v2260
        %v2265 = vpack.c.bf16 %v2263, %v2262
        %s2266 = scalar_lea.vmem [#allocation8], 256
        %v2267 = vld [vmem:[%s2266] sm:$0xff]
        %v2268 = vld [vmem:[%s2266 + $0x8] sm:$0xff]
        %v2269 = vld [vmem:[%s2266 + $0x10] sm:$0xff]
        %v2270 = vld [vmem:[%s2266 + $0x18] sm:$0xff]
        %v2271 = vld [vmem:[%s2266 + $0x20] sm:$0xff]
        %v2272 = vld [vmem:[%s2266 + $0x28] sm:$0xff]
        %v2273 = vld [vmem:[%s2266 + $0x30] sm:$0xff]
        %v2274 = vld [vmem:[%s2266 + $0x38] sm:$0xff]
        %v2275 = vld [vmem:[%s2266 + $0x40] sm:$0xff]
        %v2276 = vld [vmem:[%s2266 + $0x48] sm:$0xff]
        %v2277 = vld [vmem:[%s2266 + $0x50] sm:$0xff]
        %v2278 = vld [vmem:[%s2266 + $0x58] sm:$0xff]
        %v2279 = vld [vmem:[%s2266 + $0x60] sm:$0xff]
        %v2280 = vld [vmem:[%s2266 + $0x68] sm:$0xff]
        %v2281 = vld [vmem:[%s2266 + $0x70] sm:$0xff]
        %v2282 = vld [vmem:[%s2266 + $0x78] sm:$0xff]
        %v2283 = vld [vmem:[%s2266 + $0x80] sm:$0xff]
        %v2284 = vld [vmem:[%s2266 + $0x88] sm:$0xff]
        %v2285 = vld [vmem:[%s2266 + $0x90] sm:$0xff]
        %v2286 = vld [vmem:[%s2266 + $0x98] sm:$0xff]
        %v2287 = vld [vmem:[%s2266 + $0xa0] sm:$0xff]
        %v2288 = vld [vmem:[%s2266 + $0xa8] sm:$0xff]
        %v2289 = vld [vmem:[%s2266 + $0xb0] sm:$0xff]
        %v2290 = vld [vmem:[%s2266 + $0xb8] sm:$0xff]
        %v2291 = vld [vmem:[%s2266 + $0xc0] sm:$0xff]
        %v2292 = vld [vmem:[%s2266 + $0xc8] sm:$0xff]
        %v2293 = vld [vmem:[%s2266 + $0xd0] sm:$0xff]
        %v2294 = vld [vmem:[%s2266 + $0xd8] sm:$0xff]
        %v2295 = vld [vmem:[%s2266 + $0xe0] sm:$0xff]
        %v2296 = vld [vmem:[%s2266 + $0xe8] sm:$0xff]
        %v2297 = vld [vmem:[%s2266 + $0xf0] sm:$0xff]
        %v2298 = vld [vmem:[%s2266 + $0xf8] sm:$0xff]
        %v2331 = vunpack.c.l.b16 %v2267
        %v2332 = vunpack.c.h.b16 %v2267
        %v2333 = vunpack.c.l.b16 %v2268
        %v2334 = vunpack.c.h.b16 %v2268
        %v2335 = vunpack.c.l.b16 %v2269
        %v2336 = vunpack.c.h.b16 %v2269
        %v2337 = vunpack.c.l.b16 %v2270
        %v2338 = vunpack.c.h.b16 %v2270
        %v2339 = vunpack.c.l.b16 %v2271
        %v2340 = vunpack.c.h.b16 %v2271
        %v2341 = vunpack.c.l.b16 %v2272
        %v2342 = vunpack.c.h.b16 %v2272
        %v2343 = vunpack.c.l.b16 %v2273
        %v2344 = vunpack.c.h.b16 %v2273
        %v2345 = vunpack.c.l.b16 %v2274
        %v2346 = vunpack.c.h.b16 %v2274
        %v2347 = vunpack.c.l.b16 %v2275
        %v2348 = vunpack.c.h.b16 %v2275
        %v2349 = vunpack.c.l.b16 %v2276
        %v2350 = vunpack.c.h.b16 %v2276
        %v2351 = vunpack.c.l.b16 %v2277
        %v2352 = vunpack.c.h.b16 %v2277
        %v2353 = vunpack.c.l.b16 %v2278
        %v2354 = vunpack.c.h.b16 %v2278
        %v2355 = vunpack.c.l.b16 %v2279
        %v2356 = vunpack.c.h.b16 %v2279
        %v2357 = vunpack.c.l.b16 %v2280
        %v2358 = vunpack.c.h.b16 %v2280
        %v2359 = vunpack.c.l.b16 %v2281
        %v2360 = vunpack.c.h.b16 %v2281
        %v2361 = vunpack.c.l.b16 %v2282
        %v2362 = vunpack.c.h.b16 %v2282
        %v2363 = vunpack.c.l.b16 %v2283
        %v2364 = vunpack.c.h.b16 %v2283
        %v2365 = vunpack.c.l.b16 %v2284
        %v2366 = vunpack.c.h.b16 %v2284
        %v2367 = vunpack.c.l.b16 %v2285
        %v2368 = vunpack.c.h.b16 %v2285
        %v2369 = vunpack.c.l.b16 %v2286
        %v2370 = vunpack.c.h.b16 %v2286
        %v2371 = vunpack.c.l.b16 %v2287
        %v2372 = vunpack.c.h.b16 %v2287
        %v2373 = vunpack.c.l.b16 %v2288
        %v2374 = vunpack.c.h.b16 %v2288
        %v2375 = vunpack.c.l.b16 %v2289
        %v2376 = vunpack.c.h.b16 %v2289
        %v2377 = vunpack.c.l.b16 %v2290
        %v2378 = vunpack.c.h.b16 %v2290
        %v2379 = vunpack.c.l.b16 %v2291
        %v2380 = vunpack.c.h.b16 %v2291
        %v2381 = vunpack.c.l.b16 %v2292
        %v2382 = vunpack.c.h.b16 %v2292
        %v2383 = vunpack.c.l.b16 %v2293
        %v2384 = vunpack.c.h.b16 %v2293
        %v2385 = vunpack.c.l.b16 %v2294
        %v2386 = vunpack.c.h.b16 %v2294
        %v2387 = vunpack.c.l.b16 %v2295
        %v2388 = vunpack.c.h.b16 %v2295
        %v2389 = vunpack.c.l.b16 %v2296
        %v2390 = vunpack.c.h.b16 %v2296
        %v2391 = vunpack.c.l.b16 %v2297
        %v2392 = vunpack.c.h.b16 %v2297
        %v2393 = vunpack.c.l.b16 %v2298
        %v2394 = vunpack.c.h.b16 %v2298
        %v2395 = vpack.c.b16 %v2335, %v2331
        %v2396 = vpack.c.b16 %v2336, %v2332
        %v2397 = vpack.c.b16 %v2337, %v2333
        %v2398 = vpack.c.b16 %v2338, %v2334
        %v2399 = vpack.c.b16 %v2343, %v2339
        %v2400 = vpack.c.b16 %v2344, %v2340
        %v2401 = vpack.c.b16 %v2345, %v2341
        %v2402 = vpack.c.b16 %v2346, %v2342
        %v2403 = vpack.c.b16 %v2351, %v2347
        %v2404 = vpack.c.b16 %v2352, %v2348
        %v2405 = vpack.c.b16 %v2353, %v2349
        %v2406 = vpack.c.b16 %v2354, %v2350
        %v2407 = vpack.c.b16 %v2359, %v2355
        %v2408 = vpack.c.b16 %v2360, %v2356
        %v2409 = vpack.c.b16 %v2361, %v2357
        %v2410 = vpack.c.b16 %v2362, %v2358
        %v2411 = vpack.c.b16 %v2367, %v2363
        %v2412 = vpack.c.b16 %v2368, %v2364
        %v2413 = vpack.c.b16 %v2369, %v2365
        %v2414 = vpack.c.b16 %v2370, %v2366
        %v2415 = vpack.c.b16 %v2375, %v2371
        %v2416 = vpack.c.b16 %v2376, %v2372
        %v2417 = vpack.c.b16 %v2377, %v2373
        %v2418 = vpack.c.b16 %v2378, %v2374
        %v2419 = vpack.c.b16 %v2383, %v2379
        %v2420 = vpack.c.b16 %v2384, %v2380
        %v2421 = vpack.c.b16 %v2385, %v2381
        %v2422 = vpack.c.b16 %v2386, %v2382
        %v2423 = vpack.c.b16 %v2391, %v2387
        %v2424 = vpack.c.b16 %v2392, %v2388
        %v2425 = vpack.c.b16 %v2393, %v2389
        %v2426 = vpack.c.b16 %v2394, %v2390
        %2459 = vmatprep.subr.bf16.mxu0 %v2396
        %2460 = vmatpush1.bf16.msra.mxu0 %v2395
        %2461 = vmatprep.subr.bf16.mxu0 %v2400
        %2462 = vmatpush1.bf16.msra.mxu0 %v2399
        %2463 = vmatprep.subr.bf16.mxu0 %v2404
        %2464 = vmatpush1.bf16.msra.mxu0 %v2403
        %2465 = vmatprep.subr.bf16.mxu0 %v2408
        %2466 = vmatpush1.bf16.msra.mxu0 %v2407
        %2467 = vmatprep.subr.bf16.mxu0 %v2412
        %2468 = vmatpush1.bf16.msra.mxu0 %v2411
        %2469 = vmatprep.subr.bf16.mxu0 %v2416
        %2470 = vmatpush1.bf16.msra.mxu0 %v2415
        %2471 = vmatprep.subr.bf16.mxu0 %v2420
        %2472 = vmatpush1.bf16.msra.mxu0 %v2419
        %2473 = vmatprep.subr.bf16.mxu0 %v2424
        %2474 = vmatpush1.bf16.msra.mxu0 %v2423
        %2475 = vmatprep.subr.bf16.mxu0 0
        %2476 = vmatpush1.bf16.msra.mxu0 0
        %2477 = vmatprep.subr.bf16.mxu0 0
        %2478 = vmatpush1.bf16.msra.mxu0 0
        %2479 = vmatprep.subr.bf16.mxu0 0
        %2480 = vmatpush1.bf16.msra.mxu0 0
        %2481 = vmatprep.subr.bf16.mxu0 0
        %2482 = vmatpush1.bf16.msra.mxu0 0
        %2483 = vmatprep.subr.bf16.mxu0 0
        %2484 = vmatpush1.bf16.msra.mxu0 0
        %2485 = vmatprep.subr.bf16.mxu0 0
        %2486 = vmatpush1.bf16.msra.mxu0 0
        %2487 = vmatprep.subr.bf16.mxu0 0
        %2488 = vmatpush1.bf16.msra.mxu0 0
        %2489 = vmatprep.subr.bf16.mxu0 0
        %2490 = vmatpush1.bf16.msra.mxu0 0
        %2491 = vmatprep.mubr.bf16.mxu0 0
        %2492 = vmatmul.mubr.bf16.gmra.mrb[0].mxu0 %v2264
        %v2493 = vpop.f32.mrb[0].mxu0
        %v2494 = vadd.f32 0.0, %v2493
        %v2495 = vpop.f32.mrb[0].mxu0
        %v2496 = vadd.f32 0.0, %v2495
        %v2497 = vpop.f32.mrb[0].mxu0
        %v2498 = vadd.f32 0.0, %v2497
        %v2499 = vpop.f32.mrb[0].mxu0
        %v2500 = vadd.f32 0.0, %v2499
        %2501 = vmatprep.mubr.bf16.mxu0 0
        %2502 = vmatmul.mubr.bf16.gmra.mrb[0].mxu0 %v2265
        %v2503 = vpop.f32.mrb[0].mxu0
        %v2504 = vadd.f32 0.0, %v2503
        %v2505 = vpop.f32.mrb[0].mxu0
        %v2506 = vadd.f32 0.0, %v2505
        %v2507 = vpop.f32.mrb[0].mxu0
        %v2508 = vadd.f32 0.0, %v2507
        %v2509 = vpop.f32.mrb[0].mxu0
        %v2510 = vadd.f32 0.0, %v2509
        %2511 = vdwg.mxu0
        %2512 = vmatprep.subr.bf16.mxu0 %v2398
        %2513 = vmatpush1.bf16.msra.mxu0 %v2397
        %2514 = vmatprep.subr.bf16.mxu0 %v2402
        %2515 = vmatpush1.bf16.msra.mxu0 %v2401
        %2516 = vmatprep.subr.bf16.mxu0 %v2406
        %2517 = vmatpush1.bf16.msra.mxu0 %v2405
        %2518 = vmatprep.subr.bf16.mxu0 %v2410
        %2519 = vmatpush1.bf16.msra.mxu0 %v2409
        %2520 = vmatprep.subr.bf16.mxu0 %v2414
        %2521 = vmatpush1.bf16.msra.mxu0 %v2413
        %2522 = vmatprep.subr.bf16.mxu0 %v2418
        %2523 = vmatpush1.bf16.msra.mxu0 %v2417
        %2524 = vmatprep.subr.bf16.mxu0 %v2422
        %2525 = vmatpush1.bf16.msra.mxu0 %v2421
        %2526 = vmatprep.subr.bf16.mxu0 %v2426
        %2527 = vmatpush1.bf16.msra.mxu0 %v2425
        %2528 = vmatprep.subr.bf16.mxu0 0
        %2529 = vmatpush1.bf16.msra.mxu0 0
        %2530 = vmatprep.subr.bf16.mxu0 0
        %2531 = vmatpush1.bf16.msra.mxu0 0
        %2532 = vmatprep.subr.bf16.mxu0 0
        %2533 = vmatpush1.bf16.msra.mxu0 0
        %2534 = vmatprep.subr.bf16.mxu0 0
        %2535 = vmatpush1.bf16.msra.mxu0 0
        %2536 = vmatprep.subr.bf16.mxu0 0
        %2537 = vmatpush1.bf16.msra.mxu0 0
        %2538 = vmatprep.subr.bf16.mxu0 0
        %2539 = vmatpush1.bf16.msra.mxu0 0
        %2540 = vmatprep.subr.bf16.mxu0 0
        %2541 = vmatpush1.bf16.msra.mxu0 0
        %2542 = vmatprep.subr.bf16.mxu0 0
        %2543 = vmatpush1.bf16.msra.mxu0 0
        %2544 = vmatprep.mubr.bf16.mxu0 0
        %2545 = vmatmul.mubr.bf16.gmra.mrb[0].mxu0 %v2264
        %v2546 = vpop.f32.mrb[0].mxu0
        %v2547 = vadd.f32 0.0, %v2546
        %v2548 = vpop.f32.mrb[0].mxu0
        %v2549 = vadd.f32 0.0, %v2548
        %v2550 = vpop.f32.mrb[0].mxu0
        %v2551 = vadd.f32 0.0, %v2550
        %v2552 = vpop.f32.mrb[0].mxu0
        %v2553 = vadd.f32 0.0, %v2552
        %2554 = vmatprep.mubr.bf16.mxu0 0
        %2555 = vmatmul.mubr.bf16.gmra.mrb[0].mxu0 %v2265
        %v2556 = vpop.f32.mrb[0].mxu0
        %v2557 = vadd.f32 0.0, %v2556
        %v2558 = vpop.f32.mrb[0].mxu0
        %v2559 = vadd.f32 0.0, %v2558
        %v2560 = vpop.f32.mrb[0].mxu0
        %v2561 = vadd.f32 0.0, %v2560
        %v2562 = vpop.f32.mrb[0].mxu0
        %v2563 = vadd.f32 0.0, %v2562
        %2564 = vdwg.mxu0
        %v2597 = vunpack.c.l.b16 %v1840
        %v2598 = vunpack.c.h.b16 %v1840
        %v2599 = vunpack.c.l.b16 %v1841
        %v2600 = vunpack.c.h.b16 %v1841
        %v2601 = vunpack.c.l.b16 %v1842
        %v2602 = vunpack.c.h.b16 %v1842
        %v2603 = vunpack.c.l.b16 %v1843
        %v2604 = vunpack.c.h.b16 %v1843
        %v2605 = vunpack.c.l.b16 %v1844
        %v2606 = vunpack.c.h.b16 %v1844
        %v2607 = vunpack.c.l.b16 %v1845
        %v2608 = vunpack.c.h.b16 %v1845
        %v2609 = vunpack.c.l.b16 %v1846
        %v2610 = vunpack.c.h.b16 %v1846
        %v2611 = vunpack.c.l.b16 %v1847
        %v2612 = vunpack.c.h.b16 %v1847
        %v2613 = vunpack.c.l.b16 %v1848
        %v2614 = vunpack.c.h.b16 %v1848
        %v2615 = vunpack.c.l.b16 %v1849
        %v2616 = vunpack.c.h.b16 %v1849
        %v2617 = vunpack.c.l.b16 %v1850
        %v2618 = vunpack.c.h.b16 %v1850
        %v2619 = vunpack.c.l.b16 %v1851
        %v2620 = vunpack.c.h.b16 %v1851
        %v2621 = vunpack.c.l.b16 %v1852
        %v2622 = vunpack.c.h.b16 %v1852
        %v2623 = vunpack.c.l.b16 %v1853
        %v2624 = vunpack.c.h.b16 %v1853
        %v2625 = vunpack.c.l.b16 %v1854
        %v2626 = vunpack.c.h.b16 %v1854
        %v2627 = vunpack.c.l.b16 %v1855
        %v2628 = vunpack.c.h.b16 %v1855
        %v2629 = vunpack.c.l.b16 %v1856
        %v2630 = vunpack.c.h.b16 %v1856
        %v2631 = vunpack.c.l.b16 %v1857
        %v2632 = vunpack.c.h.b16 %v1857
        %v2633 = vunpack.c.l.b16 %v1858
        %v2634 = vunpack.c.h.b16 %v1858
        %v2635 = vunpack.c.l.b16 %v1859
        %v2636 = vunpack.c.h.b16 %v1859
        %v2637 = vunpack.c.l.b16 %v1860
        %v2638 = vunpack.c.h.b16 %v1860
        %v2639 = vunpack.c.l.b16 %v1861
        %v2640 = vunpack.c.h.b16 %v1861
        %v2641 = vunpack.c.l.b16 %v1862
        %v2642 = vunpack.c.h.b16 %v1862
        %v2643 = vunpack.c.l.b16 %v1863
        %v2644 = vunpack.c.h.b16 %v1863
        %v2645 = vunpack.c.l.b16 %v1864
        %v2646 = vunpack.c.h.b16 %v1864
        %v2647 = vunpack.c.l.b16 %v1865
        %v2648 = vunpack.c.h.b16 %v1865
        %v2649 = vunpack.c.l.b16 %v1866
        %v2650 = vunpack.c.h.b16 %v1866
        %v2651 = vunpack.c.l.b16 %v1867
        %v2652 = vunpack.c.h.b16 %v1867
        %v2653 = vunpack.c.l.b16 %v1868
        %v2654 = vunpack.c.h.b16 %v1868
        %v2655 = vunpack.c.l.b16 %v1869
        %v2656 = vunpack.c.h.b16 %v1869
        %v2657 = vunpack.c.l.b16 %v1870
        %v2658 = vunpack.c.h.b16 %v1870
        %v2659 = vunpack.c.l.b16 %v1871
        %v2660 = vunpack.c.h.b16 %v1871
        %v2661 = vpack.c.b16 %v2601, %v2597
        %v2662 = vpack.c.b16 %v2602, %v2598
        %v2663 = vpack.c.b16 %v2603, %v2599
        %v2664 = vpack.c.b16 %v2604, %v2600
        %v2665 = vpack.c.b16 %v2609, %v2605
        %v2666 = vpack.c.b16 %v2610, %v2606
        %v2667 = vpack.c.b16 %v2611, %v2607
        %v2668 = vpack.c.b16 %v2612, %v2608
        %v2669 = vpack.c.b16 %v2617, %v2613
        %v2670 = vpack.c.b16 %v2618, %v2614
        %v2671 = vpack.c.b16 %v2619, %v2615
        %v2672 = vpack.c.b16 %v2620, %v2616
        %v2673 = vpack.c.b16 %v2625, %v2621
        %v2674 = vpack.c.b16 %v2626, %v2622
        %v2675 = vpack.c.b16 %v2627, %v2623
        %v2676 = vpack.c.b16 %v2628, %v2624
        %v2677 = vpack.c.b16 %v2633, %v2629
        %v2678 = vpack.c.b16 %v2634, %v2630
        %v2679 = vpack.c.b16 %v2635, %v2631
        %v2680 = vpack.c.b16 %v2636, %v2632
        %v2681 = vpack.c.b16 %v2641, %v2637
        %v2682 = vpack.c.b16 %v2642, %v2638
        %v2683 = vpack.c.b16 %v2643, %v2639
        %v2684 = vpack.c.b16 %v2644, %v2640
        %v2685 = vpack.c.b16 %v2649, %v2645
        %v2686 = vpack.c.b16 %v2650, %v2646
        %v2687 = vpack.c.b16 %v2651, %v2647
        %v2688 = vpack.c.b16 %v2652, %v2648
        %v2689 = vpack.c.b16 %v2657, %v2653
        %v2690 = vpack.c.b16 %v2658, %v2654
        %v2691 = vpack.c.b16 %v2659, %v2655
        %v2692 = vpack.c.b16 %v2660, %v2656
        %2725 = vmatprep.subr.bf16.mxu0 %v2662
        %2726 = vmatpush1.bf16.msra.mxu0 %v2661
        %2727 = vmatprep.subr.bf16.mxu0 %v2666
        %2728 = vmatpush1.bf16.msra.mxu0 %v2665
        %2729 = vmatprep.subr.bf16.mxu0 %v2670
        %2730 = vmatpush1.bf16.msra.mxu0 %v2669
        %2731 = vmatprep.subr.bf16.mxu0 %v2674
        %2732 = vmatpush1.bf16.msra.mxu0 %v2673
        %2733 = vmatprep.subr.bf16.mxu0 %v2678
        %2734 = vmatpush1.bf16.msra.mxu0 %v2677
        %2735 = vmatprep.subr.bf16.mxu0 %v2682
        %2736 = vmatpush1.bf16.msra.mxu0 %v2681
        %2737 = vmatprep.subr.bf16.mxu0 %v2686
        %2738 = vmatpush1.bf16.msra.mxu0 %v2685
        %2739 = vmatprep.subr.bf16.mxu0 %v2690
        %2740 = vmatpush1.bf16.msra.mxu0 %v2689
        %2741 = vmatprep.subr.bf16.mxu0 0
        %2742 = vmatpush1.bf16.msra.mxu0 0
        %2743 = vmatprep.subr.bf16.mxu0 0
        %2744 = vmatpush1.bf16.msra.mxu0 0
        %2745 = vmatprep.subr.bf16.mxu0 0
        %2746 = vmatpush1.bf16.msra.mxu0 0
        %2747 = vmatprep.subr.bf16.mxu0 0
        %2748 = vmatpush1.bf16.msra.mxu0 0
        %2749 = vmatprep.subr.bf16.mxu0 0
        %2750 = vmatpush1.bf16.msra.mxu0 0
        %2751 = vmatprep.subr.bf16.mxu0 0
        %2752 = vmatpush1.bf16.msra.mxu0 0
        %2753 = vmatprep.subr.bf16.mxu0 0
        %2754 = vmatpush1.bf16.msra.mxu0 0
        %2755 = vmatprep.subr.bf16.mxu0 0
        %2756 = vmatpush1.bf16.msra.mxu0 0
        %2757 = vmatprep.mubr.bf16.mxu0 0
        %2758 = vmatmul.mubr.bf16.gmra.mrb[0].mxu0 %v1838
        %v2759 = vpop.f32.mrb[0].mxu0
        %v2760 = vadd.f32 %v2494, %v2759
        %v2761 = vpop.f32.mrb[0].mxu0
        %v2762 = vadd.f32 %v2496, %v2761
        %v2763 = vpop.f32.mrb[0].mxu0
        %v2764 = vadd.f32 %v2498, %v2763
        %v2765 = vpop.f32.mrb[0].mxu0
        %v2766 = vadd.f32 %v2500, %v2765
        %2767 = vmatprep.mubr.bf16.mxu0 0
        %2768 = vmatmul.mubr.bf16.gmra.mrb[0].mxu0 %v1839
        %v2769 = vpop.f32.mrb[0].mxu0
        %v2770 = vadd.f32 %v2504, %v2769
        %v2771 = vpop.f32.mrb[0].mxu0
        %v2772 = vadd.f32 %v2506, %v2771
        %v2773 = vpop.f32.mrb[0].mxu0
        %v2774 = vadd.f32 %v2508, %v2773
        %v2775 = vpop.f32.mrb[0].mxu0
        %v2776 = vadd.f32 %v2510, %v2775
        %2777 = vdwg.mxu0
        %2778 = vmatprep.subr.bf16.mxu0 %v2664
        %2779 = vmatpush1.bf16.msra.mxu0 %v2663
        %2780 = vmatprep.subr.bf16.mxu0 %v2668
        %2781 = vmatpush1.bf16.msra.mxu0 %v2667
        %2782 = vmatprep.subr.bf16.mxu0 %v2672
        %2783 = vmatpush1.bf16.msra.mxu0 %v2671
        %2784 = vmatprep.subr.bf16.mxu0 %v2676
        %2785 = vmatpush1.bf16.msra.mxu0 %v2675
        %2786 = vmatprep.subr.bf16.mxu0 %v2680
        %2787 = vmatpush1.bf16.msra.mxu0 %v2679
        %2788 = vmatprep.subr.bf16.mxu0 %v2684
        %2789 = vmatpush1.bf16.msra.mxu0 %v2683
        %2790 = vmatprep.subr.bf16.mxu0 %v2688
        %2791 = vmatpush1.bf16.msra.mxu0 %v2687
        %2792 = vmatprep.subr.bf16.mxu0 %v2692
        %2793 = vmatpush1.bf16.msra.mxu0 %v2691
        %2794 = vmatprep.subr.bf16.mxu0 0
        %2795 = vmatpush1.bf16.msra.mxu0 0
        %2796 = vmatprep.subr.bf16.mxu0 0
        %2797 = vmatpush1.bf16.msra.mxu0 0
        %2798 = vmatprep.subr.bf16.mxu0 0
        %2799 = vmatpush1.bf16.msra.mxu0 0
        %2800 = vmatprep.subr.bf16.mxu0 0
        %2801 = vmatpush1.bf16.msra.mxu0 0
        %2802 = vmatprep.subr.bf16.mxu0 0
        %2803 = vmatpush1.bf16.msra.mxu0 0
        %2804 = vmatprep.subr.bf16.mxu0 0
        %2805 = vmatpush1.bf16.msra.mxu0 0
        %2806 = vmatprep.subr.bf16.mxu0 0
        %2807 = vmatpush1.bf16.msra.mxu0 0
        %2808 = vmatprep.subr.bf16.mxu0 0
        %2809 = vmatpush1.bf16.msra.mxu0 0
        %2810 = vmatprep.mubr.bf16.mxu0 0
        %2811 = vmatmul.mubr.bf16.gmra.mrb[0].mxu0 %v1838
        %v2812 = vpop.f32.mrb[0].mxu0
        %v2813 = vadd.f32 %v2547, %v2812
        %v2814 = vpop.f32.mrb[0].mxu0
        %v2815 = vadd.f32 %v2549, %v2814
        %v2816 = vpop.f32.mrb[0].mxu0
        %v2817 = vadd.f32 %v2551, %v2816
        %v2818 = vpop.f32.mrb[0].mxu0
        %v2819 = vadd.f32 %v2553, %v2818
        %2820 = vmatprep.mubr.bf16.mxu0 0
        %2821 = vmatmul.mubr.bf16.gmra.mrb[0].mxu0 %v1839
        %v2822 = vpop.f32.mrb[0].mxu0
        %v2823 = vadd.f32 %v2557, %v2822
        %v2824 = vpop.f32.mrb[0].mxu0
        %v2825 = vadd.f32 %v2559, %v2824
        %v2826 = vpop.f32.mrb[0].mxu0
        %v2827 = vadd.f32 %v2561, %v2826
        %v2828 = vpop.f32.mrb[0].mxu0
        %v2829 = vadd.f32 %v2563, %v2828
        %2830 = vdwg.mxu0
        %v2831 = vadd.f32 %v2260, %v1373
        %v2832 = vadd.f32 %v2261, %v1377
        %v2833 = vadd.f32 %v2262, %v1381
        %v2834 = vadd.f32 %v2263, %v1385
        %v2835 = vrot.slane %v2831, 7
        %v2836 = vrot.slane %v2832, 7
        %v2837 = vrot.slane %v2833, 7
        %v2838 = vrot.slane %v2834, 7
        %v2839 = vsel %vm1453, %v2837, %v2838
        %v2840 = vsel %vm1453, %v2836, %v2837
        %v2841 = vsel %vm1453, %v2835, %v2836
        %v2842 = vsel %vm1453, %v2838, %v2835
        %v2843 = vsel %vm1441, 0.0, %v2842
        %v2844 = vsel %vm1442, 0.0, %v2841
        %v2845 = vsel %vm1443, 0.0, %v2840
        %v2846 = vsel %vm1444, 0.0, %v2839
        %v2847 = vrot.slane %v2831, 1
        %v2848 = vrot.slane %v2832, 1
        %v2849 = vrot.slane %v2833, 1
        %v2850 = vrot.slane %v2834, 1
        %v2851 = vsel %vm1466, %v2849, %v2850
        %v2852 = vsel %vm1466, %v2848, %v2849
        %v2853 = vsel %vm1466, %v2847, %v2848
        %v2854 = vsel %vm1466, %v2850, %v2847
        %v2855 = vsel %vm1445, 0.0, %v2853
        %v2856 = vsel %vm1446, 0.0, %v2852
        %v2857 = vsel %vm1447, 0.0, %v2851
        %v2858 = vsel %vm1448, 0.0, %v2854
        %v2859 = vpack.c.bf16 %v2844, %v2843
        %v2860 = vpack.c.bf16 %v2846, %v2845
        %s2861 = scalar_lea.vmem [#allocation7], 384
        %v2862 = vld [vmem:[%s2861] sm:$0xf]
        %v2863 = vld [vmem:[%s2861 + $0x4] sm:$0xf]
        %v2864 = vld [vmem:[%s2861 + $0x8] sm:$0xf]
        %v2865 = vld [vmem:[%s2861 + $0xc] sm:$0xf]
        %v2866 = vld [vmem:[%s2861 + $0x10] sm:$0xf]
        %v2867 = vld [vmem:[%s2861 + $0x14] sm:$0xf]
        %v2868 = vld [vmem:[%s2861 + $0x18] sm:$0xf]
        %v2869 = vld [vmem:[%s2861 + $0x1c] sm:$0xf]
        %v2870 = vld [vmem:[%s2861 + $0x20] sm:$0xf]
        %v2871 = vld [vmem:[%s2861 + $0x24] sm:$0xf]
        %v2872 = vld [vmem:[%s2861 + $0x28] sm:$0xf]
        %v2873 = vld [vmem:[%s2861 + $0x2c] sm:$0xf]
        %v2874 = vld [vmem:[%s2861 + $0x30] sm:$0xf]
        %v2875 = vld [vmem:[%s2861 + $0x34] sm:$0xf]
        %v2876 = vld [vmem:[%s2861 + $0x38] sm:$0xf]
        %v2877 = vld [vmem:[%s2861 + $0x3c] sm:$0xf]
        %v2878 = vpack.c.bf16 %v2832, %v2831
        %v2879 = vpack.c.bf16 %v2834, %v2833
        %s2880 = scalar_lea.vmem [#allocation7], 448
        %v2881 = vld [vmem:[%s2880] sm:$0xf]
        %v2882 = vld [vmem:[%s2880 + $0x4] sm:$0xf]
        %v2883 = vld [vmem:[%s2880 + $0x8] sm:$0xf]
        %v2884 = vld [vmem:[%s2880 + $0xc] sm:$0xf]
        %v2885 = vld [vmem:[%s2880 + $0x10] sm:$0xf]
        %v2886 = vld [vmem:[%s2880 + $0x14] sm:$0xf]
        %v2887 = vld [vmem:[%s2880 + $0x18] sm:$0xf]
        %v2888 = vld [vmem:[%s2880 + $0x1c] sm:$0xf]
        %v2889 = vld [vmem:[%s2880 + $0x20] sm:$0xf]
        %v2890 = vld [vmem:[%s2880 + $0x24] sm:$0xf]
        %v2891 = vld [vmem:[%s2880 + $0x28] sm:$0xf]
        %v2892 = vld [vmem:[%s2880 + $0x2c] sm:$0xf]
        %v2893 = vld [vmem:[%s2880 + $0x30] sm:$0xf]
        %v2894 = vld [vmem:[%s2880 + $0x34] sm:$0xf]
        %v2895 = vld [vmem:[%s2880 + $0x38] sm:$0xf]
        %v2896 = vld [vmem:[%s2880 + $0x3c] sm:$0xf]
        %v2913 = vunpack.c.l.b16 %v2881
        %v2914 = vunpack.c.l.b16 %v2882
        %v2915 = vunpack.c.l.b16 %v2883
        %v2916 = vunpack.c.l.b16 %v2884
        %v2917 = vunpack.c.l.b16 %v2885
        %v2918 = vunpack.c.l.b16 %v2886
        %v2919 = vunpack.c.l.b16 %v2887
        %v2920 = vunpack.c.l.b16 %v2888
        %v2921 = vunpack.c.l.b16 %v2889
        %v2922 = vunpack.c.l.b16 %v2890
        %v2923 = vunpack.c.l.b16 %v2891
        %v2924 = vunpack.c.l.b16 %v2892
        %v2925 = vunpack.c.l.b16 %v2893
        %v2926 = vunpack.c.l.b16 %v2894
        %v2927 = vunpack.c.l.b16 %v2895
        %v2928 = vunpack.c.l.b16 %v2896
        %v2929 = vpack.c.b16 %v2914, %v2913
        %v2930 = vpack.c.b16 %v2916, %v2915
        %v2931 = vpack.c.b16 %v2918, %v2917
        %v2932 = vpack.c.b16 %v2920, %v2919
        %v2933 = vpack.c.b16 %v2922, %v2921
        %v2934 = vpack.c.b16 %v2924, %v2923
        %v2935 = vpack.c.b16 %v2926, %v2925
        %v2936 = vpack.c.b16 %v2928, %v2927
        %2945 = vmatprep.subr.bf16.mxu0 0
        %2946 = vmatpush1.bf16.msra.mxu0 %v2929
        %2947 = vmatprep.subr.bf16.mxu0 0
        %2948 = vmatpush1.bf16.msra.mxu0 %v2930
        %2949 = vmatprep.subr.bf16.mxu0 0
        %2950 = vmatpush1.bf16.msra.mxu0 %v2931
        %2951 = vmatprep.subr.bf16.mxu0 0
        %2952 = vmatpush1.bf16.msra.mxu0 %v2932
        %2953 = vmatprep.subr.bf16.mxu0 0
        %2954 = vmatpush1.bf16.msra.mxu0 %v2933
        %2955 = vmatprep.subr.bf16.mxu0 0
        %2956 = vmatpush1.bf16.msra.mxu0 %v2934
        %2957 = vmatprep.subr.bf16.mxu0 0
        %2958 = vmatpush1.bf16.msra.mxu0 %v2935
        %2959 = vmatprep.subr.bf16.mxu0 0
        %2960 = vmatpush1.bf16.msra.mxu0 %v2936
        %2961 = vmatprep.subr.bf16.mxu0 0
        %2962 = vmatpush1.bf16.msra.mxu0 0
        %2963 = vmatprep.subr.bf16.mxu0 0
        %2964 = vmatpush1.bf16.msra.mxu0 0
        %2965 = vmatprep.subr.bf16.mxu0 0
        %2966 = vmatpush1.bf16.msra.mxu0 0
        %2967 = vmatprep.subr.bf16.mxu0 0
        %2968 = vmatpush1.bf16.msra.mxu0 0
        %2969 = vmatprep.subr.bf16.mxu0 0
        %2970 = vmatpush1.bf16.msra.mxu0 0
        %2971 = vmatprep.subr.bf16.mxu0 0
        %2972 = vmatpush1.bf16.msra.mxu0 0
        %2973 = vmatprep.subr.bf16.mxu0 0
        %2974 = vmatpush1.bf16.msra.mxu0 0
        %2975 = vmatprep.subr.bf16.mxu0 0
        %2976 = vmatpush1.bf16.msra.mxu0 0
        %2977 = vmatprep.mubr.bf16.mxu0 0
        %2978 = vmatmul.mubr.bf16.gmra.mrb[0].mxu0 %v2878
        %v2979 = vpop.f32.mrb[0].mxu0
        %v2980 = vadd.f32 0.0, %v2979
        %v2981 = vpop.f32.mrb[0].mxu0
        %v2982 = vpop.f32.mrb[0].mxu0
        %v2983 = vadd.f32 0.0, %v2982
        %v2984 = vpop.f32.mrb[0].mxu0
        %2985 = vmatprep.mubr.bf16.mxu0 0
        %2986 = vmatmul.mubr.bf16.gmra.mrb[0].mxu0 %v2879
        %v2987 = vpop.f32.mrb[0].mxu0
        %v2988 = vadd.f32 0.0, %v2987
        %v2989 = vpop.f32.mrb[0].mxu0
        %v2990 = vpop.f32.mrb[0].mxu0
        %v2991 = vadd.f32 0.0, %v2990
        %v2992 = vpop.f32.mrb[0].mxu0
        %2993 = vdwg.mxu0
        %v3010 = vunpack.c.l.b16 %v2862
        %v3011 = vunpack.c.l.b16 %v2863
        %v3012 = vunpack.c.l.b16 %v2864
        %v3013 = vunpack.c.l.b16 %v2865
        %v3014 = vunpack.c.l.b16 %v2866
        %v3015 = vunpack.c.l.b16 %v2867
        %v3016 = vunpack.c.l.b16 %v2868
        %v3017 = vunpack.c.l.b16 %v2869
        %v3018 = vunpack.c.l.b16 %v2870
        %v3019 = vunpack.c.l.b16 %v2871
        %v3020 = vunpack.c.l.b16 %v2872
        %v3021 = vunpack.c.l.b16 %v2873
        %v3022 = vunpack.c.l.b16 %v2874
        %v3023 = vunpack.c.l.b16 %v2875
        %v3024 = vunpack.c.l.b16 %v2876
        %v3025 = vunpack.c.l.b16 %v2877
        %v3026 = vpack.c.b16 %v3011, %v3010
        %v3027 = vpack.c.b16 %v3013, %v3012
        %v3028 = vpack.c.b16 %v3015, %v3014
        %v3029 = vpack.c.b16 %v3017, %v3016
        %v3030 = vpack.c.b16 %v3019, %v3018
        %v3031 = vpack.c.b16 %v3021, %v3020
        %v3032 = vpack.c.b16 %v3023, %v3022
        %v3033 = vpack.c.b16 %v3025, %v3024
        %3042 = vmatprep.subr.bf16.mxu0 0
        %3043 = vmatpush1.bf16.msra.mxu0 %v3026
        %3044 = vmatprep.subr.bf16.mxu0 0
        %3045 = vmatpush1.bf16.msra.mxu0 %v3027
        %3046 = vmatprep.subr.bf16.mxu0 0
        %3047 = vmatpush1.bf16.msra.mxu0 %v3028
        %3048 = vmatprep.subr.bf16.mxu0 0
        %3049 = vmatpush1.bf16.msra.mxu0 %v3029
        %3050 = vmatprep.subr.bf16.mxu0 0
        %3051 = vmatpush1.bf16.msra.mxu0 %v3030
        %3052 = vmatprep.subr.bf16.mxu0 0
        %3053 = vmatpush1.bf16.msra.mxu0 %v3031
        %3054 = vmatprep.subr.bf16.mxu0 0
        %3055 = vmatpush1.bf16.msra.mxu0 %v3032
        %3056 = vmatprep.subr.bf16.mxu0 0
        %3057 = vmatpush1.bf16.msra.mxu0 %v3033
        %3058 = vmatprep.subr.bf16.mxu0 0
        %3059 = vmatpush1.bf16.msra.mxu0 0
        %3060 = vmatprep.subr.bf16.mxu0 0
        %3061 = vmatpush1.bf16.msra.mxu0 0
        %3062 = vmatprep.subr.bf16.mxu0 0
        %3063 = vmatpush1.bf16.msra.mxu0 0
        %3064 = vmatprep.subr.bf16.mxu0 0
        %3065 = vmatpush1.bf16.msra.mxu0 0
        %3066 = vmatprep.subr.bf16.mxu0 0
        %3067 = vmatpush1.bf16.msra.mxu0 0
        %3068 = vmatprep.subr.bf16.mxu0 0
        %3069 = vmatpush1.bf16.msra.mxu0 0
        %3070 = vmatprep.subr.bf16.mxu0 0
        %3071 = vmatpush1.bf16.msra.mxu0 0
        %3072 = vmatprep.subr.bf16.mxu0 0
        %3073 = vmatpush1.bf16.msra.mxu0 0
        %3074 = vmatprep.mubr.bf16.mxu0 0
        %3075 = vmatmul.mubr.bf16.gmra.mrb[0].mxu0 %v2859
        %v3076 = vpop.f32.mrb[0].mxu0
        %v3077 = vadd.f32 %v2980, %v3076
        %v3078 = vpop.f32.mrb[0].mxu0
        %v3079 = vpop.f32.mrb[0].mxu0
        %v3080 = vadd.f32 %v2983, %v3079
        %v3081 = vpop.f32.mrb[0].mxu0
        %3082 = vmatprep.mubr.bf16.mxu0 0
        %3083 = vmatmul.mubr.bf16.gmra.mrb[0].mxu0 %v2860
        %v3084 = vpop.f32.mrb[0].mxu0
        %v3085 = vadd.f32 %v2988, %v3084
        %v3086 = vpop.f32.mrb[0].mxu0
        %v3087 = vpop.f32.mrb[0].mxu0
        %v3088 = vadd.f32 %v2991, %v3087
        %v3089 = vpop.f32.mrb[0].mxu0
        %3090 = vdwg.mxu0
        %v3091 = vpack.c.bf16 %v2856, %v2855
        %v3092 = vpack.c.bf16 %v2858, %v2857
        %s3093 = scalar_lea.vmem [#allocation7], 512
        %v3094 = vld [vmem:[%s3093] sm:$0xf]
        %v3095 = vld [vmem:[%s3093 + $0x4] sm:$0xf]
        %v3096 = vld [vmem:[%s3093 + $0x8] sm:$0xf]
        %v3097 = vld [vmem:[%s3093 + $0xc] sm:$0xf]
        %v3098 = vld [vmem:[%s3093 + $0x10] sm:$0xf]
        %v3099 = vld [vmem:[%s3093 + $0x14] sm:$0xf]
        %v3100 = vld [vmem:[%s3093 + $0x18] sm:$0xf]
        %v3101 = vld [vmem:[%s3093 + $0x1c] sm:$0xf]
        %v3102 = vld [vmem:[%s3093 + $0x20] sm:$0xf]
        %v3103 = vld [vmem:[%s3093 + $0x24] sm:$0xf]
        %v3104 = vld [vmem:[%s3093 + $0x28] sm:$0xf]
        %v3105 = vld [vmem:[%s3093 + $0x2c] sm:$0xf]
        %v3106 = vld [vmem:[%s3093 + $0x30] sm:$0xf]
        %v3107 = vld [vmem:[%s3093 + $0x34] sm:$0xf]
        %v3108 = vld [vmem:[%s3093 + $0x38] sm:$0xf]
        %v3109 = vld [vmem:[%s3093 + $0x3c] sm:$0xf]
        %v3126 = vunpack.c.l.b16 %v3094
        %v3127 = vunpack.c.l.b16 %v3095
        %v3128 = vunpack.c.l.b16 %v3096
        %v3129 = vunpack.c.l.b16 %v3097
        %v3130 = vunpack.c.l.b16 %v3098
        %v3131 = vunpack.c.l.b16 %v3099
        %v3132 = vunpack.c.l.b16 %v3100
        %v3133 = vunpack.c.l.b16 %v3101
        %v3134 = vunpack.c.l.b16 %v3102
        %v3135 = vunpack.c.l.b16 %v3103
        %v3136 = vunpack.c.l.b16 %v3104
        %v3137 = vunpack.c.l.b16 %v3105
        %v3138 = vunpack.c.l.b16 %v3106
        %v3139 = vunpack.c.l.b16 %v3107
        %v3140 = vunpack.c.l.b16 %v3108
        %v3141 = vunpack.c.l.b16 %v3109
        %v3142 = vpack.c.b16 %v3127, %v3126
        %v3143 = vpack.c.b16 %v3129, %v3128
        %v3144 = vpack.c.b16 %v3131, %v3130
        %v3145 = vpack.c.b16 %v3133, %v3132
        %v3146 = vpack.c.b16 %v3135, %v3134
        %v3147 = vpack.c.b16 %v3137, %v3136
        %v3148 = vpack.c.b16 %v3139, %v3138
        %v3149 = vpack.c.b16 %v3141, %v3140
        %3158 = vmatprep.subr.bf16.mxu0 0
        %3159 = vmatpush1.bf16.msra.mxu0 %v3142
        %3160 = vmatprep.subr.bf16.mxu0 0
        %3161 = vmatpush1.bf16.msra.mxu0 %v3143
        %3162 = vmatprep.subr.bf16.mxu0 0
        %3163 = vmatpush1.bf16.msra.mxu0 %v3144
        %3164 = vmatprep.subr.bf16.mxu0 0
        %3165 = vmatpush1.bf16.msra.mxu0 %v3145
        %3166 = vmatprep.subr.bf16.mxu0 0
        %3167 = vmatpush1.bf16.msra.mxu0 %v3146
        %3168 = vmatprep.subr.bf16.mxu0 0
        %3169 = vmatpush1.bf16.msra.mxu0 %v3147
        %3170 = vmatprep.subr.bf16.mxu0 0
        %3171 = vmatpush1.bf16.msra.mxu0 %v3148
        %3172 = vmatprep.subr.bf16.mxu0 0
        %3173 = vmatpush1.bf16.msra.mxu0 %v3149
        %3174 = vmatprep.subr.bf16.mxu0 0
        %3175 = vmatpush1.bf16.msra.mxu0 0
        %3176 = vmatprep.subr.bf16.mxu0 0
        %3177 = vmatpush1.bf16.msra.mxu0 0
        %3178 = vmatprep.subr.bf16.mxu0 0
        %3179 = vmatpush1.bf16.msra.mxu0 0
        %3180 = vmatprep.subr.bf16.mxu0 0
        %3181 = vmatpush1.bf16.msra.mxu0 0
        %3182 = vmatprep.subr.bf16.mxu0 0
        %3183 = vmatpush1.bf16.msra.mxu0 0
        %3184 = vmatprep.subr.bf16.mxu0 0
        %3185 = vmatpush1.bf16.msra.mxu0 0
        %3186 = vmatprep.subr.bf16.mxu0 0
        %3187 = vmatpush1.bf16.msra.mxu0 0
        %3188 = vmatprep.subr.bf16.mxu0 0
        %3189 = vmatpush1.bf16.msra.mxu0 0
        %3190 = vmatprep.mubr.bf16.mxu0 0
        %3191 = vmatmul.mubr.bf16.gmra.mrb[0].mxu0 %v3091
        %v3192 = vpop.f32.mrb[0].mxu0
        %v3193 = vadd.f32 0.0, %v3192
        %v3194 = vpop.f32.mrb[0].mxu0
        %v3195 = vpop.f32.mrb[0].mxu0
        %v3196 = vadd.f32 0.0, %v3195
        %v3197 = vpop.f32.mrb[0].mxu0
        %3198 = vmatprep.mubr.bf16.mxu0 0
        %3199 = vmatmul.mubr.bf16.gmra.mrb[0].mxu0 %v3092
        %v3200 = vpop.f32.mrb[0].mxu0
        %v3201 = vadd.f32 0.0, %v3200
        %v3202 = vpop.f32.mrb[0].mxu0
        %v3203 = vpop.f32.mrb[0].mxu0
        %v3204 = vadd.f32 0.0, %v3203
        %v3205 = vpop.f32.mrb[0].mxu0
        %3206 = vdwg.mxu0
        %v3207 = vadd.f32 %v3077, %v3193
        %v3208 = vadd.f32 %v3080, %v3196
        %v3209 = vadd.f32 %v3085, %v3201
        %v3210 = vadd.f32 %v3088, %v3204
        %v3211 = vlaneseq
        %v3212 = vshrl.u32 %v3211, 7
        %v3213 = vsub.s32 2, %v3212
        %v3214 = vrot.slane %v1387, %v3213
        %v3215 = vadd.f32 %v3207, %v3214
        %v3216 = vadd.f32 %v3208, %v3214
        %v3217 = vadd.f32 %v3209, %v3214
        %v3218 = vadd.f32 %v3210, %v3214
        %v3219 = vmax.f32 %v3215, 0.0
        %v3220 = vmax.f32 %v3216, 0.0
        %v3221 = vmax.f32 %v3217, 0.0
        %v3222 = vmax.f32 %v3218, 0.0
        %v3223 = vpack.c.bf16 %v3220, %v3219
        %v3224 = vpack.c.bf16 %v3222, %v3221
        %s3225 = scalar_lea.vmem [#allocation8], 512
        %v3226 = vld [vmem:[%s3225] sm:$0xff]
        %v3227 = vld [vmem:[%s3225 + $0x8] sm:$0xff]
        %v3228 = vld [vmem:[%s3225 + $0x10] sm:$0xff]
        %v3229 = vld [vmem:[%s3225 + $0x18] sm:$0xff]
        %v3230 = vld [vmem:[%s3225 + $0x20] sm:$0xff]
        %v3231 = vld [vmem:[%s3225 + $0x28] sm:$0xff]
        %v3232 = vld [vmem:[%s3225 + $0x30] sm:$0xff]
        %v3233 = vld [vmem:[%s3225 + $0x38] sm:$0xff]
        %v3234 = vld [vmem:[%s3225 + $0x40] sm:$0xff]
        %v3235 = vld [vmem:[%s3225 + $0x48] sm:$0xff]
        %v3236 = vld [vmem:[%s3225 + $0x50] sm:$0xff]
        %v3237 = vld [vmem:[%s3225 + $0x58] sm:$0xff]
        %v3238 = vld [vmem:[%s3225 + $0x60] sm:$0xff]
        %v3239 = vld [vmem:[%s3225 + $0x68] sm:$0xff]
        %v3240 = vld [vmem:[%s3225 + $0x70] sm:$0xff]
        %v3241 = vld [vmem:[%s3225 + $0x78] sm:$0xff]
        %v3242 = vld [vmem:[%s3225 + $0x80] sm:$0xff]
        %v3243 = vld [vmem:[%s3225 + $0x88] sm:$0xff]
        %v3244 = vld [vmem:[%s3225 + $0x90] sm:$0xff]
        %v3245 = vld [vmem:[%s3225 + $0x98] sm:$0xff]
        %v3246 = vld [vmem:[%s3225 + $0xa0] sm:$0xff]
        %v3247 = vld [vmem:[%s3225 + $0xa8] sm:$0xff]
        %v3248 = vld [vmem:[%s3225 + $0xb0] sm:$0xff]
        %v3249 = vld [vmem:[%s3225 + $0xb8] sm:$0xff]
        %v3250 = vld [vmem:[%s3225 + $0xc0] sm:$0xff]
        %v3251 = vld [vmem:[%s3225 + $0xc8] sm:$0xff]
        %v3252 = vld [vmem:[%s3225 + $0xd0] sm:$0xff]
        %v3253 = vld [vmem:[%s3225 + $0xd8] sm:$0xff]
        %v3254 = vld [vmem:[%s3225 + $0xe0] sm:$0xff]
        %v3255 = vld [vmem:[%s3225 + $0xe8] sm:$0xff]
        %v3256 = vld [vmem:[%s3225 + $0xf0] sm:$0xff]
        %v3257 = vld [vmem:[%s3225 + $0xf8] sm:$0xff]
        %v3290 = vunpack.c.l.b16 %v3226
        %v3291 = vunpack.c.h.b16 %v3226
        %v3292 = vunpack.c.l.b16 %v3227
        %v3293 = vunpack.c.h.b16 %v3227
        %v3294 = vunpack.c.l.b16 %v3228
        %v3295 = vunpack.c.h.b16 %v3228
        %v3296 = vunpack.c.l.b16 %v3229
        %v3297 = vunpack.c.h.b16 %v3229
        %v3298 = vunpack.c.l.b16 %v3230
        %v3299 = vunpack.c.h.b16 %v3230
        %v3300 = vunpack.c.l.b16 %v3231
        %v3301 = vunpack.c.h.b16 %v3231
        %v3302 = vunpack.c.l.b16 %v3232
        %v3303 = vunpack.c.h.b16 %v3232
        %v3304 = vunpack.c.l.b16 %v3233
        %v3305 = vunpack.c.h.b16 %v3233
        %v3306 = vunpack.c.l.b16 %v3234
        %v3307 = vunpack.c.h.b16 %v3234
        %v3308 = vunpack.c.l.b16 %v3235
        %v3309 = vunpack.c.h.b16 %v3235
        %v3310 = vunpack.c.l.b16 %v3236
        %v3311 = vunpack.c.h.b16 %v3236
        %v3312 = vunpack.c.l.b16 %v3237
        %v3313 = vunpack.c.h.b16 %v3237
        %v3314 = vunpack.c.l.b16 %v3238
        %v3315 = vunpack.c.h.b16 %v3238
        %v3316 = vunpack.c.l.b16 %v3239
        %v3317 = vunpack.c.h.b16 %v3239
        %v3318 = vunpack.c.l.b16 %v3240
        %v3319 = vunpack.c.h.b16 %v3240
        %v3320 = vunpack.c.l.b16 %v3241
        %v3321 = vunpack.c.h.b16 %v3241
        %v3322 = vunpack.c.l.b16 %v3242
        %v3323 = vunpack.c.h.b16 %v3242
        %v3324 = vunpack.c.l.b16 %v3243
        %v3325 = vunpack.c.h.b16 %v3243
        %v3326 = vunpack.c.l.b16 %v3244
        %v3327 = vunpack.c.h.b16 %v3244
        %v3328 = vunpack.c.l.b16 %v3245
        %v3329 = vunpack.c.h.b16 %v3245
        %v3330 = vunpack.c.l.b16 %v3246
        %v3331 = vunpack.c.h.b16 %v3246
        %v3332 = vunpack.c.l.b16 %v3247
        %v3333 = vunpack.c.h.b16 %v3247
        %v3334 = vunpack.c.l.b16 %v3248
        %v3335 = vunpack.c.h.b16 %v3248
        %v3336 = vunpack.c.l.b16 %v3249
        %v3337 = vunpack.c.h.b16 %v3249
        %v3338 = vunpack.c.l.b16 %v3250
        %v3339 = vunpack.c.h.b16 %v3250
        %v3340 = vunpack.c.l.b16 %v3251
        %v3341 = vunpack.c.h.b16 %v3251
        %v3342 = vunpack.c.l.b16 %v3252
        %v3343 = vunpack.c.h.b16 %v3252
        %v3344 = vunpack.c.l.b16 %v3253
        %v3345 = vunpack.c.h.b16 %v3253
        %v3346 = vunpack.c.l.b16 %v3254
        %v3347 = vunpack.c.h.b16 %v3254
        %v3348 = vunpack.c.l.b16 %v3255
        %v3349 = vunpack.c.h.b16 %v3255
        %v3350 = vunpack.c.l.b16 %v3256
        %v3351 = vunpack.c.h.b16 %v3256
        %v3352 = vunpack.c.l.b16 %v3257
        %v3353 = vunpack.c.h.b16 %v3257
        %v3354 = vpack.c.b16 %v3294, %v3290
        %v3355 = vpack.c.b16 %v3295, %v3291
        %v3356 = vpack.c.b16 %v3296, %v3292
        %v3357 = vpack.c.b16 %v3297, %v3293
        %v3358 = vpack.c.b16 %v3302, %v3298
        %v3359 = vpack.c.b16 %v3303, %v3299
        %v3360 = vpack.c.b16 %v3304, %v3300
        %v3361 = vpack.c.b16 %v3305, %v3301
        %v3362 = vpack.c.b16 %v3310, %v3306
        %v3363 = vpack.c.b16 %v3311, %v3307
        %v3364 = vpack.c.b16 %v3312, %v3308
        %v3365 = vpack.c.b16 %v3313, %v3309
        %v3366 = vpack.c.b16 %v3318, %v3314
        %v3367 = vpack.c.b16 %v3319, %v3315
        %v3368 = vpack.c.b16 %v3320, %v3316
        %v3369 = vpack.c.b16 %v3321, %v3317
        %v3370 = vpack.c.b16 %v3326, %v3322
        %v3371 = vpack.c.b16 %v3327, %v3323
        %v3372 = vpack.c.b16 %v3328, %v3324
        %v3373 = vpack.c.b16 %v3329, %v3325
        %v3374 = vpack.c.b16 %v3334, %v3330
        %v3375 = vpack.c.b16 %v3335, %v3331
        %v3376 = vpack.c.b16 %v3336, %v3332
        %v3377 = vpack.c.b16 %v3337, %v3333
        %v3378 = vpack.c.b16 %v3342, %v3338
        %v3379 = vpack.c.b16 %v3343, %v3339
        %v3380 = vpack.c.b16 %v3344, %v3340
        %v3381 = vpack.c.b16 %v3345, %v3341
        %v3382 = vpack.c.b16 %v3350, %v3346
        %v3383 = vpack.c.b16 %v3351, %v3347
        %v3384 = vpack.c.b16 %v3352, %v3348
        %v3385 = vpack.c.b16 %v3353, %v3349
        %3418 = vmatprep.subr.bf16.mxu0 %v3355
        %3419 = vmatpush1.bf16.msra.mxu0 %v3354
        %3420 = vmatprep.subr.bf16.mxu0 %v3359
        %3421 = vmatpush1.bf16.msra.mxu0 %v3358
        %3422 = vmatprep.subr.bf16.mxu0 %v3363
        %3423 = vmatpush1.bf16.msra.mxu0 %v3362
        %3424 = vmatprep.subr.bf16.mxu0 %v3367
        %3425 = vmatpush1.bf16.msra.mxu0 %v3366
        %3426 = vmatprep.subr.bf16.mxu0 %v3371
        %3427 = vmatpush1.bf16.msra.mxu0 %v3370
        %3428 = vmatprep.subr.bf16.mxu0 %v3375
        %3429 = vmatpush1.bf16.msra.mxu0 %v3374
        %3430 = vmatprep.subr.bf16.mxu0 %v3379
        %3431 = vmatpush1.bf16.msra.mxu0 %v3378
        %3432 = vmatprep.subr.bf16.mxu0 %v3383
        %3433 = vmatpush1.bf16.msra.mxu0 %v3382
        %3434 = vmatprep.subr.bf16.mxu0 0
        %3435 = vmatpush1.bf16.msra.mxu0 0
        %3436 = vmatprep.subr.bf16.mxu0 0
        %3437 = vmatpush1.bf16.msra.mxu0 0
        %3438 = vmatprep.subr.bf16.mxu0 0
        %3439 = vmatpush1.bf16.msra.mxu0 0
        %3440 = vmatprep.subr.bf16.mxu0 0
        %3441 = vmatpush1.bf16.msra.mxu0 0
        %3442 = vmatprep.subr.bf16.mxu0 0
        %3443 = vmatpush1.bf16.msra.mxu0 0
        %3444 = vmatprep.subr.bf16.mxu0 0
        %3445 = vmatpush1.bf16.msra.mxu0 0
        %3446 = vmatprep.subr.bf16.mxu0 0
        %3447 = vmatpush1.bf16.msra.mxu0 0
        %3448 = vmatprep.subr.bf16.mxu0 0
        %3449 = vmatpush1.bf16.msra.mxu0 0
        %3450 = vmatprep.mubr.bf16.mxu0 0
        %3451 = vmatmul.mubr.bf16.gmra.mrb[0].mxu0 %v3223
        %v3452 = vpop.f32.mrb[0].mxu0
        %v3453 = vadd.f32 0.0, %v3452
        %v3454 = vpop.f32.mrb[0].mxu0
        %v3455 = vadd.f32 0.0, %v3454
        %v3456 = vpop.f32.mrb[0].mxu0
        %v3457 = vadd.f32 0.0, %v3456
        %v3458 = vpop.f32.mrb[0].mxu0
        %v3459 = vadd.f32 0.0, %v3458
        %3460 = vmatprep.mubr.bf16.mxu0 0
        %3461 = vmatmul.mubr.bf16.gmra.mrb[0].mxu0 %v3224
        %v3462 = vpop.f32.mrb[0].mxu0
        %v3463 = vadd.f32 0.0, %v3462
        %v3464 = vpop.f32.mrb[0].mxu0
        %v3465 = vadd.f32 0.0, %v3464
        %v3466 = vpop.f32.mrb[0].mxu0
        %v3467 = vadd.f32 0.0, %v3466
        %v3468 = vpop.f32.mrb[0].mxu0
        %v3469 = vadd.f32 0.0, %v3468
        %3470 = vdwg.mxu0
        %3471 = vmatprep.subr.bf16.mxu0 %v3357
        %3472 = vmatpush1.bf16.msra.mxu0 %v3356
        %3473 = vmatprep.subr.bf16.mxu0 %v3361
        %3474 = vmatpush1.bf16.msra.mxu0 %v3360
        %3475 = vmatprep.subr.bf16.mxu0 %v3365
        %3476 = vmatpush1.bf16.msra.mxu0 %v3364
        %3477 = vmatprep.subr.bf16.mxu0 %v3369
        %3478 = vmatpush1.bf16.msra.mxu0 %v3368
        %3479 = vmatprep.subr.bf16.mxu0 %v3373
        %3480 = vmatpush1.bf16.msra.mxu0 %v3372
        %3481 = vmatprep.subr.bf16.mxu0 %v3377
        %3482 = vmatpush1.bf16.msra.mxu0 %v3376
        %3483 = vmatprep.subr.bf16.mxu0 %v3381
        %3484 = vmatpush1.bf16.msra.mxu0 %v3380
        %3485 = vmatprep.subr.bf16.mxu0 %v3385
        %3486 = vmatpush1.bf16.msra.mxu0 %v3384
        %3487 = vmatprep.subr.bf16.mxu0 0
        %3488 = vmatpush1.bf16.msra.mxu0 0
        %3489 = vmatprep.subr.bf16.mxu0 0
        %3490 = vmatpush1.bf16.msra.mxu0 0
        %3491 = vmatprep.subr.bf16.mxu0 0
        %3492 = vmatpush1.bf16.msra.mxu0 0
        %3493 = vmatprep.subr.bf16.mxu0 0
        %3494 = vmatpush1.bf16.msra.mxu0 0
        %3495 = vmatprep.subr.bf16.mxu0 0
        %3496 = vmatpush1.bf16.msra.mxu0 0
        %3497 = vmatprep.subr.bf16.mxu0 0
        %3498 = vmatpush1.bf16.msra.mxu0 0
        %3499 = vmatprep.subr.bf16.mxu0 0
        %3500 = vmatpush1.bf16.msra.mxu0 0
        %3501 = vmatprep.subr.bf16.mxu0 0
        %3502 = vmatpush1.bf16.msra.mxu0 0
        %3503 = vmatprep.mubr.bf16.mxu0 0
        %3504 = vmatmul.mubr.bf16.gmra.mrb[0].mxu0 %v3223
        %v3505 = vpop.f32.mrb[0].mxu0
        %v3506 = vadd.f32 0.0, %v3505
        %v3507 = vpop.f32.mrb[0].mxu0
        %v3508 = vadd.f32 0.0, %v3507
        %v3509 = vpop.f32.mrb[0].mxu0
        %v3510 = vadd.f32 0.0, %v3509
        %v3511 = vpop.f32.mrb[0].mxu0
        %v3512 = vadd.f32 0.0, %v3511
        %3513 = vmatprep.mubr.bf16.mxu0 0
        %3514 = vmatmul.mubr.bf16.gmra.mrb[0].mxu0 %v3224
        %v3515 = vpop.f32.mrb[0].mxu0
        %v3516 = vadd.f32 0.0, %v3515
        %v3517 = vpop.f32.mrb[0].mxu0
        %v3518 = vadd.f32 0.0, %v3517
        %v3519 = vpop.f32.mrb[0].mxu0
        %v3520 = vadd.f32 0.0, %v3519
        %v3521 = vpop.f32.mrb[0].mxu0
        %v3522 = vadd.f32 0.0, %v3521
        %3523 = vdwg.mxu0
        %v3524 = vadd.f32 %v2760, %v3453
        %v3525 = vadd.f32 %v2762, %v3455
        %v3526 = vadd.f32 %v2813, %v3506
        %v3527 = vadd.f32 %v2815, %v3508
        %v3528 = vadd.f32 %v2764, %v3457
        %v3529 = vadd.f32 %v2766, %v3459
        %v3530 = vadd.f32 %v2817, %v3510
        %v3531 = vadd.f32 %v2819, %v3512
        %v3532 = vadd.f32 %v2770, %v3463
        %v3533 = vadd.f32 %v2772, %v3465
        %v3534 = vadd.f32 %v2823, %v3516
        %v3535 = vadd.f32 %v2825, %v3518
        %v3536 = vadd.f32 %v2774, %v3467
        %v3537 = vadd.f32 %v2776, %v3469
        %v3538 = vadd.f32 %v2827, %v3520
        %v3539 = vadd.f32 %v2829, %v3522
        %v3540 = vpack.c.bf16 %v1378, %v1374
        %v3541 = vpack.c.bf16 %v1386, %v1382
        %s3542 = scalar_lea.vmem [#allocation8], 768
        %v3543 = vld [vmem:[%s3542] sm:$0xff]
        %v3544 = vld [vmem:[%s3542 + $0x8] sm:$0xff]
        %v3545 = vld [vmem:[%s3542 + $0x10] sm:$0xff]
        %v3546 = vld [vmem:[%s3542 + $0x18] sm:$0xff]
        %v3547 = vld [vmem:[%s3542 + $0x20] sm:$0xff]
        %v3548 = vld [vmem:[%s3542 + $0x28] sm:$0xff]
        %v3549 = vld [vmem:[%s3542 + $0x30] sm:$0xff]
        %v3550 = vld [vmem:[%s3542 + $0x38] sm:$0xff]
        %v3551 = vld [vmem:[%s3542 + $0x40] sm:$0xff]
        %v3552 = vld [vmem:[%s3542 + $0x48] sm:$0xff]
        %v3553 = vld [vmem:[%s3542 + $0x50] sm:$0xff]
        %v3554 = vld [vmem:[%s3542 + $0x58] sm:$0xff]
        %v3555 = vld [vmem:[%s3542 + $0x60] sm:$0xff]
        %v3556 = vld [vmem:[%s3542 + $0x68] sm:$0xff]
        %v3557 = vld [vmem:[%s3542 + $0x70] sm:$0xff]
        %v3558 = vld [vmem:[%s3542 + $0x78] sm:$0xff]
        %v3559 = vld [vmem:[%s3542 + $0x80] sm:$0xff]
        %v3560 = vld [vmem:[%s3542 + $0x88] sm:$0xff]
        %v3561 = vld [vmem:[%s3542 + $0x90] sm:$0xff]
        %v3562 = vld [vmem:[%s3542 + $0x98] sm:$0xff]
        %v3563 = vld [vmem:[%s3542 + $0xa0] sm:$0xff]
        %v3564 = vld [vmem:[%s3542 + $0xa8] sm:$0xff]
        %v3565 = vld [vmem:[%s3542 + $0xb0] sm:$0xff]
        %v3566 = vld [vmem:[%s3542 + $0xb8] sm:$0xff]
        %v3567 = vld [vmem:[%s3542 + $0xc0] sm:$0xff]
        %v3568 = vld [vmem:[%s3542 + $0xc8] sm:$0xff]
        %v3569 = vld [vmem:[%s3542 + $0xd0] sm:$0xff]
        %v3570 = vld [vmem:[%s3542 + $0xd8] sm:$0xff]
        %v3571 = vld [vmem:[%s3542 + $0xe0] sm:$0xff]
        %v3572 = vld [vmem:[%s3542 + $0xe8] sm:$0xff]
        %v3573 = vld [vmem:[%s3542 + $0xf0] sm:$0xff]
        %v3574 = vld [vmem:[%s3542 + $0xf8] sm:$0xff]
        %v3607 = vunpack.c.l.b16 %v3543
        %v3608 = vunpack.c.h.b16 %v3543
        %v3609 = vunpack.c.l.b16 %v3544
        %v3610 = vunpack.c.h.b16 %v3544
        %v3611 = vunpack.c.l.b16 %v3545
        %v3612 = vunpack.c.h.b16 %v3545
        %v3613 = vunpack.c.l.b16 %v3546
        %v3614 = vunpack.c.h.b16 %v3546
        %v3615 = vunpack.c.l.b16 %v3547
        %v3616 = vunpack.c.h.b16 %v3547
        %v3617 = vunpack.c.l.b16 %v3548
        %v3618 = vunpack.c.h.b16 %v3548
        %v3619 = vunpack.c.l.b16 %v3549
        %v3620 = vunpack.c.h.b16 %v3549
        %v3621 = vunpack.c.l.b16 %v3550
        %v3622 = vunpack.c.h.b16 %v3550
        %v3623 = vunpack.c.l.b16 %v3551
        %v3624 = vunpack.c.h.b16 %v3551
        %v3625 = vunpack.c.l.b16 %v3552
        %v3626 = vunpack.c.h.b16 %v3552
        %v3627 = vunpack.c.l.b16 %v3553
        %v3628 = vunpack.c.h.b16 %v3553
        %v3629 = vunpack.c.l.b16 %v3554
        %v3630 = vunpack.c.h.b16 %v3554
        %v3631 = vunpack.c.l.b16 %v3555
        %v3632 = vunpack.c.h.b16 %v3555
        %v3633 = vunpack.c.l.b16 %v3556
        %v3634 = vunpack.c.h.b16 %v3556
        %v3635 = vunpack.c.l.b16 %v3557
        %v3636 = vunpack.c.h.b16 %v3557
        %v3637 = vunpack.c.l.b16 %v3558
        %v3638 = vunpack.c.h.b16 %v3558
        %v3639 = vunpack.c.l.b16 %v3559
        %v3640 = vunpack.c.h.b16 %v3559
        %v3641 = vunpack.c.l.b16 %v3560
        %v3642 = vunpack.c.h.b16 %v3560
        %v3643 = vunpack.c.l.b16 %v3561
        %v3644 = vunpack.c.h.b16 %v3561
        %v3645 = vunpack.c.l.b16 %v3562
        %v3646 = vunpack.c.h.b16 %v3562
        %v3647 = vunpack.c.l.b16 %v3563
        %v3648 = vunpack.c.h.b16 %v3563
        %v3649 = vunpack.c.l.b16 %v3564
        %v3650 = vunpack.c.h.b16 %v3564
        %v3651 = vunpack.c.l.b16 %v3565
        %v3652 = vunpack.c.h.b16 %v3565
        %v3653 = vunpack.c.l.b16 %v3566
        %v3654 = vunpack.c.h.b16 %v3566
        %v3655 = vunpack.c.l.b16 %v3567
        %v3656 = vunpack.c.h.b16 %v3567
        %v3657 = vunpack.c.l.b16 %v3568
        %v3658 = vunpack.c.h.b16 %v3568
        %v3659 = vunpack.c.l.b16 %v3569
        %v3660 = vunpack.c.h.b16 %v3569
        %v3661 = vunpack.c.l.b16 %v3570
        %v3662 = vunpack.c.h.b16 %v3570
        %v3663 = vunpack.c.l.b16 %v3571
        %v3664 = vunpack.c.h.b16 %v3571
        %v3665 = vunpack.c.l.b16 %v3572
        %v3666 = vunpack.c.h.b16 %v3572
        %v3667 = vunpack.c.l.b16 %v3573
        %v3668 = vunpack.c.h.b16 %v3573
        %v3669 = vunpack.c.l.b16 %v3574
        %v3670 = vunpack.c.h.b16 %v3574
        %v3671 = vpack.c.b16 %v3611, %v3607
        %v3672 = vpack.c.b16 %v3612, %v3608
        %v3673 = vpack.c.b16 %v3613, %v3609
        %v3674 = vpack.c.b16 %v3614, %v3610
        %v3675 = vpack.c.b16 %v3619, %v3615
        %v3676 = vpack.c.b16 %v3620, %v3616
        %v3677 = vpack.c.b16 %v3621, %v3617
        %v3678 = vpack.c.b16 %v3622, %v3618
        %v3679 = vpack.c.b16 %v3627, %v3623
        %v3680 = vpack.c.b16 %v3628, %v3624
        %v3681 = vpack.c.b16 %v3629, %v3625
        %v3682 = vpack.c.b16 %v3630, %v3626
        %v3683 = vpack.c.b16 %v3635, %v3631
        %v3684 = vpack.c.b16 %v3636, %v3632
        %v3685 = vpack.c.b16 %v3637, %v3633
        %v3686 = vpack.c.b16 %v3638, %v3634
        %v3687 = vpack.c.b16 %v3643, %v3639
        %v3688 = vpack.c.b16 %v3644, %v3640
        %v3689 = vpack.c.b16 %v3645, %v3641
        %v3690 = vpack.c.b16 %v3646, %v3642
        %v3691 = vpack.c.b16 %v3651, %v3647
        %v3692 = vpack.c.b16 %v3652, %v3648
        %v3693 = vpack.c.b16 %v3653, %v3649
        %v3694 = vpack.c.b16 %v3654, %v3650
        %v3695 = vpack.c.b16 %v3659, %v3655
        %v3696 = vpack.c.b16 %v3660, %v3656
        %v3697 = vpack.c.b16 %v3661, %v3657
        %v3698 = vpack.c.b16 %v3662, %v3658
        %v3699 = vpack.c.b16 %v3667, %v3663
        %v3700 = vpack.c.b16 %v3668, %v3664
        %v3701 = vpack.c.b16 %v3669, %v3665
        %v3702 = vpack.c.b16 %v3670, %v3666
        %3735 = vmatprep.subr.bf16.mxu0 %v3672
        %3736 = vmatpush1.bf16.msra.mxu0 %v3671
        %3737 = vmatprep.subr.bf16.mxu0 %v3676
        %3738 = vmatpush1.bf16.msra.mxu0 %v3675
        %3739 = vmatprep.subr.bf16.mxu0 %v3680
        %3740 = vmatpush1.bf16.msra.mxu0 %v3679
        %3741 = vmatprep.subr.bf16.mxu0 %v3684
        %3742 = vmatpush1.bf16.msra.mxu0 %v3683
        %3743 = vmatprep.subr.bf16.mxu0 %v3688
        %3744 = vmatpush1.bf16.msra.mxu0 %v3687
        %3745 = vmatprep.subr.bf16.mxu0 %v3692
        %3746 = vmatpush1.bf16.msra.mxu0 %v3691
        %3747 = vmatprep.subr.bf16.mxu0 %v3696
        %3748 = vmatpush1.bf16.msra.mxu0 %v3695
        %3749 = vmatprep.subr.bf16.mxu0 %v3700
        %3750 = vmatpush1.bf16.msra.mxu0 %v3699
        %3751 = vmatprep.subr.bf16.mxu0 0
        %3752 = vmatpush1.bf16.msra.mxu0 0
        %3753 = vmatprep.subr.bf16.mxu0 0
        %3754 = vmatpush1.bf16.msra.mxu0 0
        %3755 = vmatprep.subr.bf16.mxu0 0
        %3756 = vmatpush1.bf16.msra.mxu0 0
        %3757 = vmatprep.subr.bf16.mxu0 0
        %3758 = vmatpush1.bf16.msra.mxu0 0
        %3759 = vmatprep.subr.bf16.mxu0 0
        %3760 = vmatpush1.bf16.msra.mxu0 0
        %3761 = vmatprep.subr.bf16.mxu0 0
        %3762 = vmatpush1.bf16.msra.mxu0 0
        %3763 = vmatprep.subr.bf16.mxu0 0
        %3764 = vmatpush1.bf16.msra.mxu0 0
        %3765 = vmatprep.subr.bf16.mxu0 0
        %3766 = vmatpush1.bf16.msra.mxu0 0
        %3767 = vmatprep.mubr.bf16.mxu0 0
        %3768 = vmatmul.mubr.bf16.gmra.mrb[0].mxu0 %v3540
        %v3769 = vpop.f32.mrb[0].mxu0
        %v3770 = vadd.f32 0.0, %v3769
        %v3771 = vpop.f32.mrb[0].mxu0
        %v3772 = vadd.f32 0.0, %v3771
        %v3773 = vpop.f32.mrb[0].mxu0
        %v3774 = vadd.f32 0.0, %v3773
        %v3775 = vpop.f32.mrb[0].mxu0
        %v3776 = vadd.f32 0.0, %v3775
        %3777 = vmatprep.mubr.bf16.mxu0 0
        %3778 = vmatmul.mubr.bf16.gmra.mrb[0].mxu0 %v3541
        %v3779 = vpop.f32.mrb[0].mxu0
        %v3780 = vadd.f32 0.0, %v3779
        %v3781 = vpop.f32.mrb[0].mxu0
        %v3782 = vadd.f32 0.0, %v3781
        %v3783 = vpop.f32.mrb[0].mxu0
        %v3784 = vadd.f32 0.0, %v3783
        %v3785 = vpop.f32.mrb[0].mxu0
        %v3786 = vadd.f32 0.0, %v3785
        %3787 = vdwg.mxu0
        %3788 = vmatprep.subr.bf16.mxu0 %v3674
        %3789 = vmatpush1.bf16.msra.mxu0 %v3673
        %3790 = vmatprep.subr.bf16.mxu0 %v3678
        %3791 = vmatpush1.bf16.msra.mxu0 %v3677
        %3792 = vmatprep.subr.bf16.mxu0 %v3682
        %3793 = vmatpush1.bf16.msra.mxu0 %v3681
        %3794 = vmatprep.subr.bf16.mxu0 %v3686
        %3795 = vmatpush1.bf16.msra.mxu0 %v3685
        %3796 = vmatprep.subr.bf16.mxu0 %v3690
        %3797 = vmatpush1.bf16.msra.mxu0 %v3689
        %3798 = vmatprep.subr.bf16.mxu0 %v3694
        %3799 = vmatpush1.bf16.msra.mxu0 %v3693
        %3800 = vmatprep.subr.bf16.mxu0 %v3698
        %3801 = vmatpush1.bf16.msra.mxu0 %v3697
        %3802 = vmatprep.subr.bf16.mxu0 %v3702
        %3803 = vmatpush1.bf16.msra.mxu0 %v3701
        %3804 = vmatprep.subr.bf16.mxu0 0
        %3805 = vmatpush1.bf16.msra.mxu0 0
        %3806 = vmatprep.subr.bf16.mxu0 0
        %3807 = vmatpush1.bf16.msra.mxu0 0
        %3808 = vmatprep.subr.bf16.mxu0 0
        %3809 = vmatpush1.bf16.msra.mxu0 0
        %3810 = vmatprep.subr.bf16.mxu0 0
        %3811 = vmatpush1.bf16.msra.mxu0 0
        %3812 = vmatprep.subr.bf16.mxu0 0
        %3813 = vmatpush1.bf16.msra.mxu0 0
        %3814 = vmatprep.subr.bf16.mxu0 0
        %3815 = vmatpush1.bf16.msra.mxu0 0
        %3816 = vmatprep.subr.bf16.mxu0 0
        %3817 = vmatpush1.bf16.msra.mxu0 0
        %3818 = vmatprep.subr.bf16.mxu0 0
        %3819 = vmatpush1.bf16.msra.mxu0 0
        %3820 = vmatprep.mubr.bf16.mxu0 0
        %3821 = vmatmul.mubr.bf16.gmra.mrb[0].mxu0 %v3540
        %v3822 = vpop.f32.mrb[0].mxu0
        %v3823 = vadd.f32 0.0, %v3822
        %v3824 = vpop.f32.mrb[0].mxu0
        %v3825 = vadd.f32 0.0, %v3824
        %v3826 = vpop.f32.mrb[0].mxu0
        %v3827 = vadd.f32 0.0, %v3826
        %v3828 = vpop.f32.mrb[0].mxu0
        %v3829 = vadd.f32 0.0, %v3828
        %3830 = vmatprep.mubr.bf16.mxu0 0
        %3831 = vmatmul.mubr.bf16.gmra.mrb[0].mxu0 %v3541
        %v3832 = vpop.f32.mrb[0].mxu0
        %v3833 = vadd.f32 0.0, %v3832
        %v3834 = vpop.f32.mrb[0].mxu0
        %v3835 = vadd.f32 0.0, %v3834
        %v3836 = vpop.f32.mrb[0].mxu0
        %v3837 = vadd.f32 0.0, %v3836
        %v3838 = vpop.f32.mrb[0].mxu0
        %v3839 = vadd.f32 0.0, %v3838
        %3840 = vdwg.mxu0
        %v3841 = vadd.f32 %v3524, %v3770
        %v3842 = vadd.f32 %v3525, %v3772
        %v3843 = vadd.f32 %v3526, %v3823
        %v3844 = vadd.f32 %v3527, %v3825
        %v3845 = vadd.f32 %v3528, %v3774
        %v3846 = vadd.f32 %v3529, %v3776
        %v3847 = vadd.f32 %v3530, %v3827
        %v3848 = vadd.f32 %v3531, %v3829
        %v3849 = vadd.f32 %v3532, %v3780
        %v3850 = vadd.f32 %v3533, %v3782
        %v3851 = vadd.f32 %v3534, %v3833
        %v3852 = vadd.f32 %v3535, %v3835
        %v3853 = vadd.f32 %v3536, %v3784
        %v3854 = vadd.f32 %v3537, %v3786
        %v3855 = vadd.f32 %v3538, %v3837
        %v3856 = vadd.f32 %v3539, %v3839
        %v3857 = vld [vmem:[%s6] sm:$0xf]
        %v3859 = vlaneseq
        %v3860 = vshrl.u32 %v3859, 7
        %v3861 = vsub.s32 0, %v3860
        %v3862 = vrot.slane %v3857, %v3861
        %v3863 = vlaneseq
        %v3864 = vshrl.u32 %v3863, 7
        %v3865 = vsub.s32 1, %v3864
        %v3866 = vrot.slane %v3857, %v3865
        %v3867 = vlaneseq
        %v3868 = vshrl.u32 %v3867, 7
        %v3869 = vsub.s32 2, %v3868
        %v3870 = vrot.slane %v3857, %v3869
        %v3871 = vlaneseq
        %v3872 = vshrl.u32 %v3871, 7
        %v3873 = vsub.s32 3, %v3872
        %v3874 = vrot.slane %v3857, %v3873
        %v3879 = vadd.f32 %v3841, %v3862
        %v3880 = vadd.f32 %v3842, %v3866
        %v3881 = vadd.f32 %v3843, %v3870
        %v3882 = vadd.f32 %v3844, %v3874
        %v3883 = vadd.f32 %v3845, %v3862
        %v3884 = vadd.f32 %v3846, %v3866
        %v3885 = vadd.f32 %v3847, %v3870
        %v3886 = vadd.f32 %v3848, %v3874
        %v3887 = vadd.f32 %v3849, %v3862
        %v3888 = vadd.f32 %v3850, %v3866
        %v3889 = vadd.f32 %v3851, %v3870
        %v3890 = vadd.f32 %v3852, %v3874
        %v3891 = vadd.f32 %v3853, %v3862
        %v3892 = vadd.f32 %v3854, %v3866
        %v3893 = vadd.f32 %v3855, %v3870
        %v3894 = vadd.f32 %v3856, %v3874
        %v3895 = vadd.f32 %v3879, %v345
        %v3896 = vadd.f32 %v3880, %v346
        %v3897 = vadd.f32 %v3881, %v347
        %v3898 = vadd.f32 %v3882, %v348
        %v3899 = vadd.f32 %v3883, %v349
        %v3900 = vadd.f32 %v3884, %v350
        %v3901 = vadd.f32 %v3885, %v351
        %v3902 = vadd.f32 %v3886, %v352
        %v3903 = vadd.f32 %v3887, %v353
        %v3904 = vadd.f32 %v3888, %v354
        %v3905 = vadd.f32 %v3889, %v355
        %v3906 = vadd.f32 %v3890, %v356
        %v3907 = vadd.f32 %v3891, %v357
        %v3908 = vadd.f32 %v3892, %v358
        %v3909 = vadd.f32 %v3893, %v359
        %v3910 = vadd.f32 %v3894, %v360
        %v3911 = vmax.f32 %v3895, 0.0
        %v3912 = vmax.f32 %v3896, 0.0
        %v3913 = vmax.f32 %v3897, 0.0
        %v3914 = vmax.f32 %v3898, 0.0
        %v3915 = vmax.f32 %v3899, 0.0
        %v3916 = vmax.f32 %v3900, 0.0
        %v3917 = vmax.f32 %v3901, 0.0
        %v3918 = vmax.f32 %v3902, 0.0
        %v3919 = vmax.f32 %v3903, 0.0
        %v3920 = vmax.f32 %v3904, 0.0
        %v3921 = vmax.f32 %v3905, 0.0
        %v3922 = vmax.f32 %v3906, 0.0
        %v3923 = vmax.f32 %v3907, 0.0
        %v3924 = vmax.f32 %v3908, 0.0
        %v3925 = vmax.f32 %v3909, 0.0
        %v3926 = vmax.f32 %v3910, 0.0
        %3927 = vst [vmem:[%s341] sm:$0xff] %v3911
        %3928 = vst [vmem:[%s341 + $0x8] sm:$0xff] %v3912
        %3929 = vst [vmem:[%s341 + $0x10] sm:$0xff] %v3913
        %3930 = vst [vmem:[%s341 + $0x18] sm:$0xff] %v3914
        %3931 = vst [vmem:[%s341 + $0x20] sm:$0xff] %v3915
        %3932 = vst [vmem:[%s341 + $0x28] sm:$0xff] %v3916
        %3933 = vst [vmem:[%s341 + $0x30] sm:$0xff] %v3917
        %3934 = vst [vmem:[%s341 + $0x38] sm:$0xff] %v3918
        %3935 = vst [vmem:[%s341 + $0x40] sm:$0xff] %v3919
        %3936 = vst [vmem:[%s341 + $0x48] sm:$0xff] %v3920
        %3937 = vst [vmem:[%s341 + $0x50] sm:$0xff] %v3921
        %3938 = vst [vmem:[%s341 + $0x58] sm:$0xff] %v3922
        %3939 = vst [vmem:[%s341 + $0x60] sm:$0xff] %v3923
        %3940 = vst [vmem:[%s341 + $0x68] sm:$0xff] %v3924
        %3941 = vst [vmem:[%s341 + $0x70] sm:$0xff] %v3925
        %3942 = vst [vmem:[%s341 + $0x78] sm:$0xff] %v3926
        %s3943 = sand.u32 %s186, 1
        %s3944 = scalar_lea.sflag [#allocation4], %s3943
        %s3945 = sand.u32 %s186, 1
        %s3946 = smul.addr %s3945, 128
        %s3947 = scalar_lea.vmem [#allocation10], %s3946
        // Predicated region
        $region65: #{tpu_custom_call.1} parent=47 // pred_check
          %p3948 = pneg %p196
        $region66: #{tpu_custom_call.1} parent=47 // pred_check_branch
          %3950 = sbr.rel (%p3948) target = $region68
        $region67: #{tpu_custom_call.1} parent=47 // pred_region
          %s3951 = smul.u32 4, %s26
          %s3953 = ssub.s32 2048, 2048
          %3954 = vsyncadd %s3944, %s3953
          %s3955 = smul.addr %s3951, 4
          %s3956 = smul.addr %s3955, 128
          %s3957 = scalar_lea.hbm %s7, %s3956
          %s3958 = sshll.u32 %s3947, 4
          %s3959 = int_to_ptr.vmem [resolvable:$true] %s3958
          %3964 = dma.vmem_to_hbm [thread:$0]  %s3959, 2048, %s3957, %s3944, 512, 512, 32
        $region68: #{tpu_custom_call.1} parent=47 // pred_fallthru
          _
      $region48: #{tpu_custom_call.1} parent=5 // pred_fallthru
        _
      %p3965 = scmp.le.s32.totalorder 2, %s21
      // Predicated region
      $region69: #{tpu_custom_call.1} parent=5 // pred_check
        %p3966 = pneg %p3965
      $region70: #{tpu_custom_call.1} parent=5 // pred_check_branch
        %3968 = sbr.rel (%p3966) target = $region72
      $region71: #{tpu_custom_call.1} parent=5 // pred_region
        %s3969 = ssub.s32 %s21, 2
        // Predicated region
        $region73: #{tpu_custom_call.1} parent=71 // pred_check
          %p3970 = pneg %p202
        $region74: #{tpu_custom_call.1} parent=71 // pred_check_branch
          %3972 = sbr.rel (%p3970) target = $region76
        $region75: #{tpu_custom_call.1} parent=71 // pred_region
          %s3973 = sand.u32 %s187, 1
          %s3974 = scalar_lea.sflag [#allocation4], %s3973
          %s3975 = sand.u32 %s187, 1
          %s3976 = smul.addr %s3975, 128
          %s3977 = scalar_lea.vmem [#allocation10], %s3976
          %3978 = dma.done %s3974, 2048
        $region76: #{tpu_custom_call.1} parent=71 // pred_fallthru
          _
      $region72: #{tpu_custom_call.1} parent=5 // pred_fallthru
        _
    $region6: #{tpu_custom_call.1} parent=1 // loop_footer
      %s25 = sadd.s32 1, %s21
    $region7: #{tpu_custom_call.1} parent=1 // loop_footer_branch
      %20 = sbr.rel target = $region3
    $region8: #{tpu_custom_call.1} parent=1 // loop_exit
      _
    %3979 = vsyncpa [#allocation3], 1
    %s3980 = scalar_lea.sflag [#allocation3], 1
    %3981 = vsyncpa %s3980, 1
    %3982 = vsyncpa [#allocation6], 1
    %3983 = vsyncpa [#allocation9], 1
    %3984 = vsyncpa [#allocation4], 1
    %s3985 = scalar_lea.sflag [#allocation4], 1
    %3986 = vsyncpa %s3985, 1

</llo_original>
